<compile_context>
chip_gen: v7x
topology: tpu7x:2x2x1
jax: 0.10.0
libtpu: 0.0.40
codegen_flags: <defaults>
</compile_context>

<pallas_src>
import functools

import jax
import jax.numpy as jnp
from jax.experimental import pallas as pl
from jax.experimental.pallas import tpu as pltpu


def _round_up(x, m):
    return ((x + m - 1) // m) * m


# ----------------------------------------------------------------------------
# Fused kernel: full MLP stack + Tb recurrence steps per grid iteration.
#   refs = (y0, w0, b0, w1, b1, ..., w_{L-1}, b_{L-1}, out, y_scratch)
# ----------------------------------------------------------------------------
def _fused_mlp_kernel(*refs, n_layers, t_block, d_out):
    y0_ref = refs[0]
    wb = refs[1:1 + 2 * n_layers]
    out_ref = refs[1 + 2 * n_layers]          # (Tb, B, D) block in VMEM
    y_ref = refs[2 + 2 * n_layers]            # (B, Dpad) f32 carried activation

    g = pl.program_id(0)

    # Hoist weight/bias loads out of the unrolled time loop (VMEM-resident,
    # grid-invariant, single-buffered).
    ws = [wb[2 * i][...] for i in range(n_layers)]          # bf16
    bs = [wb[2 * i + 1][...] for i in range(n_layers)]      # f32

    def net(y):
        for i in range(n_layers):
            y = jnp.dot(y.astype(jnp.bfloat16), ws[i],
                        preferred_element_type=jnp.float32) + bs[i]
            if i < n_layers - 1:
                y = jnp.tanh(y)
        return y

    for local in range(t_block):              # static unroll over time chunk
        if local == 0:
            @pl.when(g == 0)
            def _():
                y_ref[...] = y0_ref[...].astype(jnp.float32)   # ys[0] = y0 exact

            @pl.when(g > 0)
            def _():
                y_ref[...] = net(y_ref[...])
        else:
            y_ref[...] = net(y_ref[...])

        # Un-padded, lane-masked tail store (block last dim == full dim D).
        out_ref[local, :, :] = y_ref[...][:, :d_out].astype(out_ref.dtype)


def mlp_forward_pallas(params, y0, t_steps):
    """Replicates MLP.forward(y0, t) with t.shape[0] == t_steps.

    params: list of (w, b), w already in (in, out) layout, b (out,)
    y0:     (B, D) float32
    returns (B, T, D) with PyTorch .view byte-order semantics.
    """
    B, D = y0.shape
    n_layers = len(params)
    d_pad = _round_up(D, 128)

    # Zero-pad feature dims to multiples of 128 and cast weights to bf16.
    # Zero pads keep the recurrence exact: padded activation columns stay
    # identically zero because matching weight rows/cols and biases are zero.
    padded = []
    for (w, b) in params:
        k_in, k_out = w.shape
        k_in_p = _round_up(k_in, 128)
        k_out_p = _round_up(k_out, 128)
        w_p = jnp.zeros((k_in_p, k_out_p), jnp.bfloat16).at[:k_in, :k_out].set(
            w.astype(jnp.bfloat16))
        b_p = jnp.zeros((1, k_out_p), jnp.float32).at[0, :k_out].set(
            b.astype(jnp.float32))
        padded.append((w_p, b_p))
    y0_p = jnp.zeros((B, d_pad), jnp.float32).at[:, :D].set(y0.astype(jnp.float32))

    # Time-chunking: largest divisor of T not exceeding 8 (amortizes the
    # per-grid-step pipeline overhead; keeps the unrolled body modest).
    t_block = max(d for d in range(1, min(t_steps, 8) + 1) if t_steps % d == 0)
    grid = (t_steps // t_block,)

    flat_inputs = [y0_p]
    for (w_p, b_p) in padded:
        flat_inputs.extend([w_p, b_p])

    out_shape = jax.ShapeDtypeStruct((t_steps, B, D), jnp.float32)
    out_spec = pl.BlockSpec((t_block, B, D), lambda g: (g, 0, 0))

    kernel = functools.partial(_fused_mlp_kernel, n_layers=n_layers,
                               t_block=t_block, d_out=D)

    param_bytes = sum(int(w.size) * w.dtype.itemsize + int(b.size) * b.dtype.itemsize
                      for (w, b) in padded)
    y0_bytes = int(y0_p.size) * 4
    act_bytes = B * d_pad * 4
    out_blk_bytes = t_block * B * D * 4

    try:
        vmem_cap = int(pltpu.get_tpu_info().vmem_capacity_bytes)
    except Exception:
        vmem_cap = 64 * 1024 * 1024          # safe floor (v7x per-TC VMEM)

    def build(single_buffer):
        use_sb = single_buffer and hasattr(pl, "Buffered")
        kw = {"pipeline_mode": pl.Buffered(1)} if use_sb else {}

        # Grid-invariant index maps -> each parameter is DMA'd into VMEM once
        # and stays resident for all grid steps.
        in_specs = [pl.BlockSpec((B, d_pad), lambda g: (0, 0), **kw)]
        for (w_p, b_p) in padded:
            in_specs.append(pl.BlockSpec(w_p.shape, lambda g: (0, 0), **kw))
            in_specs.append(pl.BlockSpec(b_p.shape, lambda g: (0, 0), **kw))

        n_buf = 1 if use_sb else 2
        vmem_bytes = (n_buf * (param_bytes + y0_bytes) + act_bytes
                      + 2 * out_blk_bytes + (4 << 20))
        vmem_bytes = max(min(int(vmem_bytes), vmem_cap - (2 << 20)), 1 << 20)

        return pl.pallas_call(
            kernel,
            out_shape=out_shape,
            grid_spec=pltpu.PrefetchScalarGridSpec(
                num_scalar_prefetch=0,
                grid=grid,
                in_specs=in_specs,
                out_specs=out_spec,
                scratch_shapes=[pltpu.VMEM((B, d_pad), jnp.float32)],
            ),
            compiler_params=pltpu.CompilerParams(
                dimension_semantics=("arbitrary",),   # sequential carry in time
                vmem_limit_bytes=vmem_bytes,
            ),
        )

    try:
        out = build(True)(*flat_inputs)
    except Exception:
        # Fallback if this JAX build rejects pipeline_mode=Buffered(1).
        out = build(False)(*flat_inputs)

    return out.reshape(-1, t_steps, D)         # same byte order as torch .view


# ----------------------------------------------------------------------------
# Parameter init (mimics nn.Linear default: uniform +- 1/sqrt(fan_in)).
# Weights stored in (in, out) layout so the kernel does x @ W + b.
# ----------------------------------------------------------------------------
def init_mlp_params(key, input_dim, hidden_dim, num_layers):
    dims = [input_dim] + [hidden_dim] * num_layers + [input_dim]
    params = []
    for i in range(len(dims) - 1):
        fan_in, fan_out = dims[i], dims[i + 1]
        key, kw, kb = jax.random.split(key, 3)
        bound = 1.0 / jnp.sqrt(fan_in)
        w = jax.random.uniform(kw, (fan_in, fan_out), jnp.float32, -bound, bound)
        b = jax.random.uniform(kb, (fan_out,), jnp.float32, -bound, bound)
        params.append((w, b))
    return params


# ----------------------------------------------------------------------------
if __name__ == "__main__":
    # Small shapes consistent with the module (original: D=2500, H=2048).
    # INPUT_DIM deliberately NOT a multiple of 128 to exercise the padding path.
    INPUT_DIM = 200
    HIDDEN_DIM = 256
    NUM_LAYERS = 2
    BATCH = 2
    T = 16                                     # -> grid of 2 time-chunks of 8

    key = jax.random.PRNGKey(0)
    key, ky = jax.random.split(key)
    params = init_mlp_params(key, INPUT_DIM, HIDDEN_DIM, NUM_LAYERS)
    y0 = jax.random.normal(ky, (BATCH, INPUT_DIM), jnp.float32)
    t = jnp.linspace(0.0, 1.0, T)   # only t.shape[0] is used, as in PyTorch

    out = mlp_forward_pallas(params, y0, t.shape[0])
    out = jax.block_until_ready(out)

    assert out.shape == (BATCH, T, INPUT_DIM), out.shape

    # Pure-JAX reference mirroring the kernel's numerics (bf16 weights,
    # f32 accumulate), unpadded.
    def ref_forward(params, y0, t_steps):
        ys = [y0]
        y = y0
        for _ in range(t_steps - 1):
            for i, (w, b) in enumerate(params):
                y = jnp.dot(y.astype(jnp.bfloat16), w.astype(jnp.bfloat16),
                            preferred_element_type=jnp.float32) + b
                if i < len(params) - 1:
                    y = jnp.tanh(y)
            ys.append(y)
        return jnp.stack(ys).reshape(-1, t_steps, y0.shape[-1])

    ref = ref_forward(params, y0, T)
    max_err = float(jnp.max(jnp.abs(out - ref)))
    assert jnp.allclose(out, ref, atol=2e-3, rtol=2e-3), max_err

    print("KERNEL_OK")
</pallas_src>

<mosaic_0001>
module attributes {stable_mosaic.version = 11 : i64} {
  func.func @_fused_mlp_kernel(%arg0: i32, %arg1: memref<2x256xf32, #tpu.memory_space<vmem>>, %arg2: memref<256x256xbf16, #tpu.memory_space<vmem>>, %arg3: memref<1x256xf32, #tpu.memory_space<vmem>>, %arg4: memref<256x256xbf16, #tpu.memory_space<vmem>>, %arg5: memref<1x256xf32, #tpu.memory_space<vmem>>, %arg6: memref<256x256xbf16, #tpu.memory_space<vmem>>, %arg7: memref<1x256xf32, #tpu.memory_space<vmem>>, %arg8: memref<8x2x200xf32, #tpu.memory_space<vmem>>, %arg9: memref<2x256xf32, #tpu.memory_space<vmem>>) attributes {dimension_semantics = [#tpu.dimension_semantics<arbitrary>], iteration_bounds = array<i64: 2>, scalar_prefetch = 0 : i64, scratch_operands = 1 : i64, tpu.core_type = #tpu.core_type<tc>, window_params = [{pipeline_mode = #tpu.pipeline_mode<synchronous>, transform_indices = @transform_0, window_bounds = array<i64: 2, 256>}, {pipeline_mode = #tpu.pipeline_mode<synchronous>, transform_indices = @transform_1, window_bounds = array<i64: 256, 256>}, {pipeline_mode = #tpu.pipeline_mode<synchronous>, transform_indices = @transform_2, window_bounds = array<i64: 1, 256>}, {pipeline_mode = #tpu.pipeline_mode<synchronous>, transform_indices = @transform_3, window_bounds = array<i64: 256, 256>}, {pipeline_mode = #tpu.pipeline_mode<synchronous>, transform_indices = @transform_4, window_bounds = array<i64: 1, 256>}, {pipeline_mode = #tpu.pipeline_mode<synchronous>, transform_indices = @transform_5, window_bounds = array<i64: 256, 256>}, {pipeline_mode = #tpu.pipeline_mode<synchronous>, transform_indices = @transform_6, window_bounds = array<i64: 1, 256>}, {transform_indices = @transform_7, window_bounds = array<i64: 8, 2, 200>}]} {
    %c0 = arith.constant 0 : index
    %c0_0 = arith.constant 0 : index
    %0 = vector.load %arg2[%c0, %c0_0] : memref<256x256xbf16, #tpu.memory_space<vmem>>, vector<256x256xbf16>
    %c0_1 = arith.constant 0 : index
    %c0_2 = arith.constant 0 : index
    %1 = vector.load %arg4[%c0_1, %c0_2] : memref<256x256xbf16, #tpu.memory_space<vmem>>, vector<256x256xbf16>
    %c0_3 = arith.constant 0 : index
    %c0_4 = arith.constant 0 : index
    %2 = vector.load %arg6[%c0_3, %c0_4] : memref<256x256xbf16, #tpu.memory_space<vmem>>, vector<256x256xbf16>
    %c0_5 = arith.constant 0 : index
    %c0_6 = arith.constant 0 : index
    %3 = vector.load %arg3[%c0_5, %c0_6] : memref<1x256xf32, #tpu.memory_space<vmem>>, vector<1x256xf32>
    %c0_7 = arith.constant 0 : index
    %c0_8 = arith.constant 0 : index
    %4 = vector.load %arg5[%c0_7, %c0_8] : memref<1x256xf32, #tpu.memory_space<vmem>>, vector<1x256xf32>
    %c0_9 = arith.constant 0 : index
    %c0_10 = arith.constant 0 : index
    %5 = vector.load %arg7[%c0_9, %c0_10] : memref<1x256xf32, #tpu.memory_space<vmem>>, vector<1x256xf32>
    %c0_i32 = arith.constant 0 : i32
    %6 = arith.cmpi eq, %arg0, %c0_i32 : i32
    %7 = arith.extui %6 : i1 to i32
    %c0_i32_11 = arith.constant 0 : i32
    %8 = arith.cmpi ne, %7, %c0_i32_11 : i32
    scf.if %8 {
      %c0_95 = arith.constant 0 : index
      %c0_96 = arith.constant 0 : index
      %164 = vector.load %arg1[%c0_95, %c0_96] : memref<2x256xf32, #tpu.memory_space<vmem>>, vector<2x256xf32>
      %c0_97 = arith.constant 0 : index
      %c0_98 = arith.constant 0 : index
      %165 = vector.load %arg9[%c0_97, %c0_98] : memref<2x256xf32, #tpu.memory_space<vmem>>, vector<2x256xf32>
      tpu.vector_store %arg9[%c0_97, %c0_98], %164 {strides = array<i32>} : memref<2x256xf32, #tpu.memory_space<vmem>>, vector<2x256xf32>,
    } else {
    }
    %c0_i32_12 = arith.constant 0 : i32
    %9 = arith.cmpi sgt, %arg0, %c0_i32_12 : i32
    %10 = arith.extui %9 : i1 to i32
    %c0_i32_13 = arith.constant 0 : i32
    %11 = arith.cmpi ne, %10, %c0_i32_13 : i32
    scf.if %11 {
      %c0_95 = arith.constant 0 : index
      %c0_96 = arith.constant 0 : index
      %164 = vector.load %arg9[%c0_95, %c0_96] : memref<2x256xf32, #tpu.memory_space<vmem>>, vector<2x256xf32>
      %165 = arith.truncf %164 : vector<2x256xf32> to vector<2x256xbf16>
      %cst_97 = arith.constant dense<0.000000e+00> : vector<2x256xf32>
      %166 = tpu.matmul %165, %0, %cst_97 {dimension_numbers = #tpu.dot_dimension_numbers<[1], [0], [0], [1], [0, 0, 1, 1], [], []>} : vector<2x256xbf16>, vector<256x256xbf16>, vector<2x256xf32> -> vector<2x256xf32>
      %167 = vector.broadcast %3 : vector<1x256xf32> to vector<2x256xf32>
      %168 = arith.addf %166, %167 : vector<2x256xf32>
      %169 = math.tanh %168 : vector<2x256xf32>
      %170 = arith.truncf %169 : vector<2x256xf32> to vector<2x256xbf16>
      %cst_98 = arith.constant dense<0.000000e+00> : vector<2x256xf32>
      %171 = tpu.matmul %170, %1, %cst_98 {dimension_numbers = #tpu.dot_dimension_numbers<[1], [0], [0], [1], [0, 0, 1, 1], [], []>} : vector<2x256xbf16>, vector<256x256xbf16>, vector<2x256xf32> -> vector<2x256xf32>
      %172 = vector.broadcast %4 : vector<1x256xf32> to vector<2x256xf32>
      %173 = arith.addf %171, %172 : vector<2x256xf32>
      %174 = math.tanh %173 : vector<2x256xf32>
      %175 = arith.truncf %174 : vector<2x256xf32> to vector<2x256xbf16>
      %cst_99 = arith.constant dense<0.000000e+00> : vector<2x256xf32>
      %176 = tpu.matmul %175, %2, %cst_99 {dimension_numbers = #tpu.dot_dimension_numbers<[1], [0], [0], [1], [0, 0, 1, 1], [], []>} : vector<2x256xbf16>, vector<256x256xbf16>, vector<2x256xf32> -> vector<2x256xf32>
      %177 = vector.broadcast %5 : vector<1x256xf32> to vector<2x256xf32>
      %178 = arith.addf %176, %177 : vector<2x256xf32>
      %c0_100 = arith.constant 0 : index
      %c0_101 = arith.constant 0 : index
      %179 = vector.load %arg9[%c0_100, %c0_101] : memref<2x256xf32, #tpu.memory_space<vmem>>, vector<2x256xf32>
      tpu.vector_store %arg9[%c0_100, %c0_101], %178 {strides = array<i32>} : memref<2x256xf32, #tpu.memory_space<vmem>>, vector<2x256xf32>,
    } else {
    }
    %c0_14 = arith.constant 0 : index
    %c0_15 = arith.constant 0 : index
    %12 = vector.load %arg9[%c0_14, %c0_15] : memref<2x256xf32, #tpu.memory_space<vmem>>, vector<2x256xf32>
    %13 = vector.extract_strided_slice %12 {offsets = [0, 0], sizes = [2, 200], strides = [1, 1]} : vector<2x256xf32> to vector<2x200xf32>
    %c0_16 = arith.constant 0 : index
    %c0_17 = arith.constant 0 : index
    %c0_18 = arith.constant 0 : index
    %14 = vector.load %arg8[%c0_16, %c0_17, %c0_18] : memref<8x2x200xf32, #tpu.memory_space<vmem>>, vector<1x2x200xf32>
    %15 = vector.shape_cast %14 : vector<1x2x200xf32> to vector<2x200xf32>
    %16 = vector.shape_cast %13 : vector<2x200xf32> to vector<1x2x200xf32>
    tpu.vector_store %arg8[%c0_16, %c0_17, %c0_18], %16 {strides = array<i32>} : memref<8x2x200xf32, #tpu.memory_space<vmem>>, vector<1x2x200xf32>,
    %c0_19 = arith.constant 0 : index
    %c0_20 = arith.constant 0 : index
    %17 = vector.load %arg9[%c0_19, %c0_20] : memref<2x256xf32, #tpu.memory_space<vmem>>, vector<2x256xf32>
    %18 = arith.truncf %17 : vector<2x256xf32> to vector<2x256xbf16>
    %cst = arith.constant dense<0.000000e+00> : vector<2x256xf32>
    %19 = tpu.matmul %18, %0, %cst {dimension_numbers = #tpu.dot_dimension_numbers<[1], [0], [0], [1], [0, 0, 1, 1], [], []>} : vector<2x256xbf16>, vector<256x256xbf16>, vector<2x256xf32> -> vector<2x256xf32>
    %20 = vector.broadcast %3 : vector<1x256xf32> to vector<2x256xf32>
    %21 = arith.addf %19, %20 : vector<2x256xf32>
    %22 = math.tanh %21 : vector<2x256xf32>
    %23 = arith.truncf %22 : vector<2x256xf32> to vector<2x256xbf16>
    %cst_21 = arith.constant dense<0.000000e+00> : vector<2x256xf32>
    %24 = tpu.matmul %23, %1, %cst_21 {dimension_numbers = #tpu.dot_dimension_numbers<[1], [0], [0], [1], [0, 0, 1, 1], [], []>} : vector<2x256xbf16>, vector<256x256xbf16>, vector<2x256xf32> -> vector<2x256xf32>
    %25 = vector.broadcast %4 : vector<1x256xf32> to vector<2x256xf32>
    %26 = arith.addf %24, %25 : vector<2x256xf32>
    %27 = math.tanh %26 : vector<2x256xf32>
    %28 = arith.truncf %27 : vector<2x256xf32> to vector<2x256xbf16>
    %cst_22 = arith.constant dense<0.000000e+00> : vector<2x256xf32>
    %29 = tpu.matmul %28, %2, %cst_22 {dimension_numbers = #tpu.dot_dimension_numbers<[1], [0], [0], [1], [0, 0, 1, 1], [], []>} : vector<2x256xbf16>, vector<256x256xbf16>, vector<2x256xf32> -> vector<2x256xf32>
    %30 = vector.broadcast %5 : vector<1x256xf32> to vector<2x256xf32>
    %31 = arith.addf %29, %30 : vector<2x256xf32>
    %c0_23 = arith.constant 0 : index
    %c0_24 = arith.constant 0 : index
    %32 = vector.load %arg9[%c0_23, %c0_24] : memref<2x256xf32, #tpu.memory_space<vmem>>, vector<2x256xf32>
    tpu.vector_store %arg9[%c0_23, %c0_24], %31 {strides = array<i32>} : memref<2x256xf32, #tpu.memory_space<vmem>>, vector<2x256xf32>,
    %c0_25 = arith.constant 0 : index
    %c0_26 = arith.constant 0 : index
    %33 = vector.load %arg9[%c0_25, %c0_26] : memref<2x256xf32, #tpu.memory_space<vmem>>, vector<2x256xf32>
    %34 = vector.extract_strided_slice %33 {offsets = [0, 0], sizes = [2, 200], strides = [1, 1]} : vector<2x256xf32> to vector<2x200xf32>
    %c1 = arith.constant 1 : index
    %c0_27 = arith.constant 0 : index
    %c0_28 = arith.constant 0 : index
    %35 = vector.load %arg8[%c1, %c0_27, %c0_28] : memref<8x2x200xf32, #tpu.memory_space<vmem>>, vector<1x2x200xf32>
    %36 = vector.shape_cast %35 : vector<1x2x200xf32> to vector<2x200xf32>
    %37 = vector.shape_cast %34 : vector<2x200xf32> to vector<1x2x200xf32>
    tpu.vector_store %arg8[%c1, %c0_27, %c0_28], %37 {strides = array<i32>} : memref<8x2x200xf32, #tpu.memory_space<vmem>>, vector<1x2x200xf32>,
    %c0_29 = arith.constant 0 : index
    %c0_30 = arith.constant 0 : index
    %38 = vector.load %arg9[%c0_29, %c0_30] : memref<2x256xf32, #tpu.memory_space<vmem>>, vector<2x256xf32>
    %39 = arith.truncf %38 : vector<2x256xf32> to vector<2x256xbf16>
    %cst_31 = arith.constant dense<0.000000e+00> : vector<2x256xf32>
    %40 = tpu.matmul %39, %0, %cst_31 {dimension_numbers = #tpu.dot_dimension_numbers<[1], [0], [0], [1], [0, 0, 1, 1], [], []>} : vector<2x256xbf16>, vector<256x256xbf16>, vector<2x256xf32> -> vector<2x256xf32>
    %41 = vector.broadcast %3 : vector<1x256xf32> to vector<2x256xf32>
    %42 = arith.addf %40, %41 : vector<2x256xf32>
    %43 = math.tanh %42 : vector<2x256xf32>
    %44 = arith.truncf %43 : vector<2x256xf32> to vector<2x256xbf16>
    %cst_32 = arith.constant dense<0.000000e+00> : vector<2x256xf32>
    %45 = tpu.matmul %44, %1, %cst_32 {dimension_numbers = #tpu.dot_dimension_numbers<[1], [0], [0], [1], [0, 0, 1, 1], [], []>} : vector<2x256xbf16>, vector<256x256xbf16>, vector<2x256xf32> -> vector<2x256xf32>
    %46 = vector.broadcast %4 : vector<1x256xf32> to vector<2x256xf32>
    %47 = arith.addf %45, %46 : vector<2x256xf32>
    %48 = math.tanh %47 : vector<2x256xf32>
    %49 = arith.truncf %48 : vector<2x256xf32> to vector<2x256xbf16>
    %cst_33 = arith.constant dense<0.000000e+00> : vector<2x256xf32>
    %50 = tpu.matmul %49, %2, %cst_33 {dimension_numbers = #tpu.dot_dimension_numbers<[1], [0], [0], [1], [0, 0, 1, 1], [], []>} : vector<2x256xbf16>, vector<256x256xbf16>, vector<2x256xf32> -> vector<2x256xf32>
    %51 = vector.broadcast %5 : vector<1x256xf32> to vector<2x256xf32>
    %52 = arith.addf %50, %51 : vector<2x256xf32>
    %c0_34 = arith.constant 0 : index
    %c0_35 = arith.constant 0 : index
    %53 = vector.load %arg9[%c0_34, %c0_35] : memref<2x256xf32, #tpu.memory_space<vmem>>, vector<2x256xf32>
    tpu.vector_store %arg9[%c0_34, %c0_35], %52 {strides = array<i32>} : memref<2x256xf32, #tpu.memory_space<vmem>>, vector<2x256xf32>,
    %c0_36 = arith.constant 0 : index
    %c0_37 = arith.constant 0 : index
    %54 = vector.load %arg9[%c0_36, %c0_37] : memref<2x256xf32, #tpu.memory_space<vmem>>, vector<2x256xf32>
    %55 = vector.extract_strided_slice %54 {offsets = [0, 0], sizes = [2, 200], strides = [1, 1]} : vector<2x256xf32> to vector<2x200xf32>
    %c2 = arith.constant 2 : index
    %c0_38 = arith.constant 0 : index
    %c0_39 = arith.constant 0 : index
    %56 = vector.load %arg8[%c2, %c0_38, %c0_39] : memref<8x2x200xf32, #tpu.memory_space<vmem>>, vector<1x2x200xf32>
    %57 = vector.shape_cast %56 : vector<1x2x200xf32> to vector<2x200xf32>
    %58 = vector.shape_cast %55 : vector<2x200xf32> to vector<1x2x200xf32>
    tpu.vector_store %arg8[%c2, %c0_38, %c0_39], %58 {strides = array<i32>} : memref<8x2x200xf32, #tpu.memory_space<vmem>>, vector<1x2x200xf32>,
    %c0_40 = arith.constant 0 : index
    %c0_41 = arith.constant 0 : index
    %59 = vector.load %arg9[%c0_40, %c0_41] : memref<2x256xf32, #tpu.memory_space<vmem>>, vector<2x256xf32>
    %60 = arith.truncf %59 : vector<2x256xf32> to vector<2x256xbf16>
    %cst_42 = arith.constant dense<0.000000e+00> : vector<2x256xf32>
    %61 = tpu.matmul %60, %0, %cst_42 {dimension_numbers = #tpu.dot_dimension_numbers<[1], [0], [0], [1], [0, 0, 1, 1], [], []>} : vector<2x256xbf16>, vector<256x256xbf16>, vector<2x256xf32> -> vector<2x256xf32>
    %62 = vector.broadcast %3 : vector<1x256xf32> to vector<2x256xf32>
    %63 = arith.addf %61, %62 : vector<2x256xf32>
    %64 = math.tanh %63 : vector<2x256xf32>
    %65 = arith.truncf %64 : vector<2x256xf32> to vector<2x256xbf16>
    %cst_43 = arith.constant dense<0.000000e+00> : vector<2x256xf32>
    %66 = tpu.matmul %65, %1, %cst_43 {dimension_numbers = #tpu.dot_dimension_numbers<[1], [0], [0], [1], [0, 0, 1, 1], [], []>} : vector<2x256xbf16>, vector<256x256xbf16>, vector<2x256xf32> -> vector<2x256xf32>
    %67 = vector.broadcast %4 : vector<1x256xf32> to vector<2x256xf32>
    %68 = arith.addf %66, %67 : vector<2x256xf32>
    %69 = math.tanh %68 : vector<2x256xf32>
    %70 = arith.truncf %69 : vector<2x256xf32> to vector<2x256xbf16>
    %cst_44 = arith.constant dense<0.000000e+00> : vector<2x256xf32>
    %71 = tpu.matmul %70, %2, %cst_44 {dimension_numbers = #tpu.dot_dimension_numbers<[1], [0], [0], [1], [0, 0, 1, 1], [], []>} : vector<2x256xbf16>, vector<256x256xbf16>, vector<2x256xf32> -> vector<2x256xf32>
    %72 = vector.broadcast %5 : vector<1x256xf32> to vector<2x256xf32>
    %73 = arith.addf %71, %72 : vector<2x256xf32>
    %c0_45 = arith.constant 0 : index
    %c0_46 = arith.constant 0 : index
    %74 = vector.load %arg9[%c0_45, %c0_46] : memref<2x256xf32, #tpu.memory_space<vmem>>, vector<2x256xf32>
    tpu.vector_store %arg9[%c0_45, %c0_46], %73 {strides = array<i32>} : memref<2x256xf32, #tpu.memory_space<vmem>>, vector<2x256xf32>,
    %c0_47 = arith.constant 0 : index
    %c0_48 = arith.constant 0 : index
    %75 = vector.load %arg9[%c0_47, %c0_48] : memref<2x256xf32, #tpu.memory_space<vmem>>, vector<2x256xf32>
    %76 = vector.extract_strided_slice %75 {offsets = [0, 0], sizes = [2, 200], strides = [1, 1]} : vector<2x256xf32> to vector<2x200xf32>
    %c3 = arith.constant 3 : index
    %c0_49 = arith.constant 0 : index
    %c0_50 = arith.constant 0 : index
    %77 = vector.load %arg8[%c3, %c0_49, %c0_50] : memref<8x2x200xf32, #tpu.memory_space<vmem>>, vector<1x2x200xf32>
    %78 = vector.shape_cast %77 : vector<1x2x200xf32> to vector<2x200xf32>
    %79 = vector.shape_cast %76 : vector<2x200xf32> to vector<1x2x200xf32>
    tpu.vector_store %arg8[%c3, %c0_49, %c0_50], %79 {strides = array<i32>} : memref<8x2x200xf32, #tpu.memory_space<vmem>>, vector<1x2x200xf32>,
    %c0_51 = arith.constant 0 : index
    %c0_52 = arith.constant 0 : index
    %80 = vector.load %arg9[%c0_51, %c0_52] : memref<2x256xf32, #tpu.memory_space<vmem>>, vector<2x256xf32>
    %81 = arith.truncf %80 : vector<2x256xf32> to vector<2x256xbf16>
    %cst_53 = arith.constant dense<0.000000e+00> : vector<2x256xf32>
    %82 = tpu.matmul %81, %0, %cst_53 {dimension_numbers = #tpu.dot_dimension_numbers<[1], [0], [0], [1], [0, 0, 1, 1], [], []>} : vector<2x256xbf16>, vector<256x256xbf16>, vector<2x256xf32> -> vector<2x256xf32>
    %83 = vector.broadcast %3 : vector<1x256xf32> to vector<2x256xf32>
    %84 = arith.addf %82, %83 : vector<2x256xf32>
    %85 = math.tanh %84 : vector<2x256xf32>
    %86 = arith.truncf %85 : vector<2x256xf32> to vector<2x256xbf16>
    %cst_54 = arith.constant dense<0.000000e+00> : vector<2x256xf32>
    %87 = tpu.matmul %86, %1, %cst_54 {dimension_numbers = #tpu.dot_dimension_numbers<[1], [0], [0], [1], [0, 0, 1, 1], [], []>} : vector<2x256xbf16>, vector<256x256xbf16>, vector<2x256xf32> -> vector<2x256xf32>
    %88 = vector.broadcast %4 : vector<1x256xf32> to vector<2x256xf32>
    %89 = arith.addf %87, %88 : vector<2x256xf32>
    %90 = math.tanh %89 : vector<2x256xf32>
    %91 = arith.truncf %90 : vector<2x256xf32> to vector<2x256xbf16>
    %cst_55 = arith.constant dense<0.000000e+00> : vector<2x256xf32>
    %92 = tpu.matmul %91, %2, %cst_55 {dimension_numbers = #tpu.dot_dimension_numbers<[1], [0], [0], [1], [0, 0, 1, 1], [], []>} : vector<2x256xbf16>, vector<256x256xbf16>, vector<2x256xf32> -> vector<2x256xf32>
    %93 = vector.broadcast %5 : vector<1x256xf32> to vector<2x256xf32>
    %94 = arith.addf %92, %93 : vector<2x256xf32>
    %c0_56 = arith.constant 0 : index
    %c0_57 = arith.constant 0 : index
    %95 = vector.load %arg9[%c0_56, %c0_57] : memref<2x256xf32, #tpu.memory_space<vmem>>, vector<2x256xf32>
    tpu.vector_store %arg9[%c0_56, %c0_57], %94 {strides = array<i32>} : memref<2x256xf32, #tpu.memory_space<vmem>>, vector<2x256xf32>,
    %c0_58 = arith.constant 0 : index
    %c0_59 = arith.constant 0 : index
    %96 = vector.load %arg9[%c0_58, %c0_59] : memref<2x256xf32, #tpu.memory_space<vmem>>, vector<2x256xf32>
    %97 = vector.extract_strided_slice %96 {offsets = [0, 0], sizes = [2, 200], strides = [1, 1]} : vector<2x256xf32> to vector<2x200xf32>
    %c4 = arith.constant 4 : index
    %c0_60 = arith.constant 0 : index
    %c0_61 = arith.constant 0 : index
    %98 = vector.load %arg8[%c4, %c0_60, %c0_61] : memref<8x2x200xf32, #tpu.memory_space<vmem>>, vector<1x2x200xf32>
    %99 = vector.shape_cast %98 : vector<1x2x200xf32> to vector<2x200xf32>
    %100 = vector.shape_cast %97 : vector<2x200xf32> to vector<1x2x200xf32>
    tpu.vector_store %arg8[%c4, %c0_60, %c0_61], %100 {strides = array<i32>} : memref<8x2x200xf32, #tpu.memory_space<vmem>>, vector<1x2x200xf32>,
    %c0_62 = arith.constant 0 : index
    %c0_63 = arith.constant 0 : index
    %101 = vector.load %arg9[%c0_62, %c0_63] : memref<2x256xf32, #tpu.memory_space<vmem>>, vector<2x256xf32>
    %102 = arith.truncf %101 : vector<2x256xf32> to vector<2x256xbf16>
    %cst_64 = arith.constant dense<0.000000e+00> : vector<2x256xf32>
    %103 = tpu.matmul %102, %0, %cst_64 {dimension_numbers = #tpu.dot_dimension_numbers<[1], [0], [0], [1], [0, 0, 1, 1], [], []>} : vector<2x256xbf16>, vector<256x256xbf16>, vector<2x256xf32> -> vector<2x256xf32>
    %104 = vector.broadcast %3 : vector<1x256xf32> to vector<2x256xf32>
    %105 = arith.addf %103, %104 : vector<2x256xf32>
    %106 = math.tanh %105 : vector<2x256xf32>
    %107 = arith.truncf %106 : vector<2x256xf32> to vector<2x256xbf16>
    %cst_65 = arith.constant dense<0.000000e+00> : vector<2x256xf32>
    %108 = tpu.matmul %107, %1, %cst_65 {dimension_numbers = #tpu.dot_dimension_numbers<[1], [0], [0], [1], [0, 0, 1, 1], [], []>} : vector<2x256xbf16>, vector<256x256xbf16>, vector<2x256xf32> -> vector<2x256xf32>
    %109 = vector.broadcast %4 : vector<1x256xf32> to vector<2x256xf32>
    %110 = arith.addf %108, %109 : vector<2x256xf32>
    %111 = math.tanh %110 : vector<2x256xf32>
    %112 = arith.truncf %111 : vector<2x256xf32> to vector<2x256xbf16>
    %cst_66 = arith.constant dense<0.000000e+00> : vector<2x256xf32>
    %113 = tpu.matmul %112, %2, %cst_66 {dimension_numbers = #tpu.dot_dimension_numbers<[1], [0], [0], [1], [0, 0, 1, 1], [], []>} : vector<2x256xbf16>, vector<256x256xbf16>, vector<2x256xf32> -> vector<2x256xf32>
    %114 = vector.broadcast %5 : vector<1x256xf32> to vector<2x256xf32>
    %115 = arith.addf %113, %114 : vector<2x256xf32>
    %c0_67 = arith.constant 0 : index
    %c0_68 = arith.constant 0 : index
    %116 = vector.load %arg9[%c0_67, %c0_68] : memref<2x256xf32, #tpu.memory_space<vmem>>, vector<2x256xf32>
    tpu.vector_store %arg9[%c0_67, %c0_68], %115 {strides = array<i32>} : memref<2x256xf32, #tpu.memory_space<vmem>>, vector<2x256xf32>,
    %c0_69 = arith.constant 0 : index
    %c0_70 = arith.constant 0 : index
    %117 = vector.load %arg9[%c0_69, %c0_70] : memref<2x256xf32, #tpu.memory_space<vmem>>, vector<2x256xf32>
    %118 = vector.extract_strided_slice %117 {offsets = [0, 0], sizes = [2, 200], strides = [1, 1]} : vector<2x256xf32> to vector<2x200xf32>
    %c5 = arith.constant 5 : index
    %c0_71 = arith.constant 0 : index
    %c0_72 = arith.constant 0 : index
    %119 = vector.load %arg8[%c5, %c0_71, %c0_72] : memref<8x2x200xf32, #tpu.memory_space<vmem>>, vector<1x2x200xf32>
    %120 = vector.shape_cast %119 : vector<1x2x200xf32> to vector<2x200xf32>
    %121 = vector.shape_cast %118 : vector<2x200xf32> to vector<1x2x200xf32>
    tpu.vector_store %arg8[%c5, %c0_71, %c0_72], %121 {strides = array<i32>} : memref<8x2x200xf32, #tpu.memory_space<vmem>>, vector<1x2x200xf32>,
    %c0_73 = arith.constant 0 : index
    %c0_74 = arith.constant 0 : index
    %122 = vector.load %arg9[%c0_73, %c0_74] : memref<2x256xf32, #tpu.memory_space<vmem>>, vector<2x256xf32>
    %123 = arith.truncf %122 : vector<2x256xf32> to vector<2x256xbf16>
    %cst_75 = arith.constant dense<0.000000e+00> : vector<2x256xf32>
    %124 = tpu.matmul %123, %0, %cst_75 {dimension_numbers = #tpu.dot_dimension_numbers<[1], [0], [0], [1], [0, 0, 1, 1], [], []>} : vector<2x256xbf16>, vector<256x256xbf16>, vector<2x256xf32> -> vector<2x256xf32>
    %125 = vector.broadcast %3 : vector<1x256xf32> to vector<2x256xf32>
    %126 = arith.addf %124, %125 : vector<2x256xf32>
    %127 = math.tanh %126 : vector<2x256xf32>
    %128 = arith.truncf %127 : vector<2x256xf32> to vector<2x256xbf16>
    %cst_76 = arith.constant dense<0.000000e+00> : vector<2x256xf32>
    %129 = tpu.matmul %128, %1, %cst_76 {dimension_numbers = #tpu.dot_dimension_numbers<[1], [0], [0], [1], [0, 0, 1, 1], [], []>} : vector<2x256xbf16>, vector<256x256xbf16>, vector<2x256xf32> -> vector<2x256xf32>
    %130 = vector.broadcast %4 : vector<1x256xf32> to vector<2x256xf32>
    %131 = arith.addf %129, %130 : vector<2x256xf32>
    %132 = math.tanh %131 : vector<2x256xf32>
    %133 = arith.truncf %132 : vector<2x256xf32> to vector<2x256xbf16>
    %cst_77 = arith.constant dense<0.000000e+00> : vector<2x256xf32>
    %134 = tpu.matmul %133, %2, %cst_77 {dimension_numbers = #tpu.dot_dimension_numbers<[1], [0], [0], [1], [0, 0, 1, 1], [], []>} : vector<2x256xbf16>, vector<256x256xbf16>, vector<2x256xf32> -> vector<2x256xf32>
    %135 = vector.broadcast %5 : vector<1x256xf32> to vector<2x256xf32>
    %136 = arith.addf %134, %135 : vector<2x256xf32>
    %c0_78 = arith.constant 0 : index
    %c0_79 = arith.constant 0 : index
    %137 = vector.load %arg9[%c0_78, %c0_79] : memref<2x256xf32, #tpu.memory_space<vmem>>, vector<2x256xf32>
    tpu.vector_store %arg9[%c0_78, %c0_79], %136 {strides = array<i32>} : memref<2x256xf32, #tpu.memory_space<vmem>>, vector<2x256xf32>,
    %c0_80 = arith.constant 0 : index
    %c0_81 = arith.constant 0 : index
    %138 = vector.load %arg9[%c0_80, %c0_81] : memref<2x256xf32, #tpu.memory_space<vmem>>, vector<2x256xf32>
    %139 = vector.extract_strided_slice %138 {offsets = [0, 0], sizes = [2, 200], strides = [1, 1]} : vector<2x256xf32> to vector<2x200xf32>
    %c6 = arith.constant 6 : index
    %c0_82 = arith.constant 0 : index
    %c0_83 = arith.constant 0 : index
    %140 = vector.load %arg8[%c6, %c0_82, %c0_83] : memref<8x2x200xf32, #tpu.memory_space<vmem>>, vector<1x2x200xf32>
    %141 = vector.shape_cast %140 : vector<1x2x200xf32> to vector<2x200xf32>
    %142 = vector.shape_cast %139 : vector<2x200xf32> to vector<1x2x200xf32>
    tpu.vector_store %arg8[%c6, %c0_82, %c0_83], %142 {strides = array<i32>} : memref<8x2x200xf32, #tpu.memory_space<vmem>>, vector<1x2x200xf32>,
    %c0_84 = arith.constant 0 : index
    %c0_85 = arith.constant 0 : index
    %143 = vector.load %arg9[%c0_84, %c0_85] : memref<2x256xf32, #tpu.memory_space<vmem>>, vector<2x256xf32>
    %144 = arith.truncf %143 : vector<2x256xf32> to vector<2x256xbf16>
    %cst_86 = arith.constant dense<0.000000e+00> : vector<2x256xf32>
    %145 = tpu.matmul %144, %0, %cst_86 {dimension_numbers = #tpu.dot_dimension_numbers<[1], [0], [0], [1], [0, 0, 1, 1], [], []>} : vector<2x256xbf16>, vector<256x256xbf16>, vector<2x256xf32> -> vector<2x256xf32>
    %146 = vector.broadcast %3 : vector<1x256xf32> to vector<2x256xf32>
    %147 = arith.addf %145, %146 : vector<2x256xf32>
    %148 = math.tanh %147 : vector<2x256xf32>
    %149 = arith.truncf %148 : vector<2x256xf32> to vector<2x256xbf16>
    %cst_87 = arith.constant dense<0.000000e+00> : vector<2x256xf32>
    %150 = tpu.matmul %149, %1, %cst_87 {dimension_numbers = #tpu.dot_dimension_numbers<[1], [0], [0], [1], [0, 0, 1, 1], [], []>} : vector<2x256xbf16>, vector<256x256xbf16>, vector<2x256xf32> -> vector<2x256xf32>
    %151 = vector.broadcast %4 : vector<1x256xf32> to vector<2x256xf32>
    %152 = arith.addf %150, %151 : vector<2x256xf32>
    %153 = math.tanh %152 : vector<2x256xf32>
    %154 = arith.truncf %153 : vector<2x256xf32> to vector<2x256xbf16>
    %cst_88 = arith.constant dense<0.000000e+00> : vector<2x256xf32>
    %155 = tpu.matmul %154, %2, %cst_88 {dimension_numbers = #tpu.dot_dimension_numbers<[1], [0], [0], [1], [0, 0, 1, 1], [], []>} : vector<2x256xbf16>, vector<256x256xbf16>, vector<2x256xf32> -> vector<2x256xf32>
    %156 = vector.broadcast %5 : vector<1x256xf32> to vector<2x256xf32>
    %157 = arith.addf %155, %156 : vector<2x256xf32>
    %c0_89 = arith.constant 0 : index
    %c0_90 = arith.constant 0 : index
    %158 = vector.load %arg9[%c0_89, %c0_90] : memref<2x256xf32, #tpu.memory_space<vmem>>, vector<2x256xf32>
    tpu.vector_store %arg9[%c0_89, %c0_90], %157 {strides = array<i32>} : memref<2x256xf32, #tpu.memory_space<vmem>>, vector<2x256xf32>,
    %c0_91 = arith.constant 0 : index
    %c0_92 = arith.constant 0 : index
    %159 = vector.load %arg9[%c0_91, %c0_92] : memref<2x256xf32, #tpu.memory_space<vmem>>, vector<2x256xf32>
    %160 = vector.extract_strided_slice %159 {offsets = [0, 0], sizes = [2, 200], strides = [1, 1]} : vector<2x256xf32> to vector<2x200xf32>
    %c7 = arith.constant 7 : index
    %c0_93 = arith.constant 0 : index
    %c0_94 = arith.constant 0 : index
    %161 = vector.load %arg8[%c7, %c0_93, %c0_94] : memref<8x2x200xf32, #tpu.memory_space<vmem>>, vector<1x2x200xf32>
    %162 = vector.shape_cast %161 : vector<1x2x200xf32> to vector<2x200xf32>
    %163 = vector.shape_cast %160 : vector<2x200xf32> to vector<1x2x200xf32>
    tpu.vector_store %arg8[%c7, %c0_93, %c0_94], %163 {strides = array<i32>} : memref<8x2x200xf32, #tpu.memory_space<vmem>>, vector<1x2x200xf32>,
    return
  }
  func.func @transform_0(%arg0: i32) -> (i32, i32) {
    %c0_i32 = arith.constant 0 : i32
    %c0_i32_0 = arith.constant 0 : i32
    %c0_i32_1 = arith.constant 0 : i32
    return %c0_i32, %c0_i32_0 : i32, i32
  }
  func.func @transform_1(%arg0: i32) -> (i32, i32) {
    %c0_i32 = arith.constant 0 : i32
    %c0_i32_0 = arith.constant 0 : i32
    %c0_i32_1 = arith.constant 0 : i32
    return %c0_i32, %c0_i32_0 : i32, i32
  }
  func.func @transform_2(%arg0: i32) -> (i32, i32) {
    %c0_i32 = arith.constant 0 : i32
    %c0_i32_0 = arith.constant 0 : i32
    %c0_i32_1 = arith.constant 0 : i32
    return %c0_i32, %c0_i32_0 : i32, i32
  }
  func.func @transform_3(%arg0: i32) -> (i32, i32) {
    %c0_i32 = arith.constant 0 : i32
    %c0_i32_0 = arith.constant 0 : i32
    %c0_i32_1 = arith.constant 0 : i32
    return %c0_i32, %c0_i32_0 : i32, i32
  }
  func.func @transform_4(%arg0: i32) -> (i32, i32) {
    %c0_i32 = arith.constant 0 : i32
    %c0_i32_0 = arith.constant 0 : i32
    %c0_i32_1 = arith.constant 0 : i32
    return %c0_i32, %c0_i32_0 : i32, i32
  }
  func.func @transform_5(%arg0: i32) -> (i32, i32) {
    %c0_i32 = arith.constant 0 : i32
    %c0_i32_0 = arith.constant 0 : i32
    %c0_i32_1 = arith.constant 0 : i32
    return %c0_i32, %c0_i32_0 : i32, i32
  }
  func.func @transform_6(%arg0: i32) -> (i32, i32) {
    %c0_i32 = arith.constant 0 : i32
    %c0_i32_0 = arith.constant 0 : i32
    %c0_i32_1 = arith.constant 0 : i32
    return %c0_i32, %c0_i32_0 : i32, i32
  }
  func.func @transform_7(%arg0: i32) -> (i32, i32, i32) {
    %c0_i32 = arith.constant 0 : i32
    %c0_i32_0 = arith.constant 0 : i32
    %c0_i32_1 = arith.constant 0 : i32
    return %arg0, %c0_i32, %c0_i32_0 : i32, i32, i32
  }
}

module attributes {stable_mosaic.version = 11 : i64} {
  func.func @_fused_mlp_kernel(%arg0: i32, %arg1: memref<2x256xf32, #tpu.memory_space<vmem>>, %arg2: memref<256x256xbf16, #tpu.memory_space<vmem>>, %arg3: memref<1x256xf32, #tpu.memory_space<vmem>>, %arg4: memref<256x256xbf16, #tpu.memory_space<vmem>>, %arg5: memref<1x256xf32, #tpu.memory_space<vmem>>, %arg6: memref<256x256xbf16, #tpu.memory_space<vmem>>, %arg7: memref<1x256xf32, #tpu.memory_space<vmem>>, %arg8: memref<8x2x200xf32, #tpu.memory_space<vmem>>, %arg9: memref<2x256xf32, #tpu.memory_space<vmem>>) attributes {dimension_semantics = [#tpu.dimension_semantics<arbitrary>], iteration_bounds = array<i64: 2>, scalar_prefetch = 0 : i64, scratch_operands = 1 : i64, tpu.core_type = #tpu.core_type<tc>, window_params = [{pipeline_mode = #tpu.pipeline_mode<synchronous>, transform_indices = @transform_0, window_bounds = array<i64: 2, 256>}, {pipeline_mode = #tpu.pipeline_mode<synchronous>, transform_indices = @transform_1, window_bounds = array<i64: 256, 256>}, {pipeline_mode = #tpu.pipeline_mode<synchronous>, transform_indices = @transform_2, window_bounds = array<i64: 1, 256>}, {pipeline_mode = #tpu.pipeline_mode<synchronous>, transform_indices = @transform_3, window_bounds = array<i64: 256, 256>}, {pipeline_mode = #tpu.pipeline_mode<synchronous>, transform_indices = @transform_4, window_bounds = array<i64: 1, 256>}, {pipeline_mode = #tpu.pipeline_mode<synchronous>, transform_indices = @transform_5, window_bounds = array<i64: 256, 256>}, {pipeline_mode = #tpu.pipeline_mode<synchronous>, transform_indices = @transform_6, window_bounds = array<i64: 1, 256>}, {transform_indices = @transform_7, window_bounds = array<i64: 8, 2, 200>}]} {
    %c0 = arith.constant 0 : index
    %c0_0 = arith.constant 0 : index
    %0 = vector.load %arg2[%c0, %c0_0] : memref<256x256xbf16, #tpu.memory_space<vmem>>, vector<256x256xbf16>
    %c0_1 = arith.constant 0 : index
    %c0_2 = arith.constant 0 : index
    %1 = vector.load %arg4[%c0_1, %c0_2] : memref<256x256xbf16, #tpu.memory_space<vmem>>, vector<256x256xbf16>
    %c0_3 = arith.constant 0 : index
    %c0_4 = arith.constant 0 : index
    %2 = vector.load %arg6[%c0_3, %c0_4] : memref<256x256xbf16, #tpu.memory_space<vmem>>, vector<256x256xbf16>
    %c0_5 = arith.constant 0 : index
    %c0_6 = arith.constant 0 : index
    %3 = vector.load %arg3[%c0_5, %c0_6] : memref<1x256xf32, #tpu.memory_space<vmem>>, vector<1x256xf32>
    %c0_7 = arith.constant 0 : index
    %c0_8 = arith.constant 0 : index
    %4 = vector.load %arg5[%c0_7, %c0_8] : memref<1x256xf32, #tpu.memory_space<vmem>>, vector<1x256xf32>
    %c0_9 = arith.constant 0 : index
    %c0_10 = arith.constant 0 : index
    %5 = vector.load %arg7[%c0_9, %c0_10] : memref<1x256xf32, #tpu.memory_space<vmem>>, vector<1x256xf32>
    %c0_i32 = arith.constant 0 : i32
    %6 = arith.cmpi eq, %arg0, %c0_i32 : i32
    %7 = arith.extui %6 : i1 to i32
    %c0_i32_11 = arith.constant 0 : i32
    %8 = arith.cmpi ne, %7, %c0_i32_11 : i32
    scf.if %8 {
      %c0_95 = arith.constant 0 : index
      %c0_96 = arith.constant 0 : index
      %164 = vector.load %arg1[%c0_95, %c0_96] : memref<2x256xf32, #tpu.memory_space<vmem>>, vector<2x256xf32>
      %c0_97 = arith.constant 0 : index
      %c0_98 = arith.constant 0 : index
      %165 = vector.load %arg9[%c0_97, %c0_98] : memref<2x256xf32, #tpu.memory_space<vmem>>, vector<2x256xf32>
      tpu.vector_store %arg9[%c0_97, %c0_98], %164 {strides = array<i32>} : memref<2x256xf32, #tpu.memory_space<vmem>>, vector<2x256xf32>,
    } else {
    }
    %c0_i32_12 = arith.constant 0 : i32
    %9 = arith.cmpi sgt, %arg0, %c0_i32_12 : i32
    %10 = arith.extui %9 : i1 to i32
    %c0_i32_13 = arith.constant 0 : i32
    %11 = arith.cmpi ne, %10, %c0_i32_13 : i32
    scf.if %11 {
      %c0_95 = arith.constant 0 : index
      %c0_96 = arith.constant 0 : index
      %164 = vector.load %arg9[%c0_95, %c0_96] : memref<2x256xf32, #tpu.memory_space<vmem>>, vector<2x256xf32>
      %165 = arith.truncf %164 : vector<2x256xf32> to vector<2x256xbf16>
      %cst_97 = arith.constant dense<0.000000e+00> : vector<2x256xf32>
      %166 = tpu.matmul %165, %0, %cst_97 {dimension_numbers = #tpu.dot_dimension_numbers<[1], [0], [0], [1], [0, 0, 1, 1], [], []>} : vector<2x256xbf16>, vector<256x256xbf16>, vector<2x256xf32> -> vector<2x256xf32>
      %167 = vector.broadcast %3 : vector<1x256xf32> to vector<2x256xf32>
      %168 = arith.addf %166, %167 : vector<2x256xf32>
      %169 = math.tanh %168 : vector<2x256xf32>
      %170 = arith.truncf %169 : vector<2x256xf32> to vector<2x256xbf16>
      %cst_98 = arith.constant dense<0.000000e+00> : vector<2x256xf32>
      %171 = tpu.matmul %170, %1, %cst_98 {dimension_numbers = #tpu.dot_dimension_numbers<[1], [0], [0], [1], [0, 0, 1, 1], [], []>} : vector<2x256xbf16>, vector<256x256xbf16>, vector<2x256xf32> -> vector<2x256xf32>
      %172 = vector.broadcast %4 : vector<1x256xf32> to vector<2x256xf32>
      %173 = arith.addf %171, %172 : vector<2x256xf32>
      %174 = math.tanh %173 : vector<2x256xf32>
      %175 = arith.truncf %174 : vector<2x256xf32> to vector<2x256xbf16>
      %cst_99 = arith.constant dense<0.000000e+00> : vector<2x256xf32>
      %176 = tpu.matmul %175, %2, %cst_99 {dimension_numbers = #tpu.dot_dimension_numbers<[1], [0], [0], [1], [0, 0, 1, 1], [], []>} : vector<2x256xbf16>, vector<256x256xbf16>, vector<2x256xf32> -> vector<2x256xf32>
      %177 = vector.broadcast %5 : vector<1x256xf32> to vector<2x256xf32>
      %178 = arith.addf %176, %177 : vector<2x256xf32>
      %c0_100 = arith.constant 0 : index
      %c0_101 = arith.constant 0 : index
      %179 = vector.load %arg9[%c0_100, %c0_101] : memref<2x256xf32, #tpu.memory_space<vmem>>, vector<2x256xf32>
      tpu.vector_store %arg9[%c0_100, %c0_101], %178 {strides = array<i32>} : memref<2x256xf32, #tpu.memory_space<vmem>>, vector<2x256xf32>,
    } else {
    }
    %c0_14 = arith.constant 0 : index
    %c0_15 = arith.constant 0 : index
    %12 = vector.load %arg9[%c0_14, %c0_15] : memref<2x256xf32, #tpu.memory_space<vmem>>, vector<2x256xf32>
    %13 = vector.extract_strided_slice %12 {offsets = [0, 0], sizes = [2, 200], strides = [1, 1]} : vector<2x256xf32> to vector<2x200xf32>
    %c0_16 = arith.constant 0 : index
    %c0_17 = arith.constant 0 : index
    %c0_18 = arith.constant 0 : index
    %14 = vector.load %arg8[%c0_16, %c0_17, %c0_18] : memref<8x2x200xf32, #tpu.memory_space<vmem>>, vector<1x2x200xf32>
    %15 = vector.shape_cast %14 : vector<1x2x200xf32> to vector<2x200xf32>
    %16 = vector.shape_cast %13 : vector<2x200xf32> to vector<1x2x200xf32>
    tpu.vector_store %arg8[%c0_16, %c0_17, %c0_18], %16 {strides = array<i32>} : memref<8x2x200xf32, #tpu.memory_space<vmem>>, vector<1x2x200xf32>,
    %c0_19 = arith.constant 0 : index
    %c0_20 = arith.constant 0 : index
    %17 = vector.load %arg9[%c0_19, %c0_20] : memref<2x256xf32, #tpu.memory_space<vmem>>, vector<2x256xf32>
    %18 = arith.truncf %17 : vector<2x256xf32> to vector<2x256xbf16>
    %cst = arith.constant dense<0.000000e+00> : vector<2x256xf32>
    %19 = tpu.matmul %18, %0, %cst {dimension_numbers = #tpu.dot_dimension_numbers<[1], [0], [0], [1], [0, 0, 1, 1], [], []>} : vector<2x256xbf16>, vector<256x256xbf16>, vector<2x256xf32> -> vector<2x256xf32>
    %20 = vector.broadcast %3 : vector<1x256xf32> to vector<2x256xf32>
    %21 = arith.addf %19, %20 : vector<2x256xf32>
    %22 = math.tanh %21 : vector<2x256xf32>
    %23 = arith.truncf %22 : vector<2x256xf32> to vector<2x256xbf16>
    %cst_21 = arith.constant dense<0.000000e+00> : vector<2x256xf32>
    %24 = tpu.matmul %23, %1, %cst_21 {dimension_numbers = #tpu.dot_dimension_numbers<[1], [0], [0], [1], [0, 0, 1, 1], [], []>} : vector<2x256xbf16>, vector<256x256xbf16>, vector<2x256xf32> -> vector<2x256xf32>
    %25 = vector.broadcast %4 : vector<1x256xf32> to vector<2x256xf32>
    %26 = arith.addf %24, %25 : vector<2x256xf32>
    %27 = math.tanh %26 : vector<2x256xf32>
    %28 = arith.truncf %27 : vector<2x256xf32> to vector<2x256xbf16>
    %cst_22 = arith.constant dense<0.000000e+00> : vector<2x256xf32>
    %29 = tpu.matmul %28, %2, %cst_22 {dimension_numbers = #tpu.dot_dimension_numbers<[1], [0], [0], [1], [0, 0, 1, 1], [], []>} : vector<2x256xbf16>, vector<256x256xbf16>, vector<2x256xf32> -> vector<2x256xf32>
    %30 = vector.broadcast %5 : vector<1x256xf32> to vector<2x256xf32>
    %31 = arith.addf %29, %30 : vector<2x256xf32>
    %c0_23 = arith.constant 0 : index
    %c0_24 = arith.constant 0 : index
    %32 = vector.load %arg9[%c0_23, %c0_24] : memref<2x256xf32, #tpu.memory_space<vmem>>, vector<2x256xf32>
    tpu.vector_store %arg9[%c0_23, %c0_24], %31 {strides = array<i32>} : memref<2x256xf32, #tpu.memory_space<vmem>>, vector<2x256xf32>,
    %c0_25 = arith.constant 0 : index
    %c0_26 = arith.constant 0 : index
    %33 = vector.load %arg9[%c0_25, %c0_26] : memref<2x256xf32, #tpu.memory_space<vmem>>, vector<2x256xf32>
    %34 = vector.extract_strided_slice %33 {offsets = [0, 0], sizes = [2, 200], strides = [1, 1]} : vector<2x256xf32> to vector<2x200xf32>
    %c1 = arith.constant 1 : index
    %c0_27 = arith.constant 0 : index
    %c0_28 = arith.constant 0 : index
    %35 = vector.load %arg8[%c1, %c0_27, %c0_28] : memref<8x2x200xf32, #tpu.memory_space<vmem>>, vector<1x2x200xf32>
    %36 = vector.shape_cast %35 : vector<1x2x200xf32> to vector<2x200xf32>
    %37 = vector.shape_cast %34 : vector<2x200xf32> to vector<1x2x200xf32>
    tpu.vector_store %arg8[%c1, %c0_27, %c0_28], %37 {strides = array<i32>} : memref<8x2x200xf32, #tpu.memory_space<vmem>>, vector<1x2x200xf32>,
    %c0_29 = arith.constant 0 : index
    %c0_30 = arith.constant 0 : index
    %38 = vector.load %arg9[%c0_29, %c0_30] : memref<2x256xf32, #tpu.memory_space<vmem>>, vector<2x256xf32>
    %39 = arith.truncf %38 : vector<2x256xf32> to vector<2x256xbf16>
    %cst_31 = arith.constant dense<0.000000e+00> : vector<2x256xf32>
    %40 = tpu.matmul %39, %0, %cst_31 {dimension_numbers = #tpu.dot_dimension_numbers<[1], [0], [0], [1], [0, 0, 1, 1], [], []>} : vector<2x256xbf16>, vector<256x256xbf16>, vector<2x256xf32> -> vector<2x256xf32>
    %41 = vector.broadcast %3 : vector<1x256xf32> to vector<2x256xf32>
    %42 = arith.addf %40, %41 : vector<2x256xf32>
    %43 = math.tanh %42 : vector<2x256xf32>
    %44 = arith.truncf %43 : vector<2x256xf32> to vector<2x256xbf16>
    %cst_32 = arith.constant dense<0.000000e+00> : vector<2x256xf32>
    %45 = tpu.matmul %44, %1, %cst_32 {dimension_numbers = #tpu.dot_dimension_numbers<[1], [0], [0], [1], [0, 0, 1, 1], [], []>} : vector<2x256xbf16>, vector<256x256xbf16>, vector<2x256xf32> -> vector<2x256xf32>
    %46 = vector.broadcast %4 : vector<1x256xf32> to vector<2x256xf32>
    %47 = arith.addf %45, %46 : vector<2x256xf32>
    %48 = math.tanh %47 : vector<2x256xf32>
    %49 = arith.truncf %48 : vector<2x256xf32> to vector<2x256xbf16>
    %cst_33 = arith.constant dense<0.000000e+00> : vector<2x256xf32>
    %50 = tpu.matmul %49, %2, %cst_33 {dimension_numbers = #tpu.dot_dimension_numbers<[1], [0], [0], [1], [0, 0, 1, 1], [], []>} : vector<2x256xbf16>, vector<256x256xbf16>, vector<2x256xf32> -> vector<2x256xf32>
    %51 = vector.broadcast %5 : vector<1x256xf32> to vector<2x256xf32>
    %52 = arith.addf %50, %51 : vector<2x256xf32>
    %c0_34 = arith.constant 0 : index
    %c0_35 = arith.constant 0 : index
    %53 = vector.load %arg9[%c0_34, %c0_35] : memref<2x256xf32, #tpu.memory_space<vmem>>, vector<2x256xf32>
    tpu.vector_store %arg9[%c0_34, %c0_35], %52 {strides = array<i32>} : memref<2x256xf32, #tpu.memory_space<vmem>>, vector<2x256xf32>,
    %c0_36 = arith.constant 0 : index
    %c0_37 = arith.constant 0 : index
    %54 = vector.load %arg9[%c0_36, %c0_37] : memref<2x256xf32, #tpu.memory_space<vmem>>, vector<2x256xf32>
    %55 = vector.extract_strided_slice %54 {offsets = [0, 0], sizes = [2, 200], strides = [1, 1]} : vector<2x256xf32> to vector<2x200xf32>
    %c2 = arith.constant 2 : index
    %c0_38 = arith.constant 0 : index
    %c0_39 = arith.constant 0 : index
    %56 = vector.load %arg8[%c2, %c0_38, %c0_39] : memref<8x2x200xf32, #tpu.memory_space<vmem>>, vector<1x2x200xf32>
    %57 = vector.shape_cast %56 : vector<1x2x200xf32> to vector<2x200xf32>
    %58 = vector.shape_cast %55 : vector<2x200xf32> to vector<1x2x200xf32>
    tpu.vector_store %arg8[%c2, %c0_38, %c0_39], %58 {strides = array<i32>} : memref<8x2x200xf32, #tpu.memory_space<vmem>>, vector<1x2x200xf32>,
    %c0_40 = arith.constant 0 : index
    %c0_41 = arith.constant 0 : index
    %59 = vector.load %arg9[%c0_40, %c0_41] : memref<2x256xf32, #tpu.memory_space<vmem>>, vector<2x256xf32>
    %60 = arith.truncf %59 : vector<2x256xf32> to vector<2x256xbf16>
    %cst_42 = arith.constant dense<0.000000e+00> : vector<2x256xf32>
    %61 = tpu.matmul %60, %0, %cst_42 {dimension_numbers = #tpu.dot_dimension_numbers<[1], [0], [0], [1], [0, 0, 1, 1], [], []>} : vector<2x256xbf16>, vector<256x256xbf16>, vector<2x256xf32> -> vector<2x256xf32>
    %62 = vector.broadcast %3 : vector<1x256xf32> to vector<2x256xf32>
    %63 = arith.addf %61, %62 : vector<2x256xf32>
    %64 = math.tanh %63 : vector<2x256xf32>
    %65 = arith.truncf %64 : vector<2x256xf32> to vector<2x256xbf16>
    %cst_43 = arith.constant dense<0.000000e+00> : vector<2x256xf32>
    %66 = tpu.matmul %65, %1, %cst_43 {dimension_numbers = #tpu.dot_dimension_numbers<[1], [0], [0], [1], [0, 0, 1, 1], [], []>} : vector<2x256xbf16>, vector<256x256xbf16>, vector<2x256xf32> -> vector<2x256xf32>
    %67 = vector.broadcast %4 : vector<1x256xf32> to vector<2x256xf32>
    %68 = arith.addf %66, %67 : vector<2x256xf32>
    %69 = math.tanh %68 : vector<2x256xf32>
    %70 = arith.truncf %69 : vector<2x256xf32> to vector<2x256xbf16>
    %cst_44 = arith.constant dense<0.000000e+00> : vector<2x256xf32>
    %71 = tpu.matmul %70, %2, %cst_44 {dimension_numbers = #tpu.dot_dimension_numbers<[1], [0], [0], [1], [0, 0, 1, 1], [], []>} : vector<2x256xbf16>, vector<256x256xbf16>, vector<2x256xf32> -> vector<2x256xf32>
    %72 = vector.broadcast %5 : vector<1x256xf32> to vector<2x256xf32>
    %73 = arith.addf %71, %72 : vector<2x256xf32>
    %c0_45 = arith.constant 0 : index
    %c0_46 = arith.constant 0 : index
    %74 = vector.load %arg9[%c0_45, %c0_46] : memref<2x256xf32, #tpu.memory_space<vmem>>, vector<2x256xf32>
    tpu.vector_store %arg9[%c0_45, %c0_46], %73 {strides = array<i32>} : memref<2x256xf32, #tpu.memory_space<vmem>>, vector<2x256xf32>,
    %c0_47 = arith.constant 0 : index
    %c0_48 = arith.constant 0 : index
    %75 = vector.load %arg9[%c0_47, %c0_48] : memref<2x256xf32, #tpu.memory_space<vmem>>, vector<2x256xf32>
    %76 = vector.extract_strided_slice %75 {offsets = [0, 0], sizes = [2, 200], strides = [1, 1]} : vector<2x256xf32> to vector<2x200xf32>
    %c3 = arith.constant 3 : index
    %c0_49 = arith.constant 0 : index
    %c0_50 = arith.constant 0 : index
    %77 = vector.load %arg8[%c3, %c0_49, %c0_50] : memref<8x2x200xf32, #tpu.memory_space<vmem>>, vector<1x2x200xf32>
    %78 = vector.shape_cast %77 : vector<1x2x200xf32> to vector<2x200xf32>
    %79 = vector.shape_cast %76 : vector<2x200xf32> to vector<1x2x200xf32>
    tpu.vector_store %arg8[%c3, %c0_49, %c0_50], %79 {strides = array<i32>} : memref<8x2x200xf32, #tpu.memory_space<vmem>>, vector<1x2x200xf32>,
    %c0_51 = arith.constant 0 : index
    %c0_52 = arith.constant 0 : index
    %80 = vector.load %arg9[%c0_51, %c0_52] : memref<2x256xf32, #tpu.memory_space<vmem>>, vector<2x256xf32>
    %81 = arith.truncf %80 : vector<2x256xf32> to vector<2x256xbf16>
    %cst_53 = arith.constant dense<0.000000e+00> : vector<2x256xf32>
    %82 = tpu.matmul %81, %0, %cst_53 {dimension_numbers = #tpu.dot_dimension_numbers<[1], [0], [0], [1], [0, 0, 1, 1], [], []>} : vector<2x256xbf16>, vector<256x256xbf16>, vector<2x256xf32> -> vector<2x256xf32>
    %83 = vector.broadcast %3 : vector<1x256xf32> to vector<2x256xf32>
    %84 = arith.addf %82, %83 : vector<2x256xf32>
    %85 = math.tanh %84 : vector<2x256xf32>
    %86 = arith.truncf %85 : vector<2x256xf32> to vector<2x256xbf16>
    %cst_54 = arith.constant dense<0.000000e+00> : vector<2x256xf32>
    %87 = tpu.matmul %86, %1, %cst_54 {dimension_numbers = #tpu.dot_dimension_numbers<[1], [0], [0], [1], [0, 0, 1, 1], [], []>} : vector<2x256xbf16>, vector<256x256xbf16>, vector<2x256xf32> -> vector<2x256xf32>
    %88 = vector.broadcast %4 : vector<1x256xf32> to vector<2x256xf32>
    %89 = arith.addf %87, %88 : vector<2x256xf32>
    %90 = math.tanh %89 : vector<2x256xf32>
    %91 = arith.truncf %90 : vector<2x256xf32> to vector<2x256xbf16>
    %cst_55 = arith.constant dense<0.000000e+00> : vector<2x256xf32>
    %92 = tpu.matmul %91, %2, %cst_55 {dimension_numbers = #tpu.dot_dimension_numbers<[1], [0], [0], [1], [0, 0, 1, 1], [], []>} : vector<2x256xbf16>, vector<256x256xbf16>, vector<2x256xf32> -> vector<2x256xf32>
    %93 = vector.broadcast %5 : vector<1x256xf32> to vector<2x256xf32>
    %94 = arith.addf %92, %93 : vector<2x256xf32>
    %c0_56 = arith.constant 0 : index
    %c0_57 = arith.constant 0 : index
    %95 = vector.load %arg9[%c0_56, %c0_57] : memref<2x256xf32, #tpu.memory_space<vmem>>, vector<2x256xf32>
    tpu.vector_store %arg9[%c0_56, %c0_57], %94 {strides = array<i32>} : memref<2x256xf32, #tpu.memory_space<vmem>>, vector<2x256xf32>,
    %c0_58 = arith.constant 0 : index
    %c0_59 = arith.constant 0 : index
    %96 = vector.load %arg9[%c0_58, %c0_59] : memref<2x256xf32, #tpu.memory_space<vmem>>, vector<2x256xf32>
    %97 = vector.extract_strided_slice %96 {offsets = [0, 0], sizes = [2, 200], strides = [1, 1]} : vector<2x256xf32> to vector<2x200xf32>
    %c4 = arith.constant 4 : index
    %c0_60 = arith.constant 0 : index
    %c0_61 = arith.constant 0 : index
    %98 = vector.load %arg8[%c4, %c0_60, %c0_61] : memref<8x2x200xf32, #tpu.memory_space<vmem>>, vector<1x2x200xf32>
    %99 = vector.shape_cast %98 : vector<1x2x200xf32> to vector<2x200xf32>
    %100 = vector.shape_cast %97 : vector<2x200xf32> to vector<1x2x200xf32>
    tpu.vector_store %arg8[%c4, %c0_60, %c0_61], %100 {strides = array<i32>} : memref<8x2x200xf32, #tpu.memory_space<vmem>>, vector<1x2x200xf32>,
    %c0_62 = arith.constant 0 : index
    %c0_63 = arith.constant 0 : index
    %101 = vector.load %arg9[%c0_62, %c0_63] : memref<2x256xf32, #tpu.memory_space<vmem>>, vector<2x256xf32>
    %102 = arith.truncf %101 : vector<2x256xf32> to vector<2x256xbf16>
    %cst_64 = arith.constant dense<0.000000e+00> : vector<2x256xf32>
    %103 = tpu.matmul %102, %0, %cst_64 {dimension_numbers = #tpu.dot_dimension_numbers<[1], [0], [0], [1], [0, 0, 1, 1], [], []>} : vector<2x256xbf16>, vector<256x256xbf16>, vector<2x256xf32> -> vector<2x256xf32>
    %104 = vector.broadcast %3 : vector<1x256xf32> to vector<2x256xf32>
    %105 = arith.addf %103, %104 : vector<2x256xf32>
    %106 = math.tanh %105 : vector<2x256xf32>
    %107 = arith.truncf %106 : vector<2x256xf32> to vector<2x256xbf16>
    %cst_65 = arith.constant dense<0.000000e+00> : vector<2x256xf32>
    %108 = tpu.matmul %107, %1, %cst_65 {dimension_numbers = #tpu.dot_dimension_numbers<[1], [0], [0], [1], [0, 0, 1, 1], [], []>} : vector<2x256xbf16>, vector<256x256xbf16>, vector<2x256xf32> -> vector<2x256xf32>
    %109 = vector.broadcast %4 : vector<1x256xf32> to vector<2x256xf32>
    %110 = arith.addf %108, %109 : vector<2x256xf32>
    %111 = math.tanh %110 : vector<2x256xf32>
    %112 = arith.truncf %111 : vector<2x256xf32> to vector<2x256xbf16>
    %cst_66 = arith.constant dense<0.000000e+00> : vector<2x256xf32>
    %113 = tpu.matmul %112, %2, %cst_66 {dimension_numbers = #tpu.dot_dimension_numbers<[1], [0], [0], [1], [0, 0, 1, 1], [], []>} : vector<2x256xbf16>, vector<256x256xbf16>, vector<2x256xf32> -> vector<2x256xf32>
    %114 = vector.broadcast %5 : vector<1x256xf32> to vector<2x256xf32>
    %115 = arith.addf %113, %114 : vector<2x256xf32>
    %c0_67 = arith.constant 0 : index
    %c0_68 = arith.constant 0 : index
    %116 = vector.load %arg9[%c0_67, %c0_68] : memref<2x256xf32, #tpu.memory_space<vmem>>, vector<2x256xf32>
    tpu.vector_store %arg9[%c0_67, %c0_68], %115 {strides = array<i32>} : memref<2x256xf32, #tpu.memory_space<vmem>>, vector<2x256xf32>,
    %c0_69 = arith.constant 0 : index
    %c0_70 = arith.constant 0 : index
    %117 = vector.load %arg9[%c0_69, %c0_70] : memref<2x256xf32, #tpu.memory_space<vmem>>, vector<2x256xf32>
    %118 = vector.extract_strided_slice %117 {offsets = [0, 0], sizes = [2, 200], strides = [1, 1]} : vector<2x256xf32> to vector<2x200xf32>
    %c5 = arith.constant 5 : index
    %c0_71 = arith.constant 0 : index
    %c0_72 = arith.constant 0 : index
    %119 = vector.load %arg8[%c5, %c0_71, %c0_72] : memref<8x2x200xf32, #tpu.memory_space<vmem>>, vector<1x2x200xf32>
    %120 = vector.shape_cast %119 : vector<1x2x200xf32> to vector<2x200xf32>
    %121 = vector.shape_cast %118 : vector<2x200xf32> to vector<1x2x200xf32>
    tpu.vector_store %arg8[%c5, %c0_71, %c0_72], %121 {strides = array<i32>} : memref<8x2x200xf32, #tpu.memory_space<vmem>>, vector<1x2x200xf32>,
    %c0_73 = arith.constant 0 : index
    %c0_74 = arith.constant 0 : index
    %122 = vector.load %arg9[%c0_73, %c0_74] : memref<2x256xf32, #tpu.memory_space<vmem>>, vector<2x256xf32>
    %123 = arith.truncf %122 : vector<2x256xf32> to vector<2x256xbf16>
    %cst_75 = arith.constant dense<0.000000e+00> : vector<2x256xf32>
    %124 = tpu.matmul %123, %0, %cst_75 {dimension_numbers = #tpu.dot_dimension_numbers<[1], [0], [0], [1], [0, 0, 1, 1], [], []>} : vector<2x256xbf16>, vector<256x256xbf16>, vector<2x256xf32> -> vector<2x256xf32>
    %125 = vector.broadcast %3 : vector<1x256xf32> to vector<2x256xf32>
    %126 = arith.addf %124, %125 : vector<2x256xf32>
    %127 = math.tanh %126 : vector<2x256xf32>
    %128 = arith.truncf %127 : vector<2x256xf32> to vector<2x256xbf16>
    %cst_76 = arith.constant dense<0.000000e+00> : vector<2x256xf32>
    %129 = tpu.matmul %128, %1, %cst_76 {dimension_numbers = #tpu.dot_dimension_numbers<[1], [0], [0], [1], [0, 0, 1, 1], [], []>} : vector<2x256xbf16>, vector<256x256xbf16>, vector<2x256xf32> -> vector<2x256xf32>
    %130 = vector.broadcast %4 : vector<1x256xf32> to vector<2x256xf32>
    %131 = arith.addf %129, %130 : vector<2x256xf32>
    %132 = math.tanh %131 : vector<2x256xf32>
    %133 = arith.truncf %132 : vector<2x256xf32> to vector<2x256xbf16>
    %cst_77 = arith.constant dense<0.000000e+00> : vector<2x256xf32>
    %134 = tpu.matmul %133, %2, %cst_77 {dimension_numbers = #tpu.dot_dimension_numbers<[1], [0], [0], [1], [0, 0, 1, 1], [], []>} : vector<2x256xbf16>, vector<256x256xbf16>, vector<2x256xf32> -> vector<2x256xf32>
    %135 = vector.broadcast %5 : vector<1x256xf32> to vector<2x256xf32>
    %136 = arith.addf %134, %135 : vector<2x256xf32>
    %c0_78 = arith.constant 0 : index
    %c0_79 = arith.constant 0 : index
    %137 = vector.load %arg9[%c0_78, %c0_79] : memref<2x256xf32, #tpu.memory_space<vmem>>, vector<2x256xf32>
    tpu.vector_store %arg9[%c0_78, %c0_79], %136 {strides = array<i32>} : memref<2x256xf32, #tpu.memory_space<vmem>>, vector<2x256xf32>,
    %c0_80 = arith.constant 0 : index
    %c0_81 = arith.constant 0 : index
    %138 = vector.load %arg9[%c0_80, %c0_81] : memref<2x256xf32, #tpu.memory_space<vmem>>, vector<2x256xf32>
    %139 = vector.extract_strided_slice %138 {offsets = [0, 0], sizes = [2, 200], strides = [1, 1]} : vector<2x256xf32> to vector<2x200xf32>
    %c6 = arith.constant 6 : index
    %c0_82 = arith.constant 0 : index
    %c0_83 = arith.constant 0 : index
    %140 = vector.load %arg8[%c6, %c0_82, %c0_83] : memref<8x2x200xf32, #tpu.memory_space<vmem>>, vector<1x2x200xf32>
    %141 = vector.shape_cast %140 : vector<1x2x200xf32> to vector<2x200xf32>
    %142 = vector.shape_cast %139 : vector<2x200xf32> to vector<1x2x200xf32>
    tpu.vector_store %arg8[%c6, %c0_82, %c0_83], %142 {strides = array<i32>} : memref<8x2x200xf32, #tpu.memory_space<vmem>>, vector<1x2x200xf32>,
    %c0_84 = arith.constant 0 : index
    %c0_85 = arith.constant 0 : index
    %143 = vector.load %arg9[%c0_84, %c0_85] : memref<2x256xf32, #tpu.memory_space<vmem>>, vector<2x256xf32>
    %144 = arith.truncf %143 : vector<2x256xf32> to vector<2x256xbf16>
    %cst_86 = arith.constant dense<0.000000e+00> : vector<2x256xf32>
    %145 = tpu.matmul %144, %0, %cst_86 {dimension_numbers = #tpu.dot_dimension_numbers<[1], [0], [0], [1], [0, 0, 1, 1], [], []>} : vector<2x256xbf16>, vector<256x256xbf16>, vector<2x256xf32> -> vector<2x256xf32>
    %146 = vector.broadcast %3 : vector<1x256xf32> to vector<2x256xf32>
    %147 = arith.addf %145, %146 : vector<2x256xf32>
    %148 = math.tanh %147 : vector<2x256xf32>
    %149 = arith.truncf %148 : vector<2x256xf32> to vector<2x256xbf16>
    %cst_87 = arith.constant dense<0.000000e+00> : vector<2x256xf32>
    %150 = tpu.matmul %149, %1, %cst_87 {dimension_numbers = #tpu.dot_dimension_numbers<[1], [0], [0], [1], [0, 0, 1, 1], [], []>} : vector<2x256xbf16>, vector<256x256xbf16>, vector<2x256xf32> -> vector<2x256xf32>
    %151 = vector.broadcast %4 : vector<1x256xf32> to vector<2x256xf32>
    %152 = arith.addf %150, %151 : vector<2x256xf32>
    %153 = math.tanh %152 : vector<2x256xf32>
    %154 = arith.truncf %153 : vector<2x256xf32> to vector<2x256xbf16>
    %cst_88 = arith.constant dense<0.000000e+00> : vector<2x256xf32>
    %155 = tpu.matmul %154, %2, %cst_88 {dimension_numbers = #tpu.dot_dimension_numbers<[1], [0], [0], [1], [0, 0, 1, 1], [], []>} : vector<2x256xbf16>, vector<256x256xbf16>, vector<2x256xf32> -> vector<2x256xf32>
    %156 = vector.broadcast %5 : vector<1x256xf32> to vector<2x256xf32>
    %157 = arith.addf %155, %156 : vector<2x256xf32>
    %c0_89 = arith.constant 0 : index
    %c0_90 = arith.constant 0 : index
    %158 = vector.load %arg9[%c0_89, %c0_90] : memref<2x256xf32, #tpu.memory_space<vmem>>, vector<2x256xf32>
    tpu.vector_store %arg9[%c0_89, %c0_90], %157 {strides = array<i32>} : memref<2x256xf32, #tpu.memory_space<vmem>>, vector<2x256xf32>,
    %c0_91 = arith.constant 0 : index
    %c0_92 = arith.constant 0 : index
    %159 = vector.load %arg9[%c0_91, %c0_92] : memref<2x256xf32, #tpu.memory_space<vmem>>, vector<2x256xf32>
    %160 = vector.extract_strided_slice %159 {offsets = [0, 0], sizes = [2, 200], strides = [1, 1]} : vector<2x256xf32> to vector<2x200xf32>
    %c7 = arith.constant 7 : index
    %c0_93 = arith.constant 0 : index
    %c0_94 = arith.constant 0 : index
    %161 = vector.load %arg8[%c7, %c0_93, %c0_94] : memref<8x2x200xf32, #tpu.memory_space<vmem>>, vector<1x2x200xf32>
    %162 = vector.shape_cast %161 : vector<1x2x200xf32> to vector<2x200xf32>
    %163 = vector.shape_cast %160 : vector<2x200xf32> to vector<1x2x200xf32>
    tpu.vector_store %arg8[%c7, %c0_93, %c0_94], %163 {strides = array<i32>} : memref<8x2x200xf32, #tpu.memory_space<vmem>>, vector<1x2x200xf32>,
    return
  }
  func.func @transform_0(%arg0: i32) -> (i32, i32) {
    %c0_i32 = arith.constant 0 : i32
    %c0_i32_0 = arith.constant 0 : i32
    %c0_i32_1 = arith.constant 0 : i32
    return %c0_i32, %c0_i32_0 : i32, i32
  }
  func.func @transform_1(%arg0: i32) -> (i32, i32) {
    %c0_i32 = arith.constant 0 : i32
    %c0_i32_0 = arith.constant 0 : i32
    %c0_i32_1 = arith.constant 0 : i32
    return %c0_i32, %c0_i32_0 : i32, i32
  }
  func.func @transform_2(%arg0: i32) -> (i32, i32) {
    %c0_i32 = arith.constant 0 : i32
    %c0_i32_0 = arith.constant 0 : i32
    %c0_i32_1 = arith.constant 0 : i32
    return %c0_i32, %c0_i32_0 : i32, i32
  }
  func.func @transform_3(%arg0: i32) -> (i32, i32) {
    %c0_i32 = arith.constant 0 : i32
    %c0_i32_0 = arith.constant 0 : i32
    %c0_i32_1 = arith.constant 0 : i32
    return %c0_i32, %c0_i32_0 : i32, i32
  }
  func.func @transform_4(%arg0: i32) -> (i32, i32) {
    %c0_i32 = arith.constant 0 : i32
    %c0_i32_0 = arith.constant 0 : i32
    %c0_i32_1 = arith.constant 0 : i32
    return %c0_i32, %c0_i32_0 : i32, i32
  }
  func.func @transform_5(%arg0: i32) -> (i32, i32) {
    %c0_i32 = arith.constant 0 : i32
    %c0_i32_0 = arith.constant 0 : i32
    %c0_i32_1 = arith.constant 0 : i32
    return %c0_i32, %c0_i32_0 : i32, i32
  }
  func.func @transform_6(%arg0: i32) -> (i32, i32) {
    %c0_i32 = arith.constant 0 : i32
    %c0_i32_0 = arith.constant 0 : i32
    %c0_i32_1 = arith.constant 0 : i32
    return %c0_i32, %c0_i32_0 : i32, i32
  }
  func.func @transform_7(%arg0: i32) -> (i32, i32, i32) {
    %c0_i32 = arith.constant 0 : i32
    %c0_i32_0 = arith.constant 0 : i32
    %c0_i32_1 = arith.constant 0 : i32
    return %arg0, %c0_i32, %c0_i32_0 : i32, i32, i32
  }
}

</mosaic_0001>

<llo_original>
// kernel: tpu_custom_call.1
$region0: #{tpu_custom_call.1}
  #allocation0 [shape = 'u32[]', space=smem, size = 0x4, offset = 0x4, fixed_abs, tag = 'smem constant byte address 0x4 - core index']
  #allocation1 [shape = 'u32[144,128]{1,0:T(1,128)}', space=vmem, size = 0x12000, scoped, tag = 'internal scratch']
  #allocation2 [shape = 'f32[2,256]{1,0:T(2,128)}', space=vmem, size = 0x800, scoped, tag = 'scratch operand']
  %s0 = inlined_call_operand.hbm [shape: f32[2,256], index: 0, kind: input, shape index: {}]
  %s1 = inlined_call_operand.hbm [shape: bf16[256,256], index: 1, kind: input, shape index: {}]
  %s2 = inlined_call_operand.vmem [shape: f32[1,256], index: 2, kind: input, shape index: {}]
  %s3 = inlined_call_operand.hbm [shape: bf16[256,256], index: 3, kind: input, shape index: {}]
  %s4 = inlined_call_operand.vmem [shape: f32[1,256], index: 4, kind: input, shape index: {}]
  %s5 = inlined_call_operand.hbm [shape: bf16[256,256], index: 5, kind: input, shape index: {}]
  %s6 = inlined_call_operand.vmem [shape: f32[1,256], index: 6, kind: input, shape index: {}]
  %s7 = inlined_call_operand.hbm [shape: f32[16,2,200], index: 7, kind: output, shape index: {}]
  %s8 = sld [smem:[#allocation0]]
  $region85: #{tpu_custom_call.1} parent=0
    _
  %s10 = ssub.s32 1, %s8
  %s11 = scalar_select 0, %s10, %s8
  $region1: #{tpu_custom_call.1} parent=0
    #allocation3 [shape = 'u8[2048]{0}', space=vmem, size = 0x800, scoped, tag = 'input window, operand 0, single buffered']
    #allocation4 [shape = 's32[2]{0}', space=sflag, size = 0x8, scoped, tag = 'scoped memory for tpu_custom_call.1']
    #allocation5 [shape = 's32[2]{0}', space=sflag, size = 0x8, scoped, tag = 'scoped memory for tpu_custom_call.1']
    #allocation6 [shape = 'u8[131072]{0}', space=vmem, size = 0x20000, scoped, tag = 'input window, operand 1, single buffered']
    #allocation7 [shape = 's32[1]{0}', space=sflag, size = 0x4, scoped, tag = 'scoped memory for tpu_custom_call.1']
    #allocation8 [shape = 'u8[131072]{0}', space=vmem, size = 0x20000, scoped, tag = 'input window, operand 3, single buffered']
    #allocation9 [shape = 'u8[131072]{0}', space=vmem, size = 0x20000, scoped, tag = 'input window, operand 5, single buffered']
    #allocation10 [shape = 's32[1]{0}', space=sflag, size = 0x4, scoped, tag = 'scoped memory for tpu_custom_call.1']
    #allocation11 [shape = 'u8[32768]{0}', space=vmem, size = 0x8000, scoped, tag = 'output window, operand 0']
    %12 = vsyncpa [#allocation4], 0
    %13 = vsyncpa [#allocation7], 0
    %14 = vsyncpa [#allocation10], 0
    %15 = vsyncpa [#allocation5], 0
    %s16 = scalar_lea.sflag [#allocation5], 1
    %17 = vsyncpa %s16, 0
    loop: start=0, step=1, limit=4
    $region2: #{tpu_custom_call.1} parent=1 // loop_pre_header
      _
    $region3: #{tpu_custom_call.1} parent=1 // loop_header
      %s19 = sphi 0, %s23
      %p20 = scmp.ge.s32.totalorder %s19, 4
      %s27 = sphi 0, %s27
      %s29 = sphi 0, %s27
      %s30 = sphi 0, %s29
      %s44 = sphi 0, %s30
      %s48 = sphi 0, %s48
      %s50 = sphi 0, %s48
      %s51 = sphi 0, %s50
      %s65 = sphi 0, %s51
      %s69 = sphi 0, %s69
      %s71 = sphi 0, %s69
      %s72 = sphi 0, %s71
      %s86 = sphi 0, %s72
      %s90 = sphi 0, %s90
      %s92 = sphi 0, %s90
      %s93 = sphi 0, %s92
      %s107 = sphi 0, %s93
      %s111 = sphi 0, %s111
      %s113 = sphi 0, %s111
      %s114 = sphi 0, %s113
      %s128 = sphi 0, %s114
      %s132 = sphi 0, %s132
      %s134 = sphi 0, %s132
      %s135 = sphi 0, %s134
      %s149 = sphi 0, %s135
      %s153 = sphi 0, %s153
      %s155 = sphi 0, %s153
      %s156 = sphi 0, %s155
      %s170 = sphi 0, %s156
      %s176 = sphi 0, %s178
      %s179 = sphi 0, %s176
      %s180 = sphi 0, %s179
      %s196 = sphi 0, %s180
    $region4: #{tpu_custom_call.1} parent=1 // loop_header_branch
      %22 = sbr.rel (%p20) target = $region8
    $region5: #{tpu_custom_call.1} parent=1 // loop_body
      %s24 = ssub.s32 %s19, 1
      %s25 = ssub.s32 %s19, 2
      %s26 = sadd.s32 %s19, 1
      %s28 = sadd.s32 %s27, 1
      %p31 = scmp.eq.s32.totalorder %s19, 1
      %p32 = scmp.ne.s32.totalorder %s27, %s29
      %p33 = scmp.eq.s32.totalorder %s19, 0
      %p34 = por %p32, %p33
      %p35 = scmp.ne.s32.totalorder %s27, %s29
      %p36 = scmp.eq.s32.totalorder %s24, 1
      %p37 = por %p35, %p36
      %p38 = scmp.ne.s32.totalorder %s29, %s30
      %p39 = scmp.eq.s32.totalorder %s24, 0
      %p40 = por %p38, %p39
      %p41 = scmp.ne.s32.totalorder %s29, %s30
      %p42 = scmp.eq.s32.totalorder %s25, 1
      %p43 = por %p41, %p42
      %p45 = scmp.ne.s32.totalorder %s30, %s44
      %p46 = scmp.eq.s32.totalorder %s25, 0
      %p47 = por %p45, %p46
      %s49 = sadd.s32 %s48, 1
      %p52 = scmp.eq.s32.totalorder %s19, 1
      %p53 = scmp.ne.s32.totalorder %s48, %s50
      %p54 = scmp.eq.s32.totalorder %s19, 0
      %p55 = por %p53, %p54
      %p56 = scmp.ne.s32.totalorder %s48, %s50
      %p57 = scmp.eq.s32.totalorder %s24, 1
      %p58 = por %p56, %p57
      %p59 = scmp.ne.s32.totalorder %s50, %s51
      %p60 = scmp.eq.s32.totalorder %s24, 0
      %p61 = por %p59, %p60
      %p62 = scmp.ne.s32.totalorder %s50, %s51
      %p63 = scmp.eq.s32.totalorder %s25, 1
      %p64 = por %p62, %p63
      %p66 = scmp.ne.s32.totalorder %s51, %s65
      %p67 = scmp.eq.s32.totalorder %s25, 0
      %p68 = por %p66, %p67
      %s70 = sadd.s32 %s69, 1
      %p73 = scmp.eq.s32.totalorder %s19, 1
      %p74 = scmp.ne.s32.totalorder %s69, %s71
      %p75 = scmp.eq.s32.totalorder %s19, 0
      %p76 = por %p74, %p75
      %p77 = scmp.ne.s32.totalorder %s69, %s71
      %p78 = scmp.eq.s32.totalorder %s24, 1
      %p79 = por %p77, %p78
      %p80 = scmp.ne.s32.totalorder %s71, %s72
      %p81 = scmp.eq.s32.totalorder %s24, 0
      %p82 = por %p80, %p81
      %p83 = scmp.ne.s32.totalorder %s71, %s72
      %p84 = scmp.eq.s32.totalorder %s25, 1
      %p85 = por %p83, %p84
      %p87 = scmp.ne.s32.totalorder %s72, %s86
      %p88 = scmp.eq.s32.totalorder %s25, 0
      %p89 = por %p87, %p88
      %s91 = sadd.s32 %s90, 1
      %p94 = scmp.eq.s32.totalorder %s19, 1
      %p95 = scmp.ne.s32.totalorder %s90, %s92
      %p96 = scmp.eq.s32.totalorder %s19, 0
      %p97 = por %p95, %p96
      %p98 = scmp.ne.s32.totalorder %s90, %s92
      %p99 = scmp.eq.s32.totalorder %s24, 1
      %p100 = por %p98, %p99
      %p101 = scmp.ne.s32.totalorder %s92, %s93
      %p102 = scmp.eq.s32.totalorder %s24, 0
      %p103 = por %p101, %p102
      %p104 = scmp.ne.s32.totalorder %s92, %s93
      %p105 = scmp.eq.s32.totalorder %s25, 1
      %p106 = por %p104, %p105
      %p108 = scmp.ne.s32.totalorder %s93, %s107
      %p109 = scmp.eq.s32.totalorder %s25, 0
      %p110 = por %p108, %p109
      %s112 = sadd.s32 %s111, 1
      %p115 = scmp.eq.s32.totalorder %s19, 1
      %p116 = scmp.ne.s32.totalorder %s111, %s113
      %p117 = scmp.eq.s32.totalorder %s19, 0
      %p118 = por %p116, %p117
      %p119 = scmp.ne.s32.totalorder %s111, %s113
      %p120 = scmp.eq.s32.totalorder %s24, 1
      %p121 = por %p119, %p120
      %p122 = scmp.ne.s32.totalorder %s113, %s114
      %p123 = scmp.eq.s32.totalorder %s24, 0
      %p124 = por %p122, %p123
      %p125 = scmp.ne.s32.totalorder %s113, %s114
      %p126 = scmp.eq.s32.totalorder %s25, 1
      %p127 = por %p125, %p126
      %p129 = scmp.ne.s32.totalorder %s114, %s128
      %p130 = scmp.eq.s32.totalorder %s25, 0
      %p131 = por %p129, %p130
      %s133 = sadd.s32 %s132, 1
      %p136 = scmp.eq.s32.totalorder %s19, 1
      %p137 = scmp.ne.s32.totalorder %s132, %s134
      %p138 = scmp.eq.s32.totalorder %s19, 0
      %p139 = por %p137, %p138
      %p140 = scmp.ne.s32.totalorder %s132, %s134
      %p141 = scmp.eq.s32.totalorder %s24, 1
      %p142 = por %p140, %p141
      %p143 = scmp.ne.s32.totalorder %s134, %s135
      %p144 = scmp.eq.s32.totalorder %s24, 0
      %p145 = por %p143, %p144
      %p146 = scmp.ne.s32.totalorder %s134, %s135
      %p147 = scmp.eq.s32.totalorder %s25, 1
      %p148 = por %p146, %p147
      %p150 = scmp.ne.s32.totalorder %s135, %s149
      %p151 = scmp.eq.s32.totalorder %s25, 0
      %p152 = por %p150, %p151
      %s154 = sadd.s32 %s153, 1
      %p157 = scmp.eq.s32.totalorder %s19, 1
      %p158 = scmp.ne.s32.totalorder %s153, %s155
      %p159 = scmp.eq.s32.totalorder %s19, 0
      %p160 = por %p158, %p159
      %p161 = scmp.ne.s32.totalorder %s153, %s155
      %p162 = scmp.eq.s32.totalorder %s24, 1
      %p163 = por %p161, %p162
      %p164 = scmp.ne.s32.totalorder %s155, %s156
      %p165 = scmp.eq.s32.totalorder %s24, 0
      %p166 = por %p164, %p165
      %p167 = scmp.ne.s32.totalorder %s155, %s156
      %p168 = scmp.eq.s32.totalorder %s25, 1
      %p169 = por %p167, %p168
      %p171 = scmp.ne.s32.totalorder %s156, %s170
      %p172 = scmp.eq.s32.totalorder %s25, 0
      %p173 = por %p171, %p172
      %s174 = ssub.s32 %s19, %s26
      %p175 = scmp.eq.s32.totalorder %s174, 0
      %s177 = sadd.s32 %s176, 1
      %s178 = scalar_select %p175, %s176, %s177
      %p181 = pneg %p175
      %p182 = scmp.eq.s32.totalorder %s19, 1
      %p183 = por %p181, %p182
      %p184 = scmp.ne.s32.totalorder %s176, %s179
      %p185 = scmp.eq.s32.totalorder %s19, 0
      %p186 = por %p184, %p185
      %p187 = scmp.ne.s32.totalorder %s176, %s179
      %p188 = scmp.eq.s32.totalorder %s24, 1
      %p189 = por %p187, %p188
      %p190 = scmp.ne.s32.totalorder %s179, %s180
      %p191 = scmp.eq.s32.totalorder %s24, 0
      %p192 = por %p190, %p191
      %p193 = scmp.ne.s32.totalorder %s179, %s180
      %p194 = scmp.eq.s32.totalorder %s25, 1
      %p195 = por %p193, %p194
      %p197 = scmp.ne.s32.totalorder %s180, %s196
      %p198 = scmp.eq.s32.totalorder %s25, 0
      %p199 = por %p197, %p198
      %p200 = scmp.le.s32.totalorder 1, %s19
      %p201 = scmp.lt.s32.totalorder %s19, 3
      %p202 = pnand %p200, %p201
      %p203 = pneg %p202
      // Predicated region
      $region9: #{tpu_custom_call.1} parent=5 // pred_check
        _
      $region10: #{tpu_custom_call.1} parent=5 // pred_check_branch
        %205 = sbr.rel (%p202) target = $region12
      $region11: #{tpu_custom_call.1} parent=5 // pred_region
        %s206 = ssub.s32 %s19, 1
        // Predicated region
        $region13: #{tpu_custom_call.1} parent=11 // pred_check
          %p207 = pneg %p40
        $region14: #{tpu_custom_call.1} parent=11 // pred_check_branch
          %209 = sbr.rel (%p207) target = $region16
        $region15: #{tpu_custom_call.1} parent=11 // pred_region
          %s211 = ssub.s32 64, 64
          %212 = vsyncadd [#allocation4], %s211
          %s214 = sshll.u32 [#allocation3], 4
          %s215 = int_to_ptr.vmem [resolvable:$true] %s214
          %217 = dma.hbm_to_vmem [thread:$0]  %s0, 64, %s215, [#allocation4]
        $region16: #{tpu_custom_call.1} parent=11 // pred_fallthru
          _
        // Predicated region
        $region17: #{tpu_custom_call.1} parent=11 // pred_check
          %p218 = pneg %p61
        $region18: #{tpu_custom_call.1} parent=11 // pred_check_branch
          %220 = sbr.rel (%p218) target = $region20
        $region19: #{tpu_custom_call.1} parent=11 // pred_region
          %s222 = ssub.s32 4096, 4096
          %223 = vsyncadd [#allocation7], %s222
          %s224 = sshll.u32 [#allocation6], 4
          %s225 = int_to_ptr.vmem [resolvable:$true] %s224
          %230 = dma.hbm_to_vmem [thread:$0]  %s1, 4096, %s225, [#allocation7], 128, 128, 8
        $region20: #{tpu_custom_call.1} parent=11 // pred_fallthru
          _
        // Predicated region
        $region21: #{tpu_custom_call.1} parent=11 // pred_check
          %p231 = pneg %p82
        $region22: #{tpu_custom_call.1} parent=11 // pred_check_branch
          %233 = sbr.rel (%p231) target = $region24
        $region23: #{tpu_custom_call.1} parent=11 // pred_region
          _
        $region24: #{tpu_custom_call.1} parent=11 // pred_fallthru
          _
        // Predicated region
        $region25: #{tpu_custom_call.1} parent=11 // pred_check
          %p234 = pneg %p103
        $region26: #{tpu_custom_call.1} parent=11 // pred_check_branch
          %236 = sbr.rel (%p234) target = $region28
        $region27: #{tpu_custom_call.1} parent=11 // pred_region
          %s238 = ssub.s32 4096, 4096
          %239 = vsyncadd [#allocation7], %s238
          %s240 = sshll.u32 [#allocation8], 4
          %s241 = int_to_ptr.vmem [resolvable:$true] %s240
          %246 = dma.hbm_to_vmem [thread:$0]  %s3, 4096, %s241, [#allocation7], 128, 128, 8
        $region28: #{tpu_custom_call.1} parent=11 // pred_fallthru
          _
        // Predicated region
        $region29: #{tpu_custom_call.1} parent=11 // pred_check
          %p247 = pneg %p124
        $region30: #{tpu_custom_call.1} parent=11 // pred_check_branch
          %249 = sbr.rel (%p247) target = $region32
        $region31: #{tpu_custom_call.1} parent=11 // pred_region
          _
        $region32: #{tpu_custom_call.1} parent=11 // pred_fallthru
          _
        // Predicated region
        $region33: #{tpu_custom_call.1} parent=11 // pred_check
          %p250 = pneg %p145
        $region34: #{tpu_custom_call.1} parent=11 // pred_check_branch
          %252 = sbr.rel (%p250) target = $region36
        $region35: #{tpu_custom_call.1} parent=11 // pred_region
          %s254 = ssub.s32 4096, 4096
          %255 = vsyncadd [#allocation10], %s254
          %s256 = sshll.u32 [#allocation9], 4
          %s257 = int_to_ptr.vmem [resolvable:$true] %s256
          %262 = dma.hbm_to_vmem [thread:$0]  %s5, 4096, %s257, [#allocation10], 128, 128, 8
        $region36: #{tpu_custom_call.1} parent=11 // pred_fallthru
          _
        // Predicated region
        $region37: #{tpu_custom_call.1} parent=11 // pred_check
          %p263 = pneg %p166
        $region38: #{tpu_custom_call.1} parent=11 // pred_check_branch
          %265 = sbr.rel (%p263) target = $region40
        $region39: #{tpu_custom_call.1} parent=11 // pred_region
          _
        $region40: #{tpu_custom_call.1} parent=11 // pred_fallthru
          _
      $region12: #{tpu_custom_call.1} parent=5 // pred_fallthru
        _
      %p266 = scmp.lt.s32.totalorder %s19, 2
      // Predicated region
      $region41: #{tpu_custom_call.1} parent=5 // pred_check
        %p267 = pneg %p266
      $region42: #{tpu_custom_call.1} parent=5 // pred_check_branch
        %269 = sbr.rel (%p267) target = $region44
      $region43: #{tpu_custom_call.1} parent=5 // pred_region
        _
      $region44: #{tpu_custom_call.1} parent=5 // pred_fallthru
        _
      %p270 = scmp.le.s32.totalorder 1, %s19
      %p271 = scmp.lt.s32.totalorder %s19, 3
      %p272 = pnand %p270, %p271
      %p273 = pneg %p272
      // Predicated region
      $region45: #{tpu_custom_call.1} parent=5 // pred_check
        _
      $region46: #{tpu_custom_call.1} parent=5 // pred_check_branch
        %275 = sbr.rel (%p272) target = $region48
      $region47: #{tpu_custom_call.1} parent=5 // pred_region
        %s276 = ssub.s32 %s19, 1
        // Predicated region
        $region49: #{tpu_custom_call.1} parent=47 // pred_check
          %p277 = pneg %p40
        $region50: #{tpu_custom_call.1} parent=47 // pred_check_branch
          %279 = sbr.rel (%p277) target = $region52
        $region51: #{tpu_custom_call.1} parent=47 // pred_region
          %280 = dma.done [#allocation4], 64
        $region52: #{tpu_custom_call.1} parent=47 // pred_fallthru
          _
        // Predicated region
        $region53: #{tpu_custom_call.1} parent=47 // pred_check
          %p281 = pneg %p61
        $region54: #{tpu_custom_call.1} parent=47 // pred_check_branch
          %283 = sbr.rel (%p281) target = $region56
        $region55: #{tpu_custom_call.1} parent=47 // pred_region
          %284 = dma.done [#allocation7], 4096
        $region56: #{tpu_custom_call.1} parent=47 // pred_fallthru
          _
        // Predicated region
        $region57: #{tpu_custom_call.1} parent=47 // pred_check
          %p285 = pneg %p103
        $region58: #{tpu_custom_call.1} parent=47 // pred_check_branch
          %287 = sbr.rel (%p285) target = $region60
        $region59: #{tpu_custom_call.1} parent=47 // pred_region
          %288 = dma.done [#allocation7], 4096
        $region60: #{tpu_custom_call.1} parent=47 // pred_fallthru
          _
        // Predicated region
        $region61: #{tpu_custom_call.1} parent=47 // pred_check
          %p289 = pneg %p145
        $region62: #{tpu_custom_call.1} parent=47 // pred_check_branch
          %291 = sbr.rel (%p289) target = $region64
        $region63: #{tpu_custom_call.1} parent=47 // pred_region
          %292 = dma.done [#allocation10], 4096
        $region64: #{tpu_custom_call.1} parent=47 // pred_fallthru
          _
        %p293 = pneg %p40
        %p294 = pneg %p37
        %p295 = pneg %p61
        %p296 = pneg %p58
        %p297 = pneg %p82
        %p298 = pneg %p79
        %p299 = pneg %p103
        %p300 = pneg %p100
        %p301 = pneg %p124
        %p302 = pneg %p121
        %p303 = pneg %p145
        %p304 = pneg %p142
        %p305 = pneg %p166
        %p306 = pneg %p163
        %p307 = pneg %p192
        %p308 = pneg %p189
        %s309 = sand.u32 %s179, 1
        %s310 = scalar_lea.sflag [#allocation5], %s309
        %s311 = sand.u32 %s179, 1
        %s312 = smul.addr %s311, 32
        %s313 = scalar_lea.vmem [#allocation11], %s312
        %s314 = smul.u32 8, %s24
        %v315 = vld [vmem:[#allocation6] sm:$0xff]
        %v316 = vld [vmem:[#allocation6 + $0x8] sm:$0xff]
        %v317 = vld [vmem:[#allocation6 + $0x10] sm:$0xff]
        %v318 = vld [vmem:[#allocation6 + $0x18] sm:$0xff]
        %v319 = vld [vmem:[#allocation6 + $0x20] sm:$0xff]
        %v320 = vld [vmem:[#allocation6 + $0x28] sm:$0xff]
        %v321 = vld [vmem:[#allocation6 + $0x30] sm:$0xff]
        %v322 = vld [vmem:[#allocation6 + $0x38] sm:$0xff]
        %v323 = vld [vmem:[#allocation6 + $0x40] sm:$0xff]
        %v324 = vld [vmem:[#allocation6 + $0x48] sm:$0xff]
        %v325 = vld [vmem:[#allocation6 + $0x50] sm:$0xff]
        %v326 = vld [vmem:[#allocation6 + $0x58] sm:$0xff]
        %v327 = vld [vmem:[#allocation6 + $0x60] sm:$0xff]
        %v328 = vld [vmem:[#allocation6 + $0x68] sm:$0xff]
        %v329 = vld [vmem:[#allocation6 + $0x70] sm:$0xff]
        %v330 = vld [vmem:[#allocation6 + $0x78] sm:$0xff]
        %v331 = vld [vmem:[#allocation6 + $0x80] sm:$0xff]
        %v332 = vld [vmem:[#allocation6 + $0x88] sm:$0xff]
        %v333 = vld [vmem:[#allocation6 + $0x90] sm:$0xff]
        %v334 = vld [vmem:[#allocation6 + $0x98] sm:$0xff]
        %v335 = vld [vmem:[#allocation6 + $0xa0] sm:$0xff]
        %v336 = vld [vmem:[#allocation6 + $0xa8] sm:$0xff]
        %v337 = vld [vmem:[#allocation6 + $0xb0] sm:$0xff]
        %v338 = vld [vmem:[#allocation6 + $0xb8] sm:$0xff]
        %v339 = vld [vmem:[#allocation6 + $0xc0] sm:$0xff]
        %v340 = vld [vmem:[#allocation6 + $0xc8] sm:$0xff]
        %v341 = vld [vmem:[#allocation6 + $0xd0] sm:$0xff]
        %v342 = vld [vmem:[#allocation6 + $0xd8] sm:$0xff]
        %v343 = vld [vmem:[#allocation6 + $0xe0] sm:$0xff]
        %v344 = vld [vmem:[#allocation6 + $0xe8] sm:$0xff]
        %v345 = vld [vmem:[#allocation6 + $0xf0] sm:$0xff]
        %v346 = vld [vmem:[#allocation6 + $0xf8] sm:$0xff]
        %v347 = vld [vmem:[#allocation8] sm:$0xff]
        %v348 = vld [vmem:[#allocation8 + $0x8] sm:$0xff]
        %v349 = vld [vmem:[#allocation8 + $0x10] sm:$0xff]
        %v350 = vld [vmem:[#allocation8 + $0x18] sm:$0xff]
        %v351 = vld [vmem:[#allocation8 + $0x20] sm:$0xff]
        %v352 = vld [vmem:[#allocation8 + $0x28] sm:$0xff]
        %v353 = vld [vmem:[#allocation8 + $0x30] sm:$0xff]
        %v354 = vld [vmem:[#allocation8 + $0x38] sm:$0xff]
        %v355 = vld [vmem:[#allocation8 + $0x40] sm:$0xff]
        %v356 = vld [vmem:[#allocation8 + $0x48] sm:$0xff]
        %v357 = vld [vmem:[#allocation8 + $0x50] sm:$0xff]
        %v358 = vld [vmem:[#allocation8 + $0x58] sm:$0xff]
        %v359 = vld [vmem:[#allocation8 + $0x60] sm:$0xff]
        %v360 = vld [vmem:[#allocation8 + $0x68] sm:$0xff]
        %v361 = vld [vmem:[#allocation8 + $0x70] sm:$0xff]
        %v362 = vld [vmem:[#allocation8 + $0x78] sm:$0xff]
        %v363 = vld [vmem:[#allocation8 + $0x80] sm:$0xff]
        %v364 = vld [vmem:[#allocation8 + $0x88] sm:$0xff]
        %v365 = vld [vmem:[#allocation8 + $0x90] sm:$0xff]
        %v366 = vld [vmem:[#allocation8 + $0x98] sm:$0xff]
        %v367 = vld [vmem:[#allocation8 + $0xa0] sm:$0xff]
        %v368 = vld [vmem:[#allocation8 + $0xa8] sm:$0xff]
        %v369 = vld [vmem:[#allocation8 + $0xb0] sm:$0xff]
        %v370 = vld [vmem:[#allocation8 + $0xb8] sm:$0xff]
        %v371 = vld [vmem:[#allocation8 + $0xc0] sm:$0xff]
        %v372 = vld [vmem:[#allocation8 + $0xc8] sm:$0xff]
        %v373 = vld [vmem:[#allocation8 + $0xd0] sm:$0xff]
        %v374 = vld [vmem:[#allocation8 + $0xd8] sm:$0xff]
        %v375 = vld [vmem:[#allocation8 + $0xe0] sm:$0xff]
        %v376 = vld [vmem:[#allocation8 + $0xe8] sm:$0xff]
        %v377 = vld [vmem:[#allocation8 + $0xf0] sm:$0xff]
        %v378 = vld [vmem:[#allocation8 + $0xf8] sm:$0xff]
        %v379 = vld [vmem:[#allocation9] sm:$0xff]
        %v380 = vld [vmem:[#allocation9 + $0x8] sm:$0xff]
        %v381 = vld [vmem:[#allocation9 + $0x10] sm:$0xff]
        %v382 = vld [vmem:[#allocation9 + $0x18] sm:$0xff]
        %v383 = vld [vmem:[#allocation9 + $0x20] sm:$0xff]
        %v384 = vld [vmem:[#allocation9 + $0x28] sm:$0xff]
        %v385 = vld [vmem:[#allocation9 + $0x30] sm:$0xff]
        %v386 = vld [vmem:[#allocation9 + $0x38] sm:$0xff]
        %v387 = vld [vmem:[#allocation9 + $0x40] sm:$0xff]
        %v388 = vld [vmem:[#allocation9 + $0x48] sm:$0xff]
        %v389 = vld [vmem:[#allocation9 + $0x50] sm:$0xff]
        %v390 = vld [vmem:[#allocation9 + $0x58] sm:$0xff]
        %v391 = vld [vmem:[#allocation9 + $0x60] sm:$0xff]
        %v392 = vld [vmem:[#allocation9 + $0x68] sm:$0xff]
        %v393 = vld [vmem:[#allocation9 + $0x70] sm:$0xff]
        %v394 = vld [vmem:[#allocation9 + $0x78] sm:$0xff]
        %v395 = vld [vmem:[#allocation9 + $0x80] sm:$0xff]
        %v396 = vld [vmem:[#allocation9 + $0x88] sm:$0xff]
        %v397 = vld [vmem:[#allocation9 + $0x90] sm:$0xff]
        %v398 = vld [vmem:[#allocation9 + $0x98] sm:$0xff]
        %v399 = vld [vmem:[#allocation9 + $0xa0] sm:$0xff]
        %v400 = vld [vmem:[#allocation9 + $0xa8] sm:$0xff]
        %v401 = vld [vmem:[#allocation9 + $0xb0] sm:$0xff]
        %v402 = vld [vmem:[#allocation9 + $0xb8] sm:$0xff]
        %v403 = vld [vmem:[#allocation9 + $0xc0] sm:$0xff]
        %v404 = vld [vmem:[#allocation9 + $0xc8] sm:$0xff]
        %v405 = vld [vmem:[#allocation9 + $0xd0] sm:$0xff]
        %v406 = vld [vmem:[#allocation9 + $0xd8] sm:$0xff]
        %v407 = vld [vmem:[#allocation9 + $0xe0] sm:$0xff]
        %v408 = vld [vmem:[#allocation9 + $0xe8] sm:$0xff]
        %v409 = vld [vmem:[#allocation9 + $0xf0] sm:$0xff]
        %v410 = vld [vmem:[#allocation9 + $0xf8] sm:$0xff]
        %v411 = vld [vmem:[%s2] sm:$0x3]
        %v412 = vld [vmem:[%s4] sm:$0x3]
        %v413 = vld [vmem:[%s6] sm:$0x3]
        %p414 = scmp.eq.s32.totalorder %s24, 0
        // Predicated region
        $region65: #{tpu_custom_call.1} parent=47 // pred_check
          %p415 = pneg %p414
        $region66: #{tpu_custom_call.1} parent=47 // pred_check_branch
          %417 = sbr.rel (%p415) target = $region68
        $region67: #{tpu_custom_call.1} parent=47 // pred_region
          %v418 = vld [vmem:[#allocation3] sm:$0xf]
          %419 = vst [vmem:[#allocation2] sm:$0xf] %v418
        $region68: #{tpu_custom_call.1} parent=47 // pred_fallthru
          _
        %p420 = scmp.gt.s32.totalorder %s24, 0
        // Predicated region
        $region69: #{tpu_custom_call.1} parent=47 // pred_check
          %p421 = pneg %p420
        $region70: #{tpu_custom_call.1} parent=47 // pred_check_branch
          %423 = sbr.rel (%p421) target = $region72
        $region71: #{tpu_custom_call.1} parent=47 // pred_region
          %v424 = vld [vmem:[#allocation2] sm:$0xf]
          %v427 = vunpack.c.l.s4 1983009808
          %v428 = vunpack.c.0.s8 %v427
          %v429 = vlaneseq
          %v430 = vshrl.u32 %v429, 7
          %v431 = vsub.s32 %v428, %v430
          %v432 = vrot.slane %v424, %v431
          %v433 = vcombine.high %v432, %v432
          %v436 = vpack.c.bf16 %v432, %v432
          %v437 = vpack.c.bf16 %v433, %v433
          %v439 = vlaneseq
          %v440 = vshrl.u32 %v439, 7
          %v441 = vsub.s32 0, %v440
          %v442 = vrot.slane %v411, %v441
          %v443 = vlaneseq
          %v444 = vshrl.u32 %v443, 7
          %v445 = vsub.s32 1, %v444
          %v446 = vrot.slane %v411, %v445
          %v481 = vunpack.c.l.b16 %v315
          %v482 = vunpack.c.h.b16 %v315
          %v483 = vunpack.c.l.b16 %v316
          %v484 = vunpack.c.h.b16 %v316
          %v485 = vunpack.c.l.b16 %v317
          %v486 = vunpack.c.h.b16 %v317
          %v487 = vunpack.c.l.b16 %v318
          %v488 = vunpack.c.h.b16 %v318
          %v489 = vunpack.c.l.b16 %v319
          %v490 = vunpack.c.h.b16 %v319
          %v491 = vunpack.c.l.b16 %v320
          %v492 = vunpack.c.h.b16 %v320
          %v493 = vunpack.c.l.b16 %v321
          %v494 = vunpack.c.h.b16 %v321
          %v495 = vunpack.c.l.b16 %v322
          %v496 = vunpack.c.h.b16 %v322
          %v497 = vunpack.c.l.b16 %v323
          %v498 = vunpack.c.h.b16 %v323
          %v499 = vunpack.c.l.b16 %v324
          %v500 = vunpack.c.h.b16 %v324
          %v501 = vunpack.c.l.b16 %v325
          %v502 = vunpack.c.h.b16 %v325
          %v503 = vunpack.c.l.b16 %v326
          %v504 = vunpack.c.h.b16 %v326
          %v505 = vunpack.c.l.b16 %v327
          %v506 = vunpack.c.h.b16 %v327
          %v507 = vunpack.c.l.b16 %v328
          %v508 = vunpack.c.h.b16 %v328
          %v509 = vunpack.c.l.b16 %v329
          %v510 = vunpack.c.h.b16 %v329
          %v511 = vunpack.c.l.b16 %v330
          %v512 = vunpack.c.h.b16 %v330
          %v513 = vunpack.c.l.b16 %v331
          %v514 = vunpack.c.h.b16 %v331
          %v515 = vunpack.c.l.b16 %v332
          %v516 = vunpack.c.h.b16 %v332
          %v517 = vunpack.c.l.b16 %v333
          %v518 = vunpack.c.h.b16 %v333
          %v519 = vunpack.c.l.b16 %v334
          %v520 = vunpack.c.h.b16 %v334
          %v521 = vunpack.c.l.b16 %v335
          %v522 = vunpack.c.h.b16 %v335
          %v523 = vunpack.c.l.b16 %v336
          %v524 = vunpack.c.h.b16 %v336
          %v525 = vunpack.c.l.b16 %v337
          %v526 = vunpack.c.h.b16 %v337
          %v527 = vunpack.c.l.b16 %v338
          %v528 = vunpack.c.h.b16 %v338
          %v529 = vunpack.c.l.b16 %v339
          %v530 = vunpack.c.h.b16 %v339
          %v531 = vunpack.c.l.b16 %v340
          %v532 = vunpack.c.h.b16 %v340
          %v533 = vunpack.c.l.b16 %v341
          %v534 = vunpack.c.h.b16 %v341
          %v535 = vunpack.c.l.b16 %v342
          %v536 = vunpack.c.h.b16 %v342
          %v537 = vunpack.c.l.b16 %v343
          %v538 = vunpack.c.h.b16 %v343
          %v539 = vunpack.c.l.b16 %v344
          %v540 = vunpack.c.h.b16 %v344
          %v541 = vunpack.c.l.b16 %v345
          %v542 = vunpack.c.h.b16 %v345
          %v543 = vunpack.c.l.b16 %v346
          %v544 = vunpack.c.h.b16 %v346
          %v545 = vpack.c.b16 %v483, %v481
          %v546 = vpack.c.b16 %v484, %v482
          %v547 = vpack.c.b16 %v487, %v485
          %v548 = vpack.c.b16 %v488, %v486
          %v549 = vpack.c.b16 %v491, %v489
          %v550 = vpack.c.b16 %v492, %v490
          %v551 = vpack.c.b16 %v495, %v493
          %v552 = vpack.c.b16 %v496, %v494
          %v553 = vpack.c.b16 %v499, %v497
          %v554 = vpack.c.b16 %v500, %v498
          %v555 = vpack.c.b16 %v503, %v501
          %v556 = vpack.c.b16 %v504, %v502
          %v557 = vpack.c.b16 %v507, %v505
          %v558 = vpack.c.b16 %v508, %v506
          %v559 = vpack.c.b16 %v511, %v509
          %v560 = vpack.c.b16 %v512, %v510
          %v561 = vpack.c.b16 %v515, %v513
          %v562 = vpack.c.b16 %v516, %v514
          %v563 = vpack.c.b16 %v519, %v517
          %v564 = vpack.c.b16 %v520, %v518
          %v565 = vpack.c.b16 %v523, %v521
          %v566 = vpack.c.b16 %v524, %v522
          %v567 = vpack.c.b16 %v527, %v525
          %v568 = vpack.c.b16 %v528, %v526
          %v569 = vpack.c.b16 %v531, %v529
          %v570 = vpack.c.b16 %v532, %v530
          %v571 = vpack.c.b16 %v535, %v533
          %v572 = vpack.c.b16 %v536, %v534
          %v573 = vpack.c.b16 %v539, %v537
          %v574 = vpack.c.b16 %v540, %v538
          %v575 = vpack.c.b16 %v543, %v541
          %v576 = vpack.c.b16 %v544, %v542
          %609 = vmatprep.subr.bf16.mxu0 %v546
          %610 = vmatpush1.bf16.msra.mxu0 %v545
          %611 = vmatprep.subr.bf16.mxu0 %v548
          %612 = vmatpush1.bf16.msra.mxu0 %v547
          %613 = vmatprep.subr.bf16.mxu0 %v550
          %614 = vmatpush1.bf16.msra.mxu0 %v549
          %615 = vmatprep.subr.bf16.mxu0 %v552
          %616 = vmatpush1.bf16.msra.mxu0 %v551
          %617 = vmatprep.subr.bf16.mxu0 %v554
          %618 = vmatpush1.bf16.msra.mxu0 %v553
          %619 = vmatprep.subr.bf16.mxu0 %v556
          %620 = vmatpush1.bf16.msra.mxu0 %v555
          %621 = vmatprep.subr.bf16.mxu0 %v558
          %622 = vmatpush1.bf16.msra.mxu0 %v557
          %623 = vmatprep.subr.bf16.mxu0 %v560
          %624 = vmatpush1.bf16.msra.mxu0 %v559
          %625 = vmatprep.subr.bf16.mxu0 %v562
          %626 = vmatpush1.bf16.msra.mxu0 %v561
          %627 = vmatprep.subr.bf16.mxu0 %v564
          %628 = vmatpush1.bf16.msra.mxu0 %v563
          %629 = vmatprep.subr.bf16.mxu0 %v566
          %630 = vmatpush1.bf16.msra.mxu0 %v565
          %631 = vmatprep.subr.bf16.mxu0 %v568
          %632 = vmatpush1.bf16.msra.mxu0 %v567
          %633 = vmatprep.subr.bf16.mxu0 %v570
          %634 = vmatpush1.bf16.msra.mxu0 %v569
          %635 = vmatprep.subr.bf16.mxu0 %v572
          %636 = vmatpush1.bf16.msra.mxu0 %v571
          %637 = vmatprep.subr.bf16.mxu0 %v574
          %638 = vmatpush1.bf16.msra.mxu0 %v573
          %639 = vmatprep.subr.bf16.mxu0 %v576
          %640 = vmatpush1.bf16.msra.mxu0 %v575
          %641 = vmatprep.mubr.bf16.mxu0 %v437
          %642 = vmatmul.mubr.bf16.gmra.mrb[0].mxu0 %v436
          %v643 = vpop.f32.mrb[0].mxu0
          %v644 = vadd.f32 %v442, %v643
          %v645 = vpop.f32.mrb[0].mxu0
          %v646 = vadd.f32 %v446, %v645
          %v647 = vpop.f32.mrb[0].mxu0
          %v648 = vpop.f32.mrb[0].mxu0
          %649 = vdwg.mxu0
          %v650 = vtanh.pop %v644
          %v651 = vtanh.pop %v646
          %v652 = vpack.c.bf16 %v650, %v650
          %v653 = vpack.c.bf16 %v651, %v651
          %v655 = vlaneseq
          %v656 = vshrl.u32 %v655, 7
          %v657 = vsub.s32 0, %v656
          %v658 = vrot.slane %v412, %v657
          %v659 = vlaneseq
          %v660 = vshrl.u32 %v659, 7
          %v661 = vsub.s32 1, %v660
          %v662 = vrot.slane %v412, %v661
          %v697 = vunpack.c.l.b16 %v347
          %v698 = vunpack.c.h.b16 %v347
          %v699 = vunpack.c.l.b16 %v348
          %v700 = vunpack.c.h.b16 %v348
          %v701 = vunpack.c.l.b16 %v349
          %v702 = vunpack.c.h.b16 %v349
          %v703 = vunpack.c.l.b16 %v350
          %v704 = vunpack.c.h.b16 %v350
          %v705 = vunpack.c.l.b16 %v351
          %v706 = vunpack.c.h.b16 %v351
          %v707 = vunpack.c.l.b16 %v352
          %v708 = vunpack.c.h.b16 %v352
          %v709 = vunpack.c.l.b16 %v353
          %v710 = vunpack.c.h.b16 %v353
          %v711 = vunpack.c.l.b16 %v354
          %v712 = vunpack.c.h.b16 %v354
          %v713 = vunpack.c.l.b16 %v355
          %v714 = vunpack.c.h.b16 %v355
          %v715 = vunpack.c.l.b16 %v356
          %v716 = vunpack.c.h.b16 %v356
          %v717 = vunpack.c.l.b16 %v357
          %v718 = vunpack.c.h.b16 %v357
          %v719 = vunpack.c.l.b16 %v358
          %v720 = vunpack.c.h.b16 %v358
          %v721 = vunpack.c.l.b16 %v359
          %v722 = vunpack.c.h.b16 %v359
          %v723 = vunpack.c.l.b16 %v360
          %v724 = vunpack.c.h.b16 %v360
          %v725 = vunpack.c.l.b16 %v361
          %v726 = vunpack.c.h.b16 %v361
          %v727 = vunpack.c.l.b16 %v362
          %v728 = vunpack.c.h.b16 %v362
          %v729 = vunpack.c.l.b16 %v363
          %v730 = vunpack.c.h.b16 %v363
          %v731 = vunpack.c.l.b16 %v364
          %v732 = vunpack.c.h.b16 %v364
          %v733 = vunpack.c.l.b16 %v365
          %v734 = vunpack.c.h.b16 %v365
          %v735 = vunpack.c.l.b16 %v366
          %v736 = vunpack.c.h.b16 %v366
          %v737 = vunpack.c.l.b16 %v367
          %v738 = vunpack.c.h.b16 %v367
          %v739 = vunpack.c.l.b16 %v368
          %v740 = vunpack.c.h.b16 %v368
          %v741 = vunpack.c.l.b16 %v369
          %v742 = vunpack.c.h.b16 %v369
          %v743 = vunpack.c.l.b16 %v370
          %v744 = vunpack.c.h.b16 %v370
          %v745 = vunpack.c.l.b16 %v371
          %v746 = vunpack.c.h.b16 %v371
          %v747 = vunpack.c.l.b16 %v372
          %v748 = vunpack.c.h.b16 %v372
          %v749 = vunpack.c.l.b16 %v373
          %v750 = vunpack.c.h.b16 %v373
          %v751 = vunpack.c.l.b16 %v374
          %v752 = vunpack.c.h.b16 %v374
          %v753 = vunpack.c.l.b16 %v375
          %v754 = vunpack.c.h.b16 %v375
          %v755 = vunpack.c.l.b16 %v376
          %v756 = vunpack.c.h.b16 %v376
          %v757 = vunpack.c.l.b16 %v377
          %v758 = vunpack.c.h.b16 %v377
          %v759 = vunpack.c.l.b16 %v378
          %v760 = vunpack.c.h.b16 %v378
          %v761 = vpack.c.b16 %v699, %v697
          %v762 = vpack.c.b16 %v700, %v698
          %v763 = vpack.c.b16 %v703, %v701
          %v764 = vpack.c.b16 %v704, %v702
          %v765 = vpack.c.b16 %v707, %v705
          %v766 = vpack.c.b16 %v708, %v706
          %v767 = vpack.c.b16 %v711, %v709
          %v768 = vpack.c.b16 %v712, %v710
          %v769 = vpack.c.b16 %v715, %v713
          %v770 = vpack.c.b16 %v716, %v714
          %v771 = vpack.c.b16 %v719, %v717
          %v772 = vpack.c.b16 %v720, %v718
          %v773 = vpack.c.b16 %v723, %v721
          %v774 = vpack.c.b16 %v724, %v722
          %v775 = vpack.c.b16 %v727, %v725
          %v776 = vpack.c.b16 %v728, %v726
          %v777 = vpack.c.b16 %v731, %v729
          %v778 = vpack.c.b16 %v732, %v730
          %v779 = vpack.c.b16 %v735, %v733
          %v780 = vpack.c.b16 %v736, %v734
          %v781 = vpack.c.b16 %v739, %v737
          %v782 = vpack.c.b16 %v740, %v738
          %v783 = vpack.c.b16 %v743, %v741
          %v784 = vpack.c.b16 %v744, %v742
          %v785 = vpack.c.b16 %v747, %v745
          %v786 = vpack.c.b16 %v748, %v746
          %v787 = vpack.c.b16 %v751, %v749
          %v788 = vpack.c.b16 %v752, %v750
          %v789 = vpack.c.b16 %v755, %v753
          %v790 = vpack.c.b16 %v756, %v754
          %v791 = vpack.c.b16 %v759, %v757
          %v792 = vpack.c.b16 %v760, %v758
          %825 = vmatprep.subr.bf16.mxu0 %v762
          %826 = vmatpush1.bf16.msra.mxu0 %v761
          %827 = vmatprep.subr.bf16.mxu0 %v764
          %828 = vmatpush1.bf16.msra.mxu0 %v763
          %829 = vmatprep.subr.bf16.mxu0 %v766
          %830 = vmatpush1.bf16.msra.mxu0 %v765
          %831 = vmatprep.subr.bf16.mxu0 %v768
          %832 = vmatpush1.bf16.msra.mxu0 %v767
          %833 = vmatprep.subr.bf16.mxu0 %v770
          %834 = vmatpush1.bf16.msra.mxu0 %v769
          %835 = vmatprep.subr.bf16.mxu0 %v772
          %836 = vmatpush1.bf16.msra.mxu0 %v771
          %837 = vmatprep.subr.bf16.mxu0 %v774
          %838 = vmatpush1.bf16.msra.mxu0 %v773
          %839 = vmatprep.subr.bf16.mxu0 %v776
          %840 = vmatpush1.bf16.msra.mxu0 %v775
          %841 = vmatprep.subr.bf16.mxu0 %v778
          %842 = vmatpush1.bf16.msra.mxu0 %v777
          %843 = vmatprep.subr.bf16.mxu0 %v780
          %844 = vmatpush1.bf16.msra.mxu0 %v779
          %845 = vmatprep.subr.bf16.mxu0 %v782
          %846 = vmatpush1.bf16.msra.mxu0 %v781
          %847 = vmatprep.subr.bf16.mxu0 %v784
          %848 = vmatpush1.bf16.msra.mxu0 %v783
          %849 = vmatprep.subr.bf16.mxu0 %v786
          %850 = vmatpush1.bf16.msra.mxu0 %v785
          %851 = vmatprep.subr.bf16.mxu0 %v788
          %852 = vmatpush1.bf16.msra.mxu0 %v787
          %853 = vmatprep.subr.bf16.mxu0 %v790
          %854 = vmatpush1.bf16.msra.mxu0 %v789
          %855 = vmatprep.subr.bf16.mxu0 %v792
          %856 = vmatpush1.bf16.msra.mxu0 %v791
          %857 = vmatprep.mubr.bf16.mxu0 %v653
          %858 = vmatmul.mubr.bf16.gmra.mrb[0].mxu0 %v652
          %v859 = vpop.f32.mrb[0].mxu0
          %v860 = vadd.f32 %v658, %v859
          %v861 = vpop.f32.mrb[0].mxu0
          %v862 = vadd.f32 %v662, %v861
          %v863 = vpop.f32.mrb[0].mxu0
          %v864 = vpop.f32.mrb[0].mxu0
          %865 = vdwg.mxu0
          %v866 = vtanh.pop %v860
          %v867 = vtanh.pop %v862
          %v868 = vpack.c.bf16 %v866, %v866
          %v869 = vpack.c.bf16 %v867, %v867
          %v871 = vlaneseq
          %v872 = vshrl.u32 %v871, 7
          %v873 = vsub.s32 0, %v872
          %v874 = vrot.slane %v413, %v873
          %v875 = vlaneseq
          %v876 = vshrl.u32 %v875, 7
          %v877 = vsub.s32 1, %v876
          %v878 = vrot.slane %v413, %v877
          %v913 = vunpack.c.l.b16 %v379
          %v914 = vunpack.c.h.b16 %v379
          %v915 = vunpack.c.l.b16 %v380
          %v916 = vunpack.c.h.b16 %v380
          %v917 = vunpack.c.l.b16 %v381
          %v918 = vunpack.c.h.b16 %v381
          %v919 = vunpack.c.l.b16 %v382
          %v920 = vunpack.c.h.b16 %v382
          %v921 = vunpack.c.l.b16 %v383
          %v922 = vunpack.c.h.b16 %v383
          %v923 = vunpack.c.l.b16 %v384
          %v924 = vunpack.c.h.b16 %v384
          %v925 = vunpack.c.l.b16 %v385
          %v926 = vunpack.c.h.b16 %v385
          %v927 = vunpack.c.l.b16 %v386
          %v928 = vunpack.c.h.b16 %v386
          %v929 = vunpack.c.l.b16 %v387
          %v930 = vunpack.c.h.b16 %v387
          %v931 = vunpack.c.l.b16 %v388
          %v932 = vunpack.c.h.b16 %v388
          %v933 = vunpack.c.l.b16 %v389
          %v934 = vunpack.c.h.b16 %v389
          %v935 = vunpack.c.l.b16 %v390
          %v936 = vunpack.c.h.b16 %v390
          %v937 = vunpack.c.l.b16 %v391
          %v938 = vunpack.c.h.b16 %v391
          %v939 = vunpack.c.l.b16 %v392
          %v940 = vunpack.c.h.b16 %v392
          %v941 = vunpack.c.l.b16 %v393
          %v942 = vunpack.c.h.b16 %v393
          %v943 = vunpack.c.l.b16 %v394
          %v944 = vunpack.c.h.b16 %v394
          %v945 = vunpack.c.l.b16 %v395
          %v946 = vunpack.c.h.b16 %v395
          %v947 = vunpack.c.l.b16 %v396
          %v948 = vunpack.c.h.b16 %v396
          %v949 = vunpack.c.l.b16 %v397
          %v950 = vunpack.c.h.b16 %v397
          %v951 = vunpack.c.l.b16 %v398
          %v952 = vunpack.c.h.b16 %v398
          %v953 = vunpack.c.l.b16 %v399
          %v954 = vunpack.c.h.b16 %v399
          %v955 = vunpack.c.l.b16 %v400
          %v956 = vunpack.c.h.b16 %v400
          %v957 = vunpack.c.l.b16 %v401
          %v958 = vunpack.c.h.b16 %v401
          %v959 = vunpack.c.l.b16 %v402
          %v960 = vunpack.c.h.b16 %v402
          %v961 = vunpack.c.l.b16 %v403
          %v962 = vunpack.c.h.b16 %v403
          %v963 = vunpack.c.l.b16 %v404
          %v964 = vunpack.c.h.b16 %v404
          %v965 = vunpack.c.l.b16 %v405
          %v966 = vunpack.c.h.b16 %v405
          %v967 = vunpack.c.l.b16 %v406
          %v968 = vunpack.c.h.b16 %v406
          %v969 = vunpack.c.l.b16 %v407
          %v970 = vunpack.c.h.b16 %v407
          %v971 = vunpack.c.l.b16 %v408
          %v972 = vunpack.c.h.b16 %v408
          %v973 = vunpack.c.l.b16 %v409
          %v974 = vunpack.c.h.b16 %v409
          %v975 = vunpack.c.l.b16 %v410
          %v976 = vunpack.c.h.b16 %v410
          %v977 = vpack.c.b16 %v915, %v913
          %v978 = vpack.c.b16 %v916, %v914
          %v979 = vpack.c.b16 %v919, %v917
          %v980 = vpack.c.b16 %v920, %v918
          %v981 = vpack.c.b16 %v923, %v921
          %v982 = vpack.c.b16 %v924, %v922
          %v983 = vpack.c.b16 %v927, %v925
          %v984 = vpack.c.b16 %v928, %v926
          %v985 = vpack.c.b16 %v931, %v929
          %v986 = vpack.c.b16 %v932, %v930
          %v987 = vpack.c.b16 %v935, %v933
          %v988 = vpack.c.b16 %v936, %v934
          %v989 = vpack.c.b16 %v939, %v937
          %v990 = vpack.c.b16 %v940, %v938
          %v991 = vpack.c.b16 %v943, %v941
          %v992 = vpack.c.b16 %v944, %v942
          %v993 = vpack.c.b16 %v947, %v945
          %v994 = vpack.c.b16 %v948, %v946
          %v995 = vpack.c.b16 %v951, %v949
          %v996 = vpack.c.b16 %v952, %v950
          %v997 = vpack.c.b16 %v955, %v953
          %v998 = vpack.c.b16 %v956, %v954
          %v999 = vpack.c.b16 %v959, %v957
          %v1000 = vpack.c.b16 %v960, %v958
          %v1001 = vpack.c.b16 %v963, %v961
          %v1002 = vpack.c.b16 %v964, %v962
          %v1003 = vpack.c.b16 %v967, %v965
          %v1004 = vpack.c.b16 %v968, %v966
          %v1005 = vpack.c.b16 %v971, %v969
          %v1006 = vpack.c.b16 %v972, %v970
          %v1007 = vpack.c.b16 %v975, %v973
          %v1008 = vpack.c.b16 %v976, %v974
          %1041 = vmatprep.subr.bf16.mxu0 %v978
          %1042 = vmatpush1.bf16.msra.mxu0 %v977
          %1043 = vmatprep.subr.bf16.mxu0 %v980
          %1044 = vmatpush1.bf16.msra.mxu0 %v979
          %1045 = vmatprep.subr.bf16.mxu0 %v982
          %1046 = vmatpush1.bf16.msra.mxu0 %v981
          %1047 = vmatprep.subr.bf16.mxu0 %v984
          %1048 = vmatpush1.bf16.msra.mxu0 %v983
          %1049 = vmatprep.subr.bf16.mxu0 %v986
          %1050 = vmatpush1.bf16.msra.mxu0 %v985
          %1051 = vmatprep.subr.bf16.mxu0 %v988
          %1052 = vmatpush1.bf16.msra.mxu0 %v987
          %1053 = vmatprep.subr.bf16.mxu0 %v990
          %1054 = vmatpush1.bf16.msra.mxu0 %v989
          %1055 = vmatprep.subr.bf16.mxu0 %v992
          %1056 = vmatpush1.bf16.msra.mxu0 %v991
          %1057 = vmatprep.subr.bf16.mxu0 %v994
          %1058 = vmatpush1.bf16.msra.mxu0 %v993
          %1059 = vmatprep.subr.bf16.mxu0 %v996
          %1060 = vmatpush1.bf16.msra.mxu0 %v995
          %1061 = vmatprep.subr.bf16.mxu0 %v998
          %1062 = vmatpush1.bf16.msra.mxu0 %v997
          %1063 = vmatprep.subr.bf16.mxu0 %v1000
          %1064 = vmatpush1.bf16.msra.mxu0 %v999
          %1065 = vmatprep.subr.bf16.mxu0 %v1002
          %1066 = vmatpush1.bf16.msra.mxu0 %v1001
          %1067 = vmatprep.subr.bf16.mxu0 %v1004
          %1068 = vmatpush1.bf16.msra.mxu0 %v1003
          %1069 = vmatprep.subr.bf16.mxu0 %v1006
          %1070 = vmatpush1.bf16.msra.mxu0 %v1005
          %1071 = vmatprep.subr.bf16.mxu0 %v1008
          %1072 = vmatpush1.bf16.msra.mxu0 %v1007
          %1073 = vmatprep.mubr.bf16.mxu0 %v869
          %1074 = vmatmul.mubr.bf16.gmra.mrb[0].mxu0 %v868
          %v1075 = vpop.f32.mrb[0].mxu0
          %v1076 = vadd.f32 %v874, %v1075
          %v1077 = vpop.f32.mrb[0].mxu0
          %v1078 = vadd.f32 %v878, %v1077
          %v1079 = vpop.f32.mrb[0].mxu0
          %v1080 = vpop.f32.mrb[0].mxu0
          %1081 = vdwg.mxu0
          %v1084 = vcombine.low %v1076, %v1078
          %v1086 = vunpack.c.l.s4 1983009808
          %v1087 = vunpack.c.0.s8 %v1086
          %v1088 = vlaneseq
          %v1089 = vshrl.u32 %v1088, 7
          %v1090 = vsub.s32 %v1087, %v1089
          %v1091 = vrot.slane %v1084, %v1090
          %1093 = vst [vmem:[#allocation2] sm:$0xf] %v1091
        $region72: #{tpu_custom_call.1} parent=47 // pred_fallthru
          _
        %v1094 = vld [vmem:[#allocation2] sm:$0xf]
        %vm1095 = vcmask 1041408
        %vm1096 = vcmask 584706
        %vm1097 = vmor %vm1096, %vm1095
        %1098 = vst.msk [vmem:[%s313] sm:$0xf] %vm1097, %v1094
        %v1099 = vld [vmem:[#allocation2] sm:$0xf]
        %v1102 = vunpack.c.l.s4 1983009808
        %v1103 = vunpack.c.0.s8 %v1102
        %v1104 = vlaneseq
        %v1105 = vshrl.u32 %v1104, 7
        %v1106 = vsub.s32 %v1103, %v1105
        %v1107 = vrot.slane %v1099, %v1106
        %v1108 = vcombine.high %v1107, %v1107
        %v1111 = vpack.c.bf16 %v1107, %v1107
        %v1112 = vpack.c.bf16 %v1108, %v1108
        %v1114 = vlaneseq
        %v1115 = vshrl.u32 %v1114, 7
        %v1116 = vsub.s32 0, %v1115
        %v1117 = vrot.slane %v411, %v1116
        %v1118 = vlaneseq
        %v1119 = vshrl.u32 %v1118, 7
        %v1120 = vsub.s32 1, %v1119
        %v1121 = vrot.slane %v411, %v1120
        %v1156 = vunpack.c.l.b16 %v315
        %v1157 = vunpack.c.h.b16 %v315
        %v1158 = vunpack.c.l.b16 %v316
        %v1159 = vunpack.c.h.b16 %v316
        %v1160 = vunpack.c.l.b16 %v317
        %v1161 = vunpack.c.h.b16 %v317
        %v1162 = vunpack.c.l.b16 %v318
        %v1163 = vunpack.c.h.b16 %v318
        %v1164 = vunpack.c.l.b16 %v319
        %v1165 = vunpack.c.h.b16 %v319
        %v1166 = vunpack.c.l.b16 %v320
        %v1167 = vunpack.c.h.b16 %v320
        %v1168 = vunpack.c.l.b16 %v321
        %v1169 = vunpack.c.h.b16 %v321
        %v1170 = vunpack.c.l.b16 %v322
        %v1171 = vunpack.c.h.b16 %v322
        %v1172 = vunpack.c.l.b16 %v323
        %v1173 = vunpack.c.h.b16 %v323
        %v1174 = vunpack.c.l.b16 %v324
        %v1175 = vunpack.c.h.b16 %v324
        %v1176 = vunpack.c.l.b16 %v325
        %v1177 = vunpack.c.h.b16 %v325
        %v1178 = vunpack.c.l.b16 %v326
        %v1179 = vunpack.c.h.b16 %v326
        %v1180 = vunpack.c.l.b16 %v327
        %v1181 = vunpack.c.h.b16 %v327
        %v1182 = vunpack.c.l.b16 %v328
        %v1183 = vunpack.c.h.b16 %v328
        %v1184 = vunpack.c.l.b16 %v329
        %v1185 = vunpack.c.h.b16 %v329
        %v1186 = vunpack.c.l.b16 %v330
        %v1187 = vunpack.c.h.b16 %v330
        %v1188 = vunpack.c.l.b16 %v331
        %v1189 = vunpack.c.h.b16 %v331
        %v1190 = vunpack.c.l.b16 %v332
        %v1191 = vunpack.c.h.b16 %v332
        %v1192 = vunpack.c.l.b16 %v333
        %v1193 = vunpack.c.h.b16 %v333
        %v1194 = vunpack.c.l.b16 %v334
        %v1195 = vunpack.c.h.b16 %v334
        %v1196 = vunpack.c.l.b16 %v335
        %v1197 = vunpack.c.h.b16 %v335
        %v1198 = vunpack.c.l.b16 %v336
        %v1199 = vunpack.c.h.b16 %v336
        %v1200 = vunpack.c.l.b16 %v337
        %v1201 = vunpack.c.h.b16 %v337
        %v1202 = vunpack.c.l.b16 %v338
        %v1203 = vunpack.c.h.b16 %v338
        %v1204 = vunpack.c.l.b16 %v339
        %v1205 = vunpack.c.h.b16 %v339
        %v1206 = vunpack.c.l.b16 %v340
        %v1207 = vunpack.c.h.b16 %v340
        %v1208 = vunpack.c.l.b16 %v341
        %v1209 = vunpack.c.h.b16 %v341
        %v1210 = vunpack.c.l.b16 %v342
        %v1211 = vunpack.c.h.b16 %v342
        %v1212 = vunpack.c.l.b16 %v343
        %v1213 = vunpack.c.h.b16 %v343
        %v1214 = vunpack.c.l.b16 %v344
        %v1215 = vunpack.c.h.b16 %v344
        %v1216 = vunpack.c.l.b16 %v345
        %v1217 = vunpack.c.h.b16 %v345
        %v1218 = vunpack.c.l.b16 %v346
        %v1219 = vunpack.c.h.b16 %v346
        %v1220 = vpack.c.b16 %v1158, %v1156
        %v1221 = vpack.c.b16 %v1159, %v1157
        %v1222 = vpack.c.b16 %v1162, %v1160
        %v1223 = vpack.c.b16 %v1163, %v1161
        %v1224 = vpack.c.b16 %v1166, %v1164
        %v1225 = vpack.c.b16 %v1167, %v1165
        %v1226 = vpack.c.b16 %v1170, %v1168
        %v1227 = vpack.c.b16 %v1171, %v1169
        %v1228 = vpack.c.b16 %v1174, %v1172
        %v1229 = vpack.c.b16 %v1175, %v1173
        %v1230 = vpack.c.b16 %v1178, %v1176
        %v1231 = vpack.c.b16 %v1179, %v1177
        %v1232 = vpack.c.b16 %v1182, %v1180
        %v1233 = vpack.c.b16 %v1183, %v1181
        %v1234 = vpack.c.b16 %v1186, %v1184
        %v1235 = vpack.c.b16 %v1187, %v1185
        %v1236 = vpack.c.b16 %v1190, %v1188
        %v1237 = vpack.c.b16 %v1191, %v1189
        %v1238 = vpack.c.b16 %v1194, %v1192
        %v1239 = vpack.c.b16 %v1195, %v1193
        %v1240 = vpack.c.b16 %v1198, %v1196
        %v1241 = vpack.c.b16 %v1199, %v1197
        %v1242 = vpack.c.b16 %v1202, %v1200
        %v1243 = vpack.c.b16 %v1203, %v1201
        %v1244 = vpack.c.b16 %v1206, %v1204
        %v1245 = vpack.c.b16 %v1207, %v1205
        %v1246 = vpack.c.b16 %v1210, %v1208
        %v1247 = vpack.c.b16 %v1211, %v1209
        %v1248 = vpack.c.b16 %v1214, %v1212
        %v1249 = vpack.c.b16 %v1215, %v1213
        %v1250 = vpack.c.b16 %v1218, %v1216
        %v1251 = vpack.c.b16 %v1219, %v1217
        %1284 = vmatprep.subr.bf16.mxu0 %v1221
        %1285 = vmatpush1.bf16.msra.mxu0 %v1220
        %1286 = vmatprep.subr.bf16.mxu0 %v1223
        %1287 = vmatpush1.bf16.msra.mxu0 %v1222
        %1288 = vmatprep.subr.bf16.mxu0 %v1225
        %1289 = vmatpush1.bf16.msra.mxu0 %v1224
        %1290 = vmatprep.subr.bf16.mxu0 %v1227
        %1291 = vmatpush1.bf16.msra.mxu0 %v1226
        %1292 = vmatprep.subr.bf16.mxu0 %v1229
        %1293 = vmatpush1.bf16.msra.mxu0 %v1228
        %1294 = vmatprep.subr.bf16.mxu0 %v1231
        %1295 = vmatpush1.bf16.msra.mxu0 %v1230
        %1296 = vmatprep.subr.bf16.mxu0 %v1233
        %1297 = vmatpush1.bf16.msra.mxu0 %v1232
        %1298 = vmatprep.subr.bf16.mxu0 %v1235
        %1299 = vmatpush1.bf16.msra.mxu0 %v1234
        %1300 = vmatprep.subr.bf16.mxu0 %v1237
        %1301 = vmatpush1.bf16.msra.mxu0 %v1236
        %1302 = vmatprep.subr.bf16.mxu0 %v1239
        %1303 = vmatpush1.bf16.msra.mxu0 %v1238
        %1304 = vmatprep.subr.bf16.mxu0 %v1241
        %1305 = vmatpush1.bf16.msra.mxu0 %v1240
        %1306 = vmatprep.subr.bf16.mxu0 %v1243
        %1307 = vmatpush1.bf16.msra.mxu0 %v1242
        %1308 = vmatprep.subr.bf16.mxu0 %v1245
        %1309 = vmatpush1.bf16.msra.mxu0 %v1244
        %1310 = vmatprep.subr.bf16.mxu0 %v1247
        %1311 = vmatpush1.bf16.msra.mxu0 %v1246
        %1312 = vmatprep.subr.bf16.mxu0 %v1249
        %1313 = vmatpush1.bf16.msra.mxu0 %v1248
        %1314 = vmatprep.subr.bf16.mxu0 %v1251
        %1315 = vmatpush1.bf16.msra.mxu0 %v1250
        %1316 = vmatprep.mubr.bf16.mxu0 %v1112
        %1317 = vmatmul.mubr.bf16.gmra.mrb[0].mxu0 %v1111
        %v1318 = vpop.f32.mrb[0].mxu0
        %v1319 = vadd.f32 %v1117, %v1318
        %v1320 = vpop.f32.mrb[0].mxu0
        %v1321 = vadd.f32 %v1121, %v1320
        %v1322 = vpop.f32.mrb[0].mxu0
        %v1323 = vpop.f32.mrb[0].mxu0
        %1324 = vdwg.mxu0
        %v1325 = vtanh.pop %v1319
        %v1326 = vtanh.pop %v1321
        %v1327 = vpack.c.bf16 %v1325, %v1325
        %v1328 = vpack.c.bf16 %v1326, %v1326
        %v1330 = vlaneseq
        %v1331 = vshrl.u32 %v1330, 7
        %v1332 = vsub.s32 0, %v1331
        %v1333 = vrot.slane %v412, %v1332
        %v1334 = vlaneseq
        %v1335 = vshrl.u32 %v1334, 7
        %v1336 = vsub.s32 1, %v1335
        %v1337 = vrot.slane %v412, %v1336
        %v1372 = vunpack.c.l.b16 %v347
        %v1373 = vunpack.c.h.b16 %v347
        %v1374 = vunpack.c.l.b16 %v348
        %v1375 = vunpack.c.h.b16 %v348
        %v1376 = vunpack.c.l.b16 %v349
        %v1377 = vunpack.c.h.b16 %v349
        %v1378 = vunpack.c.l.b16 %v350
        %v1379 = vunpack.c.h.b16 %v350
        %v1380 = vunpack.c.l.b16 %v351
        %v1381 = vunpack.c.h.b16 %v351
        %v1382 = vunpack.c.l.b16 %v352
        %v1383 = vunpack.c.h.b16 %v352
        %v1384 = vunpack.c.l.b16 %v353
        %v1385 = vunpack.c.h.b16 %v353
        %v1386 = vunpack.c.l.b16 %v354
        %v1387 = vunpack.c.h.b16 %v354
        %v1388 = vunpack.c.l.b16 %v355
        %v1389 = vunpack.c.h.b16 %v355
        %v1390 = vunpack.c.l.b16 %v356
        %v1391 = vunpack.c.h.b16 %v356
        %v1392 = vunpack.c.l.b16 %v357
        %v1393 = vunpack.c.h.b16 %v357
        %v1394 = vunpack.c.l.b16 %v358
        %v1395 = vunpack.c.h.b16 %v358
        %v1396 = vunpack.c.l.b16 %v359
        %v1397 = vunpack.c.h.b16 %v359
        %v1398 = vunpack.c.l.b16 %v360
        %v1399 = vunpack.c.h.b16 %v360
        %v1400 = vunpack.c.l.b16 %v361
        %v1401 = vunpack.c.h.b16 %v361
        %v1402 = vunpack.c.l.b16 %v362
        %v1403 = vunpack.c.h.b16 %v362
        %v1404 = vunpack.c.l.b16 %v363
        %v1405 = vunpack.c.h.b16 %v363
        %v1406 = vunpack.c.l.b16 %v364
        %v1407 = vunpack.c.h.b16 %v364
        %v1408 = vunpack.c.l.b16 %v365
        %v1409 = vunpack.c.h.b16 %v365
        %v1410 = vunpack.c.l.b16 %v366
        %v1411 = vunpack.c.h.b16 %v366
        %v1412 = vunpack.c.l.b16 %v367
        %v1413 = vunpack.c.h.b16 %v367
        %v1414 = vunpack.c.l.b16 %v368
        %v1415 = vunpack.c.h.b16 %v368
        %v1416 = vunpack.c.l.b16 %v369
        %v1417 = vunpack.c.h.b16 %v369
        %v1418 = vunpack.c.l.b16 %v370
        %v1419 = vunpack.c.h.b16 %v370
        %v1420 = vunpack.c.l.b16 %v371
        %v1421 = vunpack.c.h.b16 %v371
        %v1422 = vunpack.c.l.b16 %v372
        %v1423 = vunpack.c.h.b16 %v372
        %v1424 = vunpack.c.l.b16 %v373
        %v1425 = vunpack.c.h.b16 %v373
        %v1426 = vunpack.c.l.b16 %v374
        %v1427 = vunpack.c.h.b16 %v374
        %v1428 = vunpack.c.l.b16 %v375
        %v1429 = vunpack.c.h.b16 %v375
        %v1430 = vunpack.c.l.b16 %v376
        %v1431 = vunpack.c.h.b16 %v376
        %v1432 = vunpack.c.l.b16 %v377
        %v1433 = vunpack.c.h.b16 %v377
        %v1434 = vunpack.c.l.b16 %v378
        %v1435 = vunpack.c.h.b16 %v378
        %v1436 = vpack.c.b16 %v1374, %v1372
        %v1437 = vpack.c.b16 %v1375, %v1373
        %v1438 = vpack.c.b16 %v1378, %v1376
        %v1439 = vpack.c.b16 %v1379, %v1377
        %v1440 = vpack.c.b16 %v1382, %v1380
        %v1441 = vpack.c.b16 %v1383, %v1381
        %v1442 = vpack.c.b16 %v1386, %v1384
        %v1443 = vpack.c.b16 %v1387, %v1385
        %v1444 = vpack.c.b16 %v1390, %v1388
        %v1445 = vpack.c.b16 %v1391, %v1389
        %v1446 = vpack.c.b16 %v1394, %v1392
        %v1447 = vpack.c.b16 %v1395, %v1393
        %v1448 = vpack.c.b16 %v1398, %v1396
        %v1449 = vpack.c.b16 %v1399, %v1397
        %v1450 = vpack.c.b16 %v1402, %v1400
        %v1451 = vpack.c.b16 %v1403, %v1401
        %v1452 = vpack.c.b16 %v1406, %v1404
        %v1453 = vpack.c.b16 %v1407, %v1405
        %v1454 = vpack.c.b16 %v1410, %v1408
        %v1455 = vpack.c.b16 %v1411, %v1409
        %v1456 = vpack.c.b16 %v1414, %v1412
        %v1457 = vpack.c.b16 %v1415, %v1413
        %v1458 = vpack.c.b16 %v1418, %v1416
        %v1459 = vpack.c.b16 %v1419, %v1417
        %v1460 = vpack.c.b16 %v1422, %v1420
        %v1461 = vpack.c.b16 %v1423, %v1421
        %v1462 = vpack.c.b16 %v1426, %v1424
        %v1463 = vpack.c.b16 %v1427, %v1425
        %v1464 = vpack.c.b16 %v1430, %v1428
        %v1465 = vpack.c.b16 %v1431, %v1429
        %v1466 = vpack.c.b16 %v1434, %v1432
        %v1467 = vpack.c.b16 %v1435, %v1433
        %1500 = vmatprep.subr.bf16.mxu0 %v1437
        %1501 = vmatpush1.bf16.msra.mxu0 %v1436
        %1502 = vmatprep.subr.bf16.mxu0 %v1439
        %1503 = vmatpush1.bf16.msra.mxu0 %v1438
        %1504 = vmatprep.subr.bf16.mxu0 %v1441
        %1505 = vmatpush1.bf16.msra.mxu0 %v1440
        %1506 = vmatprep.subr.bf16.mxu0 %v1443
        %1507 = vmatpush1.bf16.msra.mxu0 %v1442
        %1508 = vmatprep.subr.bf16.mxu0 %v1445
        %1509 = vmatpush1.bf16.msra.mxu0 %v1444
        %1510 = vmatprep.subr.bf16.mxu0 %v1447
        %1511 = vmatpush1.bf16.msra.mxu0 %v1446
        %1512 = vmatprep.subr.bf16.mxu0 %v1449
        %1513 = vmatpush1.bf16.msra.mxu0 %v1448
        %1514 = vmatprep.subr.bf16.mxu0 %v1451
        %1515 = vmatpush1.bf16.msra.mxu0 %v1450
        %1516 = vmatprep.subr.bf16.mxu0 %v1453
        %1517 = vmatpush1.bf16.msra.mxu0 %v1452
        %1518 = vmatprep.subr.bf16.mxu0 %v1455
        %1519 = vmatpush1.bf16.msra.mxu0 %v1454
        %1520 = vmatprep.subr.bf16.mxu0 %v1457
        %1521 = vmatpush1.bf16.msra.mxu0 %v1456
        %1522 = vmatprep.subr.bf16.mxu0 %v1459
        %1523 = vmatpush1.bf16.msra.mxu0 %v1458
        %1524 = vmatprep.subr.bf16.mxu0 %v1461
        %1525 = vmatpush1.bf16.msra.mxu0 %v1460
        %1526 = vmatprep.subr.bf16.mxu0 %v1463
        %1527 = vmatpush1.bf16.msra.mxu0 %v1462
        %1528 = vmatprep.subr.bf16.mxu0 %v1465
        %1529 = vmatpush1.bf16.msra.mxu0 %v1464
        %1530 = vmatprep.subr.bf16.mxu0 %v1467
        %1531 = vmatpush1.bf16.msra.mxu0 %v1466
        %1532 = vmatprep.mubr.bf16.mxu0 %v1328
        %1533 = vmatmul.mubr.bf16.gmra.mrb[0].mxu0 %v1327
        %v1534 = vpop.f32.mrb[0].mxu0
        %v1535 = vadd.f32 %v1333, %v1534
        %v1536 = vpop.f32.mrb[0].mxu0
        %v1537 = vadd.f32 %v1337, %v1536
        %v1538 = vpop.f32.mrb[0].mxu0
        %v1539 = vpop.f32.mrb[0].mxu0
        %1540 = vdwg.mxu0
        %v1541 = vtanh.pop %v1535
        %v1542 = vtanh.pop %v1537
        %v1543 = vpack.c.bf16 %v1541, %v1541
        %v1544 = vpack.c.bf16 %v1542, %v1542
        %v1546 = vlaneseq
        %v1547 = vshrl.u32 %v1546, 7
        %v1548 = vsub.s32 0, %v1547
        %v1549 = vrot.slane %v413, %v1548
        %v1550 = vlaneseq
        %v1551 = vshrl.u32 %v1550, 7
        %v1552 = vsub.s32 1, %v1551
        %v1553 = vrot.slane %v413, %v1552
        %v1588 = vunpack.c.l.b16 %v379
        %v1589 = vunpack.c.h.b16 %v379
        %v1590 = vunpack.c.l.b16 %v380
        %v1591 = vunpack.c.h.b16 %v380
        %v1592 = vunpack.c.l.b16 %v381
        %v1593 = vunpack.c.h.b16 %v381
        %v1594 = vunpack.c.l.b16 %v382
        %v1595 = vunpack.c.h.b16 %v382
        %v1596 = vunpack.c.l.b16 %v383
        %v1597 = vunpack.c.h.b16 %v383
        %v1598 = vunpack.c.l.b16 %v384
        %v1599 = vunpack.c.h.b16 %v384
        %v1600 = vunpack.c.l.b16 %v385
        %v1601 = vunpack.c.h.b16 %v385
        %v1602 = vunpack.c.l.b16 %v386
        %v1603 = vunpack.c.h.b16 %v386
        %v1604 = vunpack.c.l.b16 %v387
        %v1605 = vunpack.c.h.b16 %v387
        %v1606 = vunpack.c.l.b16 %v388
        %v1607 = vunpack.c.h.b16 %v388
        %v1608 = vunpack.c.l.b16 %v389
        %v1609 = vunpack.c.h.b16 %v389
        %v1610 = vunpack.c.l.b16 %v390
        %v1611 = vunpack.c.h.b16 %v390
        %v1612 = vunpack.c.l.b16 %v391
        %v1613 = vunpack.c.h.b16 %v391
        %v1614 = vunpack.c.l.b16 %v392
        %v1615 = vunpack.c.h.b16 %v392
        %v1616 = vunpack.c.l.b16 %v393
        %v1617 = vunpack.c.h.b16 %v393
        %v1618 = vunpack.c.l.b16 %v394
        %v1619 = vunpack.c.h.b16 %v394
        %v1620 = vunpack.c.l.b16 %v395
        %v1621 = vunpack.c.h.b16 %v395
        %v1622 = vunpack.c.l.b16 %v396
        %v1623 = vunpack.c.h.b16 %v396
        %v1624 = vunpack.c.l.b16 %v397
        %v1625 = vunpack.c.h.b16 %v397
        %v1626 = vunpack.c.l.b16 %v398
        %v1627 = vunpack.c.h.b16 %v398
        %v1628 = vunpack.c.l.b16 %v399
        %v1629 = vunpack.c.h.b16 %v399
        %v1630 = vunpack.c.l.b16 %v400
        %v1631 = vunpack.c.h.b16 %v400
        %v1632 = vunpack.c.l.b16 %v401
        %v1633 = vunpack.c.h.b16 %v401
        %v1634 = vunpack.c.l.b16 %v402
        %v1635 = vunpack.c.h.b16 %v402
        %v1636 = vunpack.c.l.b16 %v403
        %v1637 = vunpack.c.h.b16 %v403
        %v1638 = vunpack.c.l.b16 %v404
        %v1639 = vunpack.c.h.b16 %v404
        %v1640 = vunpack.c.l.b16 %v405
        %v1641 = vunpack.c.h.b16 %v405
        %v1642 = vunpack.c.l.b16 %v406
        %v1643 = vunpack.c.h.b16 %v406
        %v1644 = vunpack.c.l.b16 %v407
        %v1645 = vunpack.c.h.b16 %v407
        %v1646 = vunpack.c.l.b16 %v408
        %v1647 = vunpack.c.h.b16 %v408
        %v1648 = vunpack.c.l.b16 %v409
        %v1649 = vunpack.c.h.b16 %v409
        %v1650 = vunpack.c.l.b16 %v410
        %v1651 = vunpack.c.h.b16 %v410
        %v1652 = vpack.c.b16 %v1590, %v1588
        %v1653 = vpack.c.b16 %v1591, %v1589
        %v1654 = vpack.c.b16 %v1594, %v1592
        %v1655 = vpack.c.b16 %v1595, %v1593
        %v1656 = vpack.c.b16 %v1598, %v1596
        %v1657 = vpack.c.b16 %v1599, %v1597
        %v1658 = vpack.c.b16 %v1602, %v1600
        %v1659 = vpack.c.b16 %v1603, %v1601
        %v1660 = vpack.c.b16 %v1606, %v1604
        %v1661 = vpack.c.b16 %v1607, %v1605
        %v1662 = vpack.c.b16 %v1610, %v1608
        %v1663 = vpack.c.b16 %v1611, %v1609
        %v1664 = vpack.c.b16 %v1614, %v1612
        %v1665 = vpack.c.b16 %v1615, %v1613
        %v1666 = vpack.c.b16 %v1618, %v1616
        %v1667 = vpack.c.b16 %v1619, %v1617
        %v1668 = vpack.c.b16 %v1622, %v1620
        %v1669 = vpack.c.b16 %v1623, %v1621
        %v1670 = vpack.c.b16 %v1626, %v1624
        %v1671 = vpack.c.b16 %v1627, %v1625
        %v1672 = vpack.c.b16 %v1630, %v1628
        %v1673 = vpack.c.b16 %v1631, %v1629
        %v1674 = vpack.c.b16 %v1634, %v1632
        %v1675 = vpack.c.b16 %v1635, %v1633
        %v1676 = vpack.c.b16 %v1638, %v1636
        %v1677 = vpack.c.b16 %v1639, %v1637
        %v1678 = vpack.c.b16 %v1642, %v1640
        %v1679 = vpack.c.b16 %v1643, %v1641
        %v1680 = vpack.c.b16 %v1646, %v1644
        %v1681 = vpack.c.b16 %v1647, %v1645
        %v1682 = vpack.c.b16 %v1650, %v1648
        %v1683 = vpack.c.b16 %v1651, %v1649
        %1716 = vmatprep.subr.bf16.mxu0 %v1653
        %1717 = vmatpush1.bf16.msra.mxu0 %v1652
        %1718 = vmatprep.subr.bf16.mxu0 %v1655
        %1719 = vmatpush1.bf16.msra.mxu0 %v1654
        %1720 = vmatprep.subr.bf16.mxu0 %v1657
        %1721 = vmatpush1.bf16.msra.mxu0 %v1656
        %1722 = vmatprep.subr.bf16.mxu0 %v1659
        %1723 = vmatpush1.bf16.msra.mxu0 %v1658
        %1724 = vmatprep.subr.bf16.mxu0 %v1661
        %1725 = vmatpush1.bf16.msra.mxu0 %v1660
        %1726 = vmatprep.subr.bf16.mxu0 %v1663
        %1727 = vmatpush1.bf16.msra.mxu0 %v1662
        %1728 = vmatprep.subr.bf16.mxu0 %v1665
        %1729 = vmatpush1.bf16.msra.mxu0 %v1664
        %1730 = vmatprep.subr.bf16.mxu0 %v1667
        %1731 = vmatpush1.bf16.msra.mxu0 %v1666
        %1732 = vmatprep.subr.bf16.mxu0 %v1669
        %1733 = vmatpush1.bf16.msra.mxu0 %v1668
        %1734 = vmatprep.subr.bf16.mxu0 %v1671
        %1735 = vmatpush1.bf16.msra.mxu0 %v1670
        %1736 = vmatprep.subr.bf16.mxu0 %v1673
        %1737 = vmatpush1.bf16.msra.mxu0 %v1672
        %1738 = vmatprep.subr.bf16.mxu0 %v1675
        %1739 = vmatpush1.bf16.msra.mxu0 %v1674
        %1740 = vmatprep.subr.bf16.mxu0 %v1677
        %1741 = vmatpush1.bf16.msra.mxu0 %v1676
        %1742 = vmatprep.subr.bf16.mxu0 %v1679
        %1743 = vmatpush1.bf16.msra.mxu0 %v1678
        %1744 = vmatprep.subr.bf16.mxu0 %v1681
        %1745 = vmatpush1.bf16.msra.mxu0 %v1680
        %1746 = vmatprep.subr.bf16.mxu0 %v1683
        %1747 = vmatpush1.bf16.msra.mxu0 %v1682
        %1748 = vmatprep.mubr.bf16.mxu0 %v1544
        %1749 = vmatmul.mubr.bf16.gmra.mrb[0].mxu0 %v1543
        %v1750 = vpop.f32.mrb[0].mxu0
        %v1751 = vadd.f32 %v1549, %v1750
        %v1752 = vpop.f32.mrb[0].mxu0
        %v1753 = vadd.f32 %v1553, %v1752
        %v1754 = vpop.f32.mrb[0].mxu0
        %v1755 = vpop.f32.mrb[0].mxu0
        %1756 = vdwg.mxu0
        %v1759 = vcombine.low %v1751, %v1753
        %v1761 = vunpack.c.l.s4 1983009808
        %v1762 = vunpack.c.0.s8 %v1761
        %v1763 = vlaneseq
        %v1764 = vshrl.u32 %v1763, 7
        %v1765 = vsub.s32 %v1762, %v1764
        %v1766 = vrot.slane %v1759, %v1765
        %1768 = vst [vmem:[#allocation2] sm:$0xf] %v1766
        %v1769 = vld [vmem:[#allocation2] sm:$0xf]
        %s1770 = scalar_lea.vmem %s313, 4 [#allocation11]
        %1771 = vst.msk [vmem:[%s1770] sm:$0xf] %vm1097, %v1769
        %v1772 = vld [vmem:[#allocation2] sm:$0xf]
        %v1775 = vunpack.c.l.s4 1983009808
        %v1776 = vunpack.c.0.s8 %v1775
        %v1777 = vlaneseq
        %v1778 = vshrl.u32 %v1777, 7
        %v1779 = vsub.s32 %v1776, %v1778
        %v1780 = vrot.slane %v1772, %v1779
        %v1781 = vcombine.high %v1780, %v1780
        %v1784 = vpack.c.bf16 %v1780, %v1780
        %v1785 = vpack.c.bf16 %v1781, %v1781
        %1786 = vmatprep.subr.bf16.mxu0 %v1221
        %1787 = vmatpush1.bf16.msra.mxu0 %v1220
        %1788 = vmatprep.subr.bf16.mxu0 %v1223
        %1789 = vmatpush1.bf16.msra.mxu0 %v1222
        %1790 = vmatprep.subr.bf16.mxu0 %v1225
        %1791 = vmatpush1.bf16.msra.mxu0 %v1224
        %1792 = vmatprep.subr.bf16.mxu0 %v1227
        %1793 = vmatpush1.bf16.msra.mxu0 %v1226
        %1794 = vmatprep.subr.bf16.mxu0 %v1229
        %1795 = vmatpush1.bf16.msra.mxu0 %v1228
        %1796 = vmatprep.subr.bf16.mxu0 %v1231
        %1797 = vmatpush1.bf16.msra.mxu0 %v1230
        %1798 = vmatprep.subr.bf16.mxu0 %v1233
        %1799 = vmatpush1.bf16.msra.mxu0 %v1232
        %1800 = vmatprep.subr.bf16.mxu0 %v1235
        %1801 = vmatpush1.bf16.msra.mxu0 %v1234
        %1802 = vmatprep.subr.bf16.mxu0 %v1237
        %1803 = vmatpush1.bf16.msra.mxu0 %v1236
        %1804 = vmatprep.subr.bf16.mxu0 %v1239
        %1805 = vmatpush1.bf16.msra.mxu0 %v1238
        %1806 = vmatprep.subr.bf16.mxu0 %v1241
        %1807 = vmatpush1.bf16.msra.mxu0 %v1240
        %1808 = vmatprep.subr.bf16.mxu0 %v1243
        %1809 = vmatpush1.bf16.msra.mxu0 %v1242
        %1810 = vmatprep.subr.bf16.mxu0 %v1245
        %1811 = vmatpush1.bf16.msra.mxu0 %v1244
        %1812 = vmatprep.subr.bf16.mxu0 %v1247
        %1813 = vmatpush1.bf16.msra.mxu0 %v1246
        %1814 = vmatprep.subr.bf16.mxu0 %v1249
        %1815 = vmatpush1.bf16.msra.mxu0 %v1248
        %1816 = vmatprep.subr.bf16.mxu0 %v1251
        %1817 = vmatpush1.bf16.msra.mxu0 %v1250
        %1818 = vmatprep.mubr.bf16.mxu0 %v1785
        %1819 = vmatmul.mubr.bf16.gmra.mrb[0].mxu0 %v1784
        %v1820 = vpop.f32.mrb[0].mxu0
        %v1821 = vadd.f32 %v1117, %v1820
        %v1822 = vpop.f32.mrb[0].mxu0
        %v1823 = vadd.f32 %v1121, %v1822
        %v1824 = vpop.f32.mrb[0].mxu0
        %v1825 = vpop.f32.mrb[0].mxu0
        %1826 = vdwg.mxu0
        %v1827 = vtanh.pop %v1821
        %v1828 = vtanh.pop %v1823
        %v1829 = vpack.c.bf16 %v1827, %v1827
        %v1830 = vpack.c.bf16 %v1828, %v1828
        %1831 = vmatprep.subr.bf16.mxu0 %v1437
        %1832 = vmatpush1.bf16.msra.mxu0 %v1436
        %1833 = vmatprep.subr.bf16.mxu0 %v1439
        %1834 = vmatpush1.bf16.msra.mxu0 %v1438
        %1835 = vmatprep.subr.bf16.mxu0 %v1441
        %1836 = vmatpush1.bf16.msra.mxu0 %v1440
        %1837 = vmatprep.subr.bf16.mxu0 %v1443
        %1838 = vmatpush1.bf16.msra.mxu0 %v1442
        %1839 = vmatprep.subr.bf16.mxu0 %v1445
        %1840 = vmatpush1.bf16.msra.mxu0 %v1444
        %1841 = vmatprep.subr.bf16.mxu0 %v1447
        %1842 = vmatpush1.bf16.msra.mxu0 %v1446
        %1843 = vmatprep.subr.bf16.mxu0 %v1449
        %1844 = vmatpush1.bf16.msra.mxu0 %v1448
        %1845 = vmatprep.subr.bf16.mxu0 %v1451
        %1846 = vmatpush1.bf16.msra.mxu0 %v1450
        %1847 = vmatprep.subr.bf16.mxu0 %v1453
        %1848 = vmatpush1.bf16.msra.mxu0 %v1452
        %1849 = vmatprep.subr.bf16.mxu0 %v1455
        %1850 = vmatpush1.bf16.msra.mxu0 %v1454
        %1851 = vmatprep.subr.bf16.mxu0 %v1457
        %1852 = vmatpush1.bf16.msra.mxu0 %v1456
        %1853 = vmatprep.subr.bf16.mxu0 %v1459
        %1854 = vmatpush1.bf16.msra.mxu0 %v1458
        %1855 = vmatprep.subr.bf16.mxu0 %v1461
        %1856 = vmatpush1.bf16.msra.mxu0 %v1460
        %1857 = vmatprep.subr.bf16.mxu0 %v1463
        %1858 = vmatpush1.bf16.msra.mxu0 %v1462
        %1859 = vmatprep.subr.bf16.mxu0 %v1465
        %1860 = vmatpush1.bf16.msra.mxu0 %v1464
        %1861 = vmatprep.subr.bf16.mxu0 %v1467
        %1862 = vmatpush1.bf16.msra.mxu0 %v1466
        %1863 = vmatprep.mubr.bf16.mxu0 %v1830
        %1864 = vmatmul.mubr.bf16.gmra.mrb[0].mxu0 %v1829
        %v1865 = vpop.f32.mrb[0].mxu0
        %v1866 = vadd.f32 %v1333, %v1865
        %v1867 = vpop.f32.mrb[0].mxu0
        %v1868 = vadd.f32 %v1337, %v1867
        %v1869 = vpop.f32.mrb[0].mxu0
        %v1870 = vpop.f32.mrb[0].mxu0
        %1871 = vdwg.mxu0
        %v1872 = vtanh.pop %v1866
        %v1873 = vtanh.pop %v1868
        %v1874 = vpack.c.bf16 %v1872, %v1872
        %v1875 = vpack.c.bf16 %v1873, %v1873
        %1876 = vmatprep.subr.bf16.mxu0 %v1653
        %1877 = vmatpush1.bf16.msra.mxu0 %v1652
        %1878 = vmatprep.subr.bf16.mxu0 %v1655
        %1879 = vmatpush1.bf16.msra.mxu0 %v1654
        %1880 = vmatprep.subr.bf16.mxu0 %v1657
        %1881 = vmatpush1.bf16.msra.mxu0 %v1656
        %1882 = vmatprep.subr.bf16.mxu0 %v1659
        %1883 = vmatpush1.bf16.msra.mxu0 %v1658
        %1884 = vmatprep.subr.bf16.mxu0 %v1661
        %1885 = vmatpush1.bf16.msra.mxu0 %v1660
        %1886 = vmatprep.subr.bf16.mxu0 %v1663
        %1887 = vmatpush1.bf16.msra.mxu0 %v1662
        %1888 = vmatprep.subr.bf16.mxu0 %v1665
        %1889 = vmatpush1.bf16.msra.mxu0 %v1664
        %1890 = vmatprep.subr.bf16.mxu0 %v1667
        %1891 = vmatpush1.bf16.msra.mxu0 %v1666
        %1892 = vmatprep.subr.bf16.mxu0 %v1669
        %1893 = vmatpush1.bf16.msra.mxu0 %v1668
        %1894 = vmatprep.subr.bf16.mxu0 %v1671
        %1895 = vmatpush1.bf16.msra.mxu0 %v1670
        %1896 = vmatprep.subr.bf16.mxu0 %v1673
        %1897 = vmatpush1.bf16.msra.mxu0 %v1672
        %1898 = vmatprep.subr.bf16.mxu0 %v1675
        %1899 = vmatpush1.bf16.msra.mxu0 %v1674
        %1900 = vmatprep.subr.bf16.mxu0 %v1677
        %1901 = vmatpush1.bf16.msra.mxu0 %v1676
        %1902 = vmatprep.subr.bf16.mxu0 %v1679
        %1903 = vmatpush1.bf16.msra.mxu0 %v1678
        %1904 = vmatprep.subr.bf16.mxu0 %v1681
        %1905 = vmatpush1.bf16.msra.mxu0 %v1680
        %1906 = vmatprep.subr.bf16.mxu0 %v1683
        %1907 = vmatpush1.bf16.msra.mxu0 %v1682
        %1908 = vmatprep.mubr.bf16.mxu0 %v1875
        %1909 = vmatmul.mubr.bf16.gmra.mrb[0].mxu0 %v1874
        %v1910 = vpop.f32.mrb[0].mxu0
        %v1911 = vadd.f32 %v1549, %v1910
        %v1912 = vpop.f32.mrb[0].mxu0
        %v1913 = vadd.f32 %v1553, %v1912
        %v1914 = vpop.f32.mrb[0].mxu0
        %v1915 = vpop.f32.mrb[0].mxu0
        %1916 = vdwg.mxu0
        %v1919 = vcombine.low %v1911, %v1913
        %v1921 = vunpack.c.l.s4 1983009808
        %v1922 = vunpack.c.0.s8 %v1921
        %v1923 = vlaneseq
        %v1924 = vshrl.u32 %v1923, 7
        %v1925 = vsub.s32 %v1922, %v1924
        %v1926 = vrot.slane %v1919, %v1925
        %1928 = vst [vmem:[#allocation2] sm:$0xf] %v1926
        %v1929 = vld [vmem:[#allocation2] sm:$0xf]
        %s1930 = scalar_lea.vmem %s313, 8 [#allocation11]
        %1931 = vst.msk [vmem:[%s1930] sm:$0xf] %vm1097, %v1929
        %v1932 = vld [vmem:[#allocation2] sm:$0xf]
        %v1935 = vunpack.c.l.s4 1983009808
        %v1936 = vunpack.c.0.s8 %v1935
        %v1937 = vlaneseq
        %v1938 = vshrl.u32 %v1937, 7
        %v1939 = vsub.s32 %v1936, %v1938
        %v1940 = vrot.slane %v1932, %v1939
        %v1941 = vcombine.high %v1940, %v1940
        %v1944 = vpack.c.bf16 %v1940, %v1940
        %v1945 = vpack.c.bf16 %v1941, %v1941
        %1946 = vmatprep.subr.bf16.mxu0 %v1221
        %1947 = vmatpush1.bf16.msra.mxu0 %v1220
        %1948 = vmatprep.subr.bf16.mxu0 %v1223
        %1949 = vmatpush1.bf16.msra.mxu0 %v1222
        %1950 = vmatprep.subr.bf16.mxu0 %v1225
        %1951 = vmatpush1.bf16.msra.mxu0 %v1224
        %1952 = vmatprep.subr.bf16.mxu0 %v1227
        %1953 = vmatpush1.bf16.msra.mxu0 %v1226
        %1954 = vmatprep.subr.bf16.mxu0 %v1229
        %1955 = vmatpush1.bf16.msra.mxu0 %v1228
        %1956 = vmatprep.subr.bf16.mxu0 %v1231
        %1957 = vmatpush1.bf16.msra.mxu0 %v1230
        %1958 = vmatprep.subr.bf16.mxu0 %v1233
        %1959 = vmatpush1.bf16.msra.mxu0 %v1232
        %1960 = vmatprep.subr.bf16.mxu0 %v1235
        %1961 = vmatpush1.bf16.msra.mxu0 %v1234
        %1962 = vmatprep.subr.bf16.mxu0 %v1237
        %1963 = vmatpush1.bf16.msra.mxu0 %v1236
        %1964 = vmatprep.subr.bf16.mxu0 %v1239
        %1965 = vmatpush1.bf16.msra.mxu0 %v1238
        %1966 = vmatprep.subr.bf16.mxu0 %v1241
        %1967 = vmatpush1.bf16.msra.mxu0 %v1240
        %1968 = vmatprep.subr.bf16.mxu0 %v1243
        %1969 = vmatpush1.bf16.msra.mxu0 %v1242
        %1970 = vmatprep.subr.bf16.mxu0 %v1245
        %1971 = vmatpush1.bf16.msra.mxu0 %v1244
        %1972 = vmatprep.subr.bf16.mxu0 %v1247
        %1973 = vmatpush1.bf16.msra.mxu0 %v1246
        %1974 = vmatprep.subr.bf16.mxu0 %v1249
        %1975 = vmatpush1.bf16.msra.mxu0 %v1248
        %1976 = vmatprep.subr.bf16.mxu0 %v1251
        %1977 = vmatpush1.bf16.msra.mxu0 %v1250
        %1978 = vmatprep.mubr.bf16.mxu0 %v1945
        %1979 = vmatmul.mubr.bf16.gmra.mrb[0].mxu0 %v1944
        %v1980 = vpop.f32.mrb[0].mxu0
        %v1981 = vadd.f32 %v1117, %v1980
        %v1982 = vpop.f32.mrb[0].mxu0
        %v1983 = vadd.f32 %v1121, %v1982
        %v1984 = vpop.f32.mrb[0].mxu0
        %v1985 = vpop.f32.mrb[0].mxu0
        %1986 = vdwg.mxu0
        %v1987 = vtanh.pop %v1981
        %v1988 = vtanh.pop %v1983
        %v1989 = vpack.c.bf16 %v1987, %v1987
        %v1990 = vpack.c.bf16 %v1988, %v1988
        %1991 = vmatprep.subr.bf16.mxu0 %v1437
        %1992 = vmatpush1.bf16.msra.mxu0 %v1436
        %1993 = vmatprep.subr.bf16.mxu0 %v1439
        %1994 = vmatpush1.bf16.msra.mxu0 %v1438
        %1995 = vmatprep.subr.bf16.mxu0 %v1441
        %1996 = vmatpush1.bf16.msra.mxu0 %v1440
        %1997 = vmatprep.subr.bf16.mxu0 %v1443
        %1998 = vmatpush1.bf16.msra.mxu0 %v1442
        %1999 = vmatprep.subr.bf16.mxu0 %v1445
        %2000 = vmatpush1.bf16.msra.mxu0 %v1444
        %2001 = vmatprep.subr.bf16.mxu0 %v1447
        %2002 = vmatpush1.bf16.msra.mxu0 %v1446
        %2003 = vmatprep.subr.bf16.mxu0 %v1449
        %2004 = vmatpush1.bf16.msra.mxu0 %v1448
        %2005 = vmatprep.subr.bf16.mxu0 %v1451
        %2006 = vmatpush1.bf16.msra.mxu0 %v1450
        %2007 = vmatprep.subr.bf16.mxu0 %v1453
        %2008 = vmatpush1.bf16.msra.mxu0 %v1452
        %2009 = vmatprep.subr.bf16.mxu0 %v1455
        %2010 = vmatpush1.bf16.msra.mxu0 %v1454
        %2011 = vmatprep.subr.bf16.mxu0 %v1457
        %2012 = vmatpush1.bf16.msra.mxu0 %v1456
        %2013 = vmatprep.subr.bf16.mxu0 %v1459
        %2014 = vmatpush1.bf16.msra.mxu0 %v1458
        %2015 = vmatprep.subr.bf16.mxu0 %v1461
        %2016 = vmatpush1.bf16.msra.mxu0 %v1460
        %2017 = vmatprep.subr.bf16.mxu0 %v1463
        %2018 = vmatpush1.bf16.msra.mxu0 %v1462
        %2019 = vmatprep.subr.bf16.mxu0 %v1465
        %2020 = vmatpush1.bf16.msra.mxu0 %v1464
        %2021 = vmatprep.subr.bf16.mxu0 %v1467
        %2022 = vmatpush1.bf16.msra.mxu0 %v1466
        %2023 = vmatprep.mubr.bf16.mxu0 %v1990
        %2024 = vmatmul.mubr.bf16.gmra.mrb[0].mxu0 %v1989
        %v2025 = vpop.f32.mrb[0].mxu0
        %v2026 = vadd.f32 %v1333, %v2025
        %v2027 = vpop.f32.mrb[0].mxu0
        %v2028 = vadd.f32 %v1337, %v2027
        %v2029 = vpop.f32.mrb[0].mxu0
        %v2030 = vpop.f32.mrb[0].mxu0
        %2031 = vdwg.mxu0
        %v2032 = vtanh.pop %v2026
        %v2033 = vtanh.pop %v2028
        %v2034 = vpack.c.bf16 %v2032, %v2032
        %v2035 = vpack.c.bf16 %v2033, %v2033
        %2036 = vmatprep.subr.bf16.mxu0 %v1653
        %2037 = vmatpush1.bf16.msra.mxu0 %v1652
        %2038 = vmatprep.subr.bf16.mxu0 %v1655
        %2039 = vmatpush1.bf16.msra.mxu0 %v1654
        %2040 = vmatprep.subr.bf16.mxu0 %v1657
        %2041 = vmatpush1.bf16.msra.mxu0 %v1656
        %2042 = vmatprep.subr.bf16.mxu0 %v1659
        %2043 = vmatpush1.bf16.msra.mxu0 %v1658
        %2044 = vmatprep.subr.bf16.mxu0 %v1661
        %2045 = vmatpush1.bf16.msra.mxu0 %v1660
        %2046 = vmatprep.subr.bf16.mxu0 %v1663
        %2047 = vmatpush1.bf16.msra.mxu0 %v1662
        %2048 = vmatprep.subr.bf16.mxu0 %v1665
        %2049 = vmatpush1.bf16.msra.mxu0 %v1664
        %2050 = vmatprep.subr.bf16.mxu0 %v1667
        %2051 = vmatpush1.bf16.msra.mxu0 %v1666
        %2052 = vmatprep.subr.bf16.mxu0 %v1669
        %2053 = vmatpush1.bf16.msra.mxu0 %v1668
        %2054 = vmatprep.subr.bf16.mxu0 %v1671
        %2055 = vmatpush1.bf16.msra.mxu0 %v1670
        %2056 = vmatprep.subr.bf16.mxu0 %v1673
        %2057 = vmatpush1.bf16.msra.mxu0 %v1672
        %2058 = vmatprep.subr.bf16.mxu0 %v1675
        %2059 = vmatpush1.bf16.msra.mxu0 %v1674
        %2060 = vmatprep.subr.bf16.mxu0 %v1677
        %2061 = vmatpush1.bf16.msra.mxu0 %v1676
        %2062 = vmatprep.subr.bf16.mxu0 %v1679
        %2063 = vmatpush1.bf16.msra.mxu0 %v1678
        %2064 = vmatprep.subr.bf16.mxu0 %v1681
        %2065 = vmatpush1.bf16.msra.mxu0 %v1680
        %2066 = vmatprep.subr.bf16.mxu0 %v1683
        %2067 = vmatpush1.bf16.msra.mxu0 %v1682
        %2068 = vmatprep.mubr.bf16.mxu0 %v2035
        %2069 = vmatmul.mubr.bf16.gmra.mrb[0].mxu0 %v2034
        %v2070 = vpop.f32.mrb[0].mxu0
        %v2071 = vadd.f32 %v1549, %v2070
        %v2072 = vpop.f32.mrb[0].mxu0
        %v2073 = vadd.f32 %v1553, %v2072
        %v2074 = vpop.f32.mrb[0].mxu0
        %v2075 = vpop.f32.mrb[0].mxu0
        %2076 = vdwg.mxu0
        %v2079 = vcombine.low %v2071, %v2073
        %v2081 = vunpack.c.l.s4 1983009808
        %v2082 = vunpack.c.0.s8 %v2081
        %v2083 = vlaneseq
        %v2084 = vshrl.u32 %v2083, 7
        %v2085 = vsub.s32 %v2082, %v2084
        %v2086 = vrot.slane %v2079, %v2085
        %2088 = vst [vmem:[#allocation2] sm:$0xf] %v2086
        %v2089 = vld [vmem:[#allocation2] sm:$0xf]
        %s2090 = scalar_lea.vmem %s313, 12 [#allocation11]
        %2091 = vst.msk [vmem:[%s2090] sm:$0xf] %vm1097, %v2089
        %v2092 = vld [vmem:[#allocation2] sm:$0xf]
        %v2095 = vunpack.c.l.s4 1983009808
        %v2096 = vunpack.c.0.s8 %v2095
        %v2097 = vlaneseq
        %v2098 = vshrl.u32 %v2097, 7
        %v2099 = vsub.s32 %v2096, %v2098
        %v2100 = vrot.slane %v2092, %v2099
        %v2101 = vcombine.high %v2100, %v2100
        %v2104 = vpack.c.bf16 %v2100, %v2100
        %v2105 = vpack.c.bf16 %v2101, %v2101
        %2106 = vmatprep.subr.bf16.mxu0 %v1221
        %2107 = vmatpush1.bf16.msra.mxu0 %v1220
        %2108 = vmatprep.subr.bf16.mxu0 %v1223
        %2109 = vmatpush1.bf16.msra.mxu0 %v1222
        %2110 = vmatprep.subr.bf16.mxu0 %v1225
        %2111 = vmatpush1.bf16.msra.mxu0 %v1224
        %2112 = vmatprep.subr.bf16.mxu0 %v1227
        %2113 = vmatpush1.bf16.msra.mxu0 %v1226
        %2114 = vmatprep.subr.bf16.mxu0 %v1229
        %2115 = vmatpush1.bf16.msra.mxu0 %v1228
        %2116 = vmatprep.subr.bf16.mxu0 %v1231
        %2117 = vmatpush1.bf16.msra.mxu0 %v1230
        %2118 = vmatprep.subr.bf16.mxu0 %v1233
        %2119 = vmatpush1.bf16.msra.mxu0 %v1232
        %2120 = vmatprep.subr.bf16.mxu0 %v1235
        %2121 = vmatpush1.bf16.msra.mxu0 %v1234
        %2122 = vmatprep.subr.bf16.mxu0 %v1237
        %2123 = vmatpush1.bf16.msra.mxu0 %v1236
        %2124 = vmatprep.subr.bf16.mxu0 %v1239
        %2125 = vmatpush1.bf16.msra.mxu0 %v1238
        %2126 = vmatprep.subr.bf16.mxu0 %v1241
        %2127 = vmatpush1.bf16.msra.mxu0 %v1240
        %2128 = vmatprep.subr.bf16.mxu0 %v1243
        %2129 = vmatpush1.bf16.msra.mxu0 %v1242
        %2130 = vmatprep.subr.bf16.mxu0 %v1245
        %2131 = vmatpush1.bf16.msra.mxu0 %v1244
        %2132 = vmatprep.subr.bf16.mxu0 %v1247
        %2133 = vmatpush1.bf16.msra.mxu0 %v1246
        %2134 = vmatprep.subr.bf16.mxu0 %v1249
        %2135 = vmatpush1.bf16.msra.mxu0 %v1248
        %2136 = vmatprep.subr.bf16.mxu0 %v1251
        %2137 = vmatpush1.bf16.msra.mxu0 %v1250
        %2138 = vmatprep.mubr.bf16.mxu0 %v2105
        %2139 = vmatmul.mubr.bf16.gmra.mrb[0].mxu0 %v2104
        %v2140 = vpop.f32.mrb[0].mxu0
        %v2141 = vadd.f32 %v1117, %v2140
        %v2142 = vpop.f32.mrb[0].mxu0
        %v2143 = vadd.f32 %v1121, %v2142
        %v2144 = vpop.f32.mrb[0].mxu0
        %v2145 = vpop.f32.mrb[0].mxu0
        %2146 = vdwg.mxu0
        %v2147 = vtanh.pop %v2141
        %v2148 = vtanh.pop %v2143
        %v2149 = vpack.c.bf16 %v2147, %v2147
        %v2150 = vpack.c.bf16 %v2148, %v2148
        %2151 = vmatprep.subr.bf16.mxu0 %v1437
        %2152 = vmatpush1.bf16.msra.mxu0 %v1436
        %2153 = vmatprep.subr.bf16.mxu0 %v1439
        %2154 = vmatpush1.bf16.msra.mxu0 %v1438
        %2155 = vmatprep.subr.bf16.mxu0 %v1441
        %2156 = vmatpush1.bf16.msra.mxu0 %v1440
        %2157 = vmatprep.subr.bf16.mxu0 %v1443
        %2158 = vmatpush1.bf16.msra.mxu0 %v1442
        %2159 = vmatprep.subr.bf16.mxu0 %v1445
        %2160 = vmatpush1.bf16.msra.mxu0 %v1444
        %2161 = vmatprep.subr.bf16.mxu0 %v1447
        %2162 = vmatpush1.bf16.msra.mxu0 %v1446
        %2163 = vmatprep.subr.bf16.mxu0 %v1449
        %2164 = vmatpush1.bf16.msra.mxu0 %v1448
        %2165 = vmatprep.subr.bf16.mxu0 %v1451
        %2166 = vmatpush1.bf16.msra.mxu0 %v1450
        %2167 = vmatprep.subr.bf16.mxu0 %v1453
        %2168 = vmatpush1.bf16.msra.mxu0 %v1452
        %2169 = vmatprep.subr.bf16.mxu0 %v1455
        %2170 = vmatpush1.bf16.msra.mxu0 %v1454
        %2171 = vmatprep.subr.bf16.mxu0 %v1457
        %2172 = vmatpush1.bf16.msra.mxu0 %v1456
        %2173 = vmatprep.subr.bf16.mxu0 %v1459
        %2174 = vmatpush1.bf16.msra.mxu0 %v1458
        %2175 = vmatprep.subr.bf16.mxu0 %v1461
        %2176 = vmatpush1.bf16.msra.mxu0 %v1460
        %2177 = vmatprep.subr.bf16.mxu0 %v1463
        %2178 = vmatpush1.bf16.msra.mxu0 %v1462
        %2179 = vmatprep.subr.bf16.mxu0 %v1465
        %2180 = vmatpush1.bf16.msra.mxu0 %v1464
        %2181 = vmatprep.subr.bf16.mxu0 %v1467
        %2182 = vmatpush1.bf16.msra.mxu0 %v1466
        %2183 = vmatprep.mubr.bf16.mxu0 %v2150
        %2184 = vmatmul.mubr.bf16.gmra.mrb[0].mxu0 %v2149
        %v2185 = vpop.f32.mrb[0].mxu0
        %v2186 = vadd.f32 %v1333, %v2185
        %v2187 = vpop.f32.mrb[0].mxu0
        %v2188 = vadd.f32 %v1337, %v2187
        %v2189 = vpop.f32.mrb[0].mxu0
        %v2190 = vpop.f32.mrb[0].mxu0
        %2191 = vdwg.mxu0
        %v2192 = vtanh.pop %v2186
        %v2193 = vtanh.pop %v2188
        %v2194 = vpack.c.bf16 %v2192, %v2192
        %v2195 = vpack.c.bf16 %v2193, %v2193
        %2196 = vmatprep.subr.bf16.mxu0 %v1653
        %2197 = vmatpush1.bf16.msra.mxu0 %v1652
        %2198 = vmatprep.subr.bf16.mxu0 %v1655
        %2199 = vmatpush1.bf16.msra.mxu0 %v1654
        %2200 = vmatprep.subr.bf16.mxu0 %v1657
        %2201 = vmatpush1.bf16.msra.mxu0 %v1656
        %2202 = vmatprep.subr.bf16.mxu0 %v1659
        %2203 = vmatpush1.bf16.msra.mxu0 %v1658
        %2204 = vmatprep.subr.bf16.mxu0 %v1661
        %2205 = vmatpush1.bf16.msra.mxu0 %v1660
        %2206 = vmatprep.subr.bf16.mxu0 %v1663
        %2207 = vmatpush1.bf16.msra.mxu0 %v1662
        %2208 = vmatprep.subr.bf16.mxu0 %v1665
        %2209 = vmatpush1.bf16.msra.mxu0 %v1664
        %2210 = vmatprep.subr.bf16.mxu0 %v1667
        %2211 = vmatpush1.bf16.msra.mxu0 %v1666
        %2212 = vmatprep.subr.bf16.mxu0 %v1669
        %2213 = vmatpush1.bf16.msra.mxu0 %v1668
        %2214 = vmatprep.subr.bf16.mxu0 %v1671
        %2215 = vmatpush1.bf16.msra.mxu0 %v1670
        %2216 = vmatprep.subr.bf16.mxu0 %v1673
        %2217 = vmatpush1.bf16.msra.mxu0 %v1672
        %2218 = vmatprep.subr.bf16.mxu0 %v1675
        %2219 = vmatpush1.bf16.msra.mxu0 %v1674
        %2220 = vmatprep.subr.bf16.mxu0 %v1677
        %2221 = vmatpush1.bf16.msra.mxu0 %v1676
        %2222 = vmatprep.subr.bf16.mxu0 %v1679
        %2223 = vmatpush1.bf16.msra.mxu0 %v1678
        %2224 = vmatprep.subr.bf16.mxu0 %v1681
        %2225 = vmatpush1.bf16.msra.mxu0 %v1680
        %2226 = vmatprep.subr.bf16.mxu0 %v1683
        %2227 = vmatpush1.bf16.msra.mxu0 %v1682
        %2228 = vmatprep.mubr.bf16.mxu0 %v2195
        %2229 = vmatmul.mubr.bf16.gmra.mrb[0].mxu0 %v2194
        %v2230 = vpop.f32.mrb[0].mxu0
        %v2231 = vadd.f32 %v1549, %v2230
        %v2232 = vpop.f32.mrb[0].mxu0
        %v2233 = vadd.f32 %v1553, %v2232
        %v2234 = vpop.f32.mrb[0].mxu0
        %v2235 = vpop.f32.mrb[0].mxu0
        %2236 = vdwg.mxu0
        %v2239 = vcombine.low %v2231, %v2233
        %v2241 = vunpack.c.l.s4 1983009808
        %v2242 = vunpack.c.0.s8 %v2241
        %v2243 = vlaneseq
        %v2244 = vshrl.u32 %v2243, 7
        %v2245 = vsub.s32 %v2242, %v2244
        %v2246 = vrot.slane %v2239, %v2245
        %2248 = vst [vmem:[#allocation2] sm:$0xf] %v2246
        %v2249 = vld [vmem:[#allocation2] sm:$0xf]
        %s2250 = scalar_lea.vmem %s313, 16 [#allocation11]
        %2251 = vst.msk [vmem:[%s2250] sm:$0xf] %vm1097, %v2249
        %v2252 = vld [vmem:[#allocation2] sm:$0xf]
        %v2255 = vunpack.c.l.s4 1983009808
        %v2256 = vunpack.c.0.s8 %v2255
        %v2257 = vlaneseq
        %v2258 = vshrl.u32 %v2257, 7
        %v2259 = vsub.s32 %v2256, %v2258
        %v2260 = vrot.slane %v2252, %v2259
        %v2261 = vcombine.high %v2260, %v2260
        %v2264 = vpack.c.bf16 %v2260, %v2260
        %v2265 = vpack.c.bf16 %v2261, %v2261
        %2266 = vmatprep.subr.bf16.mxu0 %v1221
        %2267 = vmatpush1.bf16.msra.mxu0 %v1220
        %2268 = vmatprep.subr.bf16.mxu0 %v1223
        %2269 = vmatpush1.bf16.msra.mxu0 %v1222
        %2270 = vmatprep.subr.bf16.mxu0 %v1225
        %2271 = vmatpush1.bf16.msra.mxu0 %v1224
        %2272 = vmatprep.subr.bf16.mxu0 %v1227
        %2273 = vmatpush1.bf16.msra.mxu0 %v1226
        %2274 = vmatprep.subr.bf16.mxu0 %v1229
        %2275 = vmatpush1.bf16.msra.mxu0 %v1228
        %2276 = vmatprep.subr.bf16.mxu0 %v1231
        %2277 = vmatpush1.bf16.msra.mxu0 %v1230
        %2278 = vmatprep.subr.bf16.mxu0 %v1233
        %2279 = vmatpush1.bf16.msra.mxu0 %v1232
        %2280 = vmatprep.subr.bf16.mxu0 %v1235
        %2281 = vmatpush1.bf16.msra.mxu0 %v1234
        %2282 = vmatprep.subr.bf16.mxu0 %v1237
        %2283 = vmatpush1.bf16.msra.mxu0 %v1236
        %2284 = vmatprep.subr.bf16.mxu0 %v1239
        %2285 = vmatpush1.bf16.msra.mxu0 %v1238
        %2286 = vmatprep.subr.bf16.mxu0 %v1241
        %2287 = vmatpush1.bf16.msra.mxu0 %v1240
        %2288 = vmatprep.subr.bf16.mxu0 %v1243
        %2289 = vmatpush1.bf16.msra.mxu0 %v1242
        %2290 = vmatprep.subr.bf16.mxu0 %v1245
        %2291 = vmatpush1.bf16.msra.mxu0 %v1244
        %2292 = vmatprep.subr.bf16.mxu0 %v1247
        %2293 = vmatpush1.bf16.msra.mxu0 %v1246
        %2294 = vmatprep.subr.bf16.mxu0 %v1249
        %2295 = vmatpush1.bf16.msra.mxu0 %v1248
        %2296 = vmatprep.subr.bf16.mxu0 %v1251
        %2297 = vmatpush1.bf16.msra.mxu0 %v1250
        %2298 = vmatprep.mubr.bf16.mxu0 %v2265
        %2299 = vmatmul.mubr.bf16.gmra.mrb[0].mxu0 %v2264
        %v2300 = vpop.f32.mrb[0].mxu0
        %v2301 = vadd.f32 %v1117, %v2300
        %v2302 = vpop.f32.mrb[0].mxu0
        %v2303 = vadd.f32 %v1121, %v2302
        %v2304 = vpop.f32.mrb[0].mxu0
        %v2305 = vpop.f32.mrb[0].mxu0
        %2306 = vdwg.mxu0
        %v2307 = vtanh.pop %v2301
        %v2308 = vtanh.pop %v2303
        %v2309 = vpack.c.bf16 %v2307, %v2307
        %v2310 = vpack.c.bf16 %v2308, %v2308
        %2311 = vmatprep.subr.bf16.mxu0 %v1437
        %2312 = vmatpush1.bf16.msra.mxu0 %v1436
        %2313 = vmatprep.subr.bf16.mxu0 %v1439
        %2314 = vmatpush1.bf16.msra.mxu0 %v1438
        %2315 = vmatprep.subr.bf16.mxu0 %v1441
        %2316 = vmatpush1.bf16.msra.mxu0 %v1440
        %2317 = vmatprep.subr.bf16.mxu0 %v1443
        %2318 = vmatpush1.bf16.msra.mxu0 %v1442
        %2319 = vmatprep.subr.bf16.mxu0 %v1445
        %2320 = vmatpush1.bf16.msra.mxu0 %v1444
        %2321 = vmatprep.subr.bf16.mxu0 %v1447
        %2322 = vmatpush1.bf16.msra.mxu0 %v1446
        %2323 = vmatprep.subr.bf16.mxu0 %v1449
        %2324 = vmatpush1.bf16.msra.mxu0 %v1448
        %2325 = vmatprep.subr.bf16.mxu0 %v1451
        %2326 = vmatpush1.bf16.msra.mxu0 %v1450
        %2327 = vmatprep.subr.bf16.mxu0 %v1453
        %2328 = vmatpush1.bf16.msra.mxu0 %v1452
        %2329 = vmatprep.subr.bf16.mxu0 %v1455
        %2330 = vmatpush1.bf16.msra.mxu0 %v1454
        %2331 = vmatprep.subr.bf16.mxu0 %v1457
        %2332 = vmatpush1.bf16.msra.mxu0 %v1456
        %2333 = vmatprep.subr.bf16.mxu0 %v1459
        %2334 = vmatpush1.bf16.msra.mxu0 %v1458
        %2335 = vmatprep.subr.bf16.mxu0 %v1461
        %2336 = vmatpush1.bf16.msra.mxu0 %v1460
        %2337 = vmatprep.subr.bf16.mxu0 %v1463
        %2338 = vmatpush1.bf16.msra.mxu0 %v1462
        %2339 = vmatprep.subr.bf16.mxu0 %v1465
        %2340 = vmatpush1.bf16.msra.mxu0 %v1464
        %2341 = vmatprep.subr.bf16.mxu0 %v1467
        %2342 = vmatpush1.bf16.msra.mxu0 %v1466
        %2343 = vmatprep.mubr.bf16.mxu0 %v2310
        %2344 = vmatmul.mubr.bf16.gmra.mrb[0].mxu0 %v2309
        %v2345 = vpop.f32.mrb[0].mxu0
        %v2346 = vadd.f32 %v1333, %v2345
        %v2347 = vpop.f32.mrb[0].mxu0
        %v2348 = vadd.f32 %v1337, %v2347
        %v2349 = vpop.f32.mrb[0].mxu0
        %v2350 = vpop.f32.mrb[0].mxu0
        %2351 = vdwg.mxu0
        %v2352 = vtanh.pop %v2346
        %v2353 = vtanh.pop %v2348
        %v2354 = vpack.c.bf16 %v2352, %v2352
        %v2355 = vpack.c.bf16 %v2353, %v2353
        %2356 = vmatprep.subr.bf16.mxu0 %v1653
        %2357 = vmatpush1.bf16.msra.mxu0 %v1652
        %2358 = vmatprep.subr.bf16.mxu0 %v1655
        %2359 = vmatpush1.bf16.msra.mxu0 %v1654
        %2360 = vmatprep.subr.bf16.mxu0 %v1657
        %2361 = vmatpush1.bf16.msra.mxu0 %v1656
        %2362 = vmatprep.subr.bf16.mxu0 %v1659
        %2363 = vmatpush1.bf16.msra.mxu0 %v1658
        %2364 = vmatprep.subr.bf16.mxu0 %v1661
        %2365 = vmatpush1.bf16.msra.mxu0 %v1660
        %2366 = vmatprep.subr.bf16.mxu0 %v1663
        %2367 = vmatpush1.bf16.msra.mxu0 %v1662
        %2368 = vmatprep.subr.bf16.mxu0 %v1665
        %2369 = vmatpush1.bf16.msra.mxu0 %v1664
        %2370 = vmatprep.subr.bf16.mxu0 %v1667
        %2371 = vmatpush1.bf16.msra.mxu0 %v1666
        %2372 = vmatprep.subr.bf16.mxu0 %v1669
        %2373 = vmatpush1.bf16.msra.mxu0 %v1668
        %2374 = vmatprep.subr.bf16.mxu0 %v1671
        %2375 = vmatpush1.bf16.msra.mxu0 %v1670
        %2376 = vmatprep.subr.bf16.mxu0 %v1673
        %2377 = vmatpush1.bf16.msra.mxu0 %v1672
        %2378 = vmatprep.subr.bf16.mxu0 %v1675
        %2379 = vmatpush1.bf16.msra.mxu0 %v1674
        %2380 = vmatprep.subr.bf16.mxu0 %v1677
        %2381 = vmatpush1.bf16.msra.mxu0 %v1676
        %2382 = vmatprep.subr.bf16.mxu0 %v1679
        %2383 = vmatpush1.bf16.msra.mxu0 %v1678
        %2384 = vmatprep.subr.bf16.mxu0 %v1681
        %2385 = vmatpush1.bf16.msra.mxu0 %v1680
        %2386 = vmatprep.subr.bf16.mxu0 %v1683
        %2387 = vmatpush1.bf16.msra.mxu0 %v1682
        %2388 = vmatprep.mubr.bf16.mxu0 %v2355
        %2389 = vmatmul.mubr.bf16.gmra.mrb[0].mxu0 %v2354
        %v2390 = vpop.f32.mrb[0].mxu0
        %v2391 = vadd.f32 %v1549, %v2390
        %v2392 = vpop.f32.mrb[0].mxu0
        %v2393 = vadd.f32 %v1553, %v2392
        %v2394 = vpop.f32.mrb[0].mxu0
        %v2395 = vpop.f32.mrb[0].mxu0
        %2396 = vdwg.mxu0
        %v2399 = vcombine.low %v2391, %v2393
        %v2401 = vunpack.c.l.s4 1983009808
        %v2402 = vunpack.c.0.s8 %v2401
        %v2403 = vlaneseq
        %v2404 = vshrl.u32 %v2403, 7
        %v2405 = vsub.s32 %v2402, %v2404
        %v2406 = vrot.slane %v2399, %v2405
        %2408 = vst [vmem:[#allocation2] sm:$0xf] %v2406
        %v2409 = vld [vmem:[#allocation2] sm:$0xf]
        %s2410 = scalar_lea.vmem %s313, 20 [#allocation11]
        %2411 = vst.msk [vmem:[%s2410] sm:$0xf] %vm1097, %v2409
        %v2412 = vld [vmem:[#allocation2] sm:$0xf]
        %v2415 = vunpack.c.l.s4 1983009808
        %v2416 = vunpack.c.0.s8 %v2415
        %v2417 = vlaneseq
        %v2418 = vshrl.u32 %v2417, 7
        %v2419 = vsub.s32 %v2416, %v2418
        %v2420 = vrot.slane %v2412, %v2419
        %v2421 = vcombine.high %v2420, %v2420
        %v2424 = vpack.c.bf16 %v2420, %v2420
        %v2425 = vpack.c.bf16 %v2421, %v2421
        %2426 = vmatprep.subr.bf16.mxu0 %v1221
        %2427 = vmatpush1.bf16.msra.mxu0 %v1220
        %2428 = vmatprep.subr.bf16.mxu0 %v1223
        %2429 = vmatpush1.bf16.msra.mxu0 %v1222
        %2430 = vmatprep.subr.bf16.mxu0 %v1225
        %2431 = vmatpush1.bf16.msra.mxu0 %v1224
        %2432 = vmatprep.subr.bf16.mxu0 %v1227
        %2433 = vmatpush1.bf16.msra.mxu0 %v1226
        %2434 = vmatprep.subr.bf16.mxu0 %v1229
        %2435 = vmatpush1.bf16.msra.mxu0 %v1228
        %2436 = vmatprep.subr.bf16.mxu0 %v1231
        %2437 = vmatpush1.bf16.msra.mxu0 %v1230
        %2438 = vmatprep.subr.bf16.mxu0 %v1233
        %2439 = vmatpush1.bf16.msra.mxu0 %v1232
        %2440 = vmatprep.subr.bf16.mxu0 %v1235
        %2441 = vmatpush1.bf16.msra.mxu0 %v1234
        %2442 = vmatprep.subr.bf16.mxu0 %v1237
        %2443 = vmatpush1.bf16.msra.mxu0 %v1236
        %2444 = vmatprep.subr.bf16.mxu0 %v1239
        %2445 = vmatpush1.bf16.msra.mxu0 %v1238
        %2446 = vmatprep.subr.bf16.mxu0 %v1241
        %2447 = vmatpush1.bf16.msra.mxu0 %v1240
        %2448 = vmatprep.subr.bf16.mxu0 %v1243
        %2449 = vmatpush1.bf16.msra.mxu0 %v1242
        %2450 = vmatprep.subr.bf16.mxu0 %v1245
        %2451 = vmatpush1.bf16.msra.mxu0 %v1244
        %2452 = vmatprep.subr.bf16.mxu0 %v1247
        %2453 = vmatpush1.bf16.msra.mxu0 %v1246
        %2454 = vmatprep.subr.bf16.mxu0 %v1249
        %2455 = vmatpush1.bf16.msra.mxu0 %v1248
        %2456 = vmatprep.subr.bf16.mxu0 %v1251
        %2457 = vmatpush1.bf16.msra.mxu0 %v1250
        %2458 = vmatprep.mubr.bf16.mxu0 %v2425
        %2459 = vmatmul.mubr.bf16.gmra.mrb[0].mxu0 %v2424
        %v2460 = vpop.f32.mrb[0].mxu0
        %v2461 = vadd.f32 %v1117, %v2460
        %v2462 = vpop.f32.mrb[0].mxu0
        %v2463 = vadd.f32 %v1121, %v2462
        %v2464 = vpop.f32.mrb[0].mxu0
        %v2465 = vpop.f32.mrb[0].mxu0
        %2466 = vdwg.mxu0
        %v2467 = vtanh.pop %v2461
        %v2468 = vtanh.pop %v2463
        %v2469 = vpack.c.bf16 %v2467, %v2467
        %v2470 = vpack.c.bf16 %v2468, %v2468
        %2471 = vmatprep.subr.bf16.mxu0 %v1437
        %2472 = vmatpush1.bf16.msra.mxu0 %v1436
        %2473 = vmatprep.subr.bf16.mxu0 %v1439
        %2474 = vmatpush1.bf16.msra.mxu0 %v1438
        %2475 = vmatprep.subr.bf16.mxu0 %v1441
        %2476 = vmatpush1.bf16.msra.mxu0 %v1440
        %2477 = vmatprep.subr.bf16.mxu0 %v1443
        %2478 = vmatpush1.bf16.msra.mxu0 %v1442
        %2479 = vmatprep.subr.bf16.mxu0 %v1445
        %2480 = vmatpush1.bf16.msra.mxu0 %v1444
        %2481 = vmatprep.subr.bf16.mxu0 %v1447
        %2482 = vmatpush1.bf16.msra.mxu0 %v1446
        %2483 = vmatprep.subr.bf16.mxu0 %v1449
        %2484 = vmatpush1.bf16.msra.mxu0 %v1448
        %2485 = vmatprep.subr.bf16.mxu0 %v1451
        %2486 = vmatpush1.bf16.msra.mxu0 %v1450
        %2487 = vmatprep.subr.bf16.mxu0 %v1453
        %2488 = vmatpush1.bf16.msra.mxu0 %v1452
        %2489 = vmatprep.subr.bf16.mxu0 %v1455
        %2490 = vmatpush1.bf16.msra.mxu0 %v1454
        %2491 = vmatprep.subr.bf16.mxu0 %v1457
        %2492 = vmatpush1.bf16.msra.mxu0 %v1456
        %2493 = vmatprep.subr.bf16.mxu0 %v1459
        %2494 = vmatpush1.bf16.msra.mxu0 %v1458
        %2495 = vmatprep.subr.bf16.mxu0 %v1461
        %2496 = vmatpush1.bf16.msra.mxu0 %v1460
        %2497 = vmatprep.subr.bf16.mxu0 %v1463
        %2498 = vmatpush1.bf16.msra.mxu0 %v1462
        %2499 = vmatprep.subr.bf16.mxu0 %v1465
        %2500 = vmatpush1.bf16.msra.mxu0 %v1464
        %2501 = vmatprep.subr.bf16.mxu0 %v1467
        %2502 = vmatpush1.bf16.msra.mxu0 %v1466
        %2503 = vmatprep.mubr.bf16.mxu0 %v2470
        %2504 = vmatmul.mubr.bf16.gmra.mrb[0].mxu0 %v2469
        %v2505 = vpop.f32.mrb[0].mxu0
        %v2506 = vadd.f32 %v1333, %v2505
        %v2507 = vpop.f32.mrb[0].mxu0
        %v2508 = vadd.f32 %v1337, %v2507
        %v2509 = vpop.f32.mrb[0].mxu0
        %v2510 = vpop.f32.mrb[0].mxu0
        %2511 = vdwg.mxu0
        %v2512 = vtanh.pop %v2506
        %v2513 = vtanh.pop %v2508
        %v2514 = vpack.c.bf16 %v2512, %v2512
        %v2515 = vpack.c.bf16 %v2513, %v2513
        %2516 = vmatprep.subr.bf16.mxu0 %v1653
        %2517 = vmatpush1.bf16.msra.mxu0 %v1652
        %2518 = vmatprep.subr.bf16.mxu0 %v1655
        %2519 = vmatpush1.bf16.msra.mxu0 %v1654
        %2520 = vmatprep.subr.bf16.mxu0 %v1657
        %2521 = vmatpush1.bf16.msra.mxu0 %v1656
        %2522 = vmatprep.subr.bf16.mxu0 %v1659
        %2523 = vmatpush1.bf16.msra.mxu0 %v1658
        %2524 = vmatprep.subr.bf16.mxu0 %v1661
        %2525 = vmatpush1.bf16.msra.mxu0 %v1660
        %2526 = vmatprep.subr.bf16.mxu0 %v1663
        %2527 = vmatpush1.bf16.msra.mxu0 %v1662
        %2528 = vmatprep.subr.bf16.mxu0 %v1665
        %2529 = vmatpush1.bf16.msra.mxu0 %v1664
        %2530 = vmatprep.subr.bf16.mxu0 %v1667
        %2531 = vmatpush1.bf16.msra.mxu0 %v1666
        %2532 = vmatprep.subr.bf16.mxu0 %v1669
        %2533 = vmatpush1.bf16.msra.mxu0 %v1668
        %2534 = vmatprep.subr.bf16.mxu0 %v1671
        %2535 = vmatpush1.bf16.msra.mxu0 %v1670
        %2536 = vmatprep.subr.bf16.mxu0 %v1673
        %2537 = vmatpush1.bf16.msra.mxu0 %v1672
        %2538 = vmatprep.subr.bf16.mxu0 %v1675
        %2539 = vmatpush1.bf16.msra.mxu0 %v1674
        %2540 = vmatprep.subr.bf16.mxu0 %v1677
        %2541 = vmatpush1.bf16.msra.mxu0 %v1676
        %2542 = vmatprep.subr.bf16.mxu0 %v1679
        %2543 = vmatpush1.bf16.msra.mxu0 %v1678
        %2544 = vmatprep.subr.bf16.mxu0 %v1681
        %2545 = vmatpush1.bf16.msra.mxu0 %v1680
        %2546 = vmatprep.subr.bf16.mxu0 %v1683
        %2547 = vmatpush1.bf16.msra.mxu0 %v1682
        %2548 = vmatprep.mubr.bf16.mxu0 %v2515
        %2549 = vmatmul.mubr.bf16.gmra.mrb[0].mxu0 %v2514
        %v2550 = vpop.f32.mrb[0].mxu0
        %v2551 = vadd.f32 %v1549, %v2550
        %v2552 = vpop.f32.mrb[0].mxu0
        %v2553 = vadd.f32 %v1553, %v2552
        %v2554 = vpop.f32.mrb[0].mxu0
        %v2555 = vpop.f32.mrb[0].mxu0
        %2556 = vdwg.mxu0
        %v2559 = vcombine.low %v2551, %v2553
        %v2561 = vunpack.c.l.s4 1983009808
        %v2562 = vunpack.c.0.s8 %v2561
        %v2563 = vlaneseq
        %v2564 = vshrl.u32 %v2563, 7
        %v2565 = vsub.s32 %v2562, %v2564
        %v2566 = vrot.slane %v2559, %v2565
        %2568 = vst [vmem:[#allocation2] sm:$0xf] %v2566
        %v2569 = vld [vmem:[#allocation2] sm:$0xf]
        %s2570 = scalar_lea.vmem %s313, 24 [#allocation11]
        %2571 = vst.msk [vmem:[%s2570] sm:$0xf] %vm1097, %v2569
        %v2572 = vld [vmem:[#allocation2] sm:$0xf]
        %v2575 = vunpack.c.l.s4 1983009808
        %v2576 = vunpack.c.0.s8 %v2575
        %v2577 = vlaneseq
        %v2578 = vshrl.u32 %v2577, 7
        %v2579 = vsub.s32 %v2576, %v2578
        %v2580 = vrot.slane %v2572, %v2579
        %v2581 = vcombine.high %v2580, %v2580
        %v2584 = vpack.c.bf16 %v2580, %v2580
        %v2585 = vpack.c.bf16 %v2581, %v2581
        %2586 = vmatprep.subr.bf16.mxu0 %v1221
        %2587 = vmatpush1.bf16.msra.mxu0 %v1220
        %2588 = vmatprep.subr.bf16.mxu0 %v1223
        %2589 = vmatpush1.bf16.msra.mxu0 %v1222
        %2590 = vmatprep.subr.bf16.mxu0 %v1225
        %2591 = vmatpush1.bf16.msra.mxu0 %v1224
        %2592 = vmatprep.subr.bf16.mxu0 %v1227
        %2593 = vmatpush1.bf16.msra.mxu0 %v1226
        %2594 = vmatprep.subr.bf16.mxu0 %v1229
        %2595 = vmatpush1.bf16.msra.mxu0 %v1228
        %2596 = vmatprep.subr.bf16.mxu0 %v1231
        %2597 = vmatpush1.bf16.msra.mxu0 %v1230
        %2598 = vmatprep.subr.bf16.mxu0 %v1233
        %2599 = vmatpush1.bf16.msra.mxu0 %v1232
        %2600 = vmatprep.subr.bf16.mxu0 %v1235
        %2601 = vmatpush1.bf16.msra.mxu0 %v1234
        %2602 = vmatprep.subr.bf16.mxu0 %v1237
        %2603 = vmatpush1.bf16.msra.mxu0 %v1236
        %2604 = vmatprep.subr.bf16.mxu0 %v1239
        %2605 = vmatpush1.bf16.msra.mxu0 %v1238
        %2606 = vmatprep.subr.bf16.mxu0 %v1241
        %2607 = vmatpush1.bf16.msra.mxu0 %v1240
        %2608 = vmatprep.subr.bf16.mxu0 %v1243
        %2609 = vmatpush1.bf16.msra.mxu0 %v1242
        %2610 = vmatprep.subr.bf16.mxu0 %v1245
        %2611 = vmatpush1.bf16.msra.mxu0 %v1244
        %2612 = vmatprep.subr.bf16.mxu0 %v1247
        %2613 = vmatpush1.bf16.msra.mxu0 %v1246
        %2614 = vmatprep.subr.bf16.mxu0 %v1249
        %2615 = vmatpush1.bf16.msra.mxu0 %v1248
        %2616 = vmatprep.subr.bf16.mxu0 %v1251
        %2617 = vmatpush1.bf16.msra.mxu0 %v1250
        %2618 = vmatprep.mubr.bf16.mxu0 %v2585
        %2619 = vmatmul.mubr.bf16.gmra.mrb[0].mxu0 %v2584
        %v2620 = vpop.f32.mrb[0].mxu0
        %v2621 = vadd.f32 %v1117, %v2620
        %v2622 = vpop.f32.mrb[0].mxu0
        %v2623 = vadd.f32 %v1121, %v2622
        %v2624 = vpop.f32.mrb[0].mxu0
        %v2625 = vpop.f32.mrb[0].mxu0
        %2626 = vdwg.mxu0
        %v2627 = vtanh.pop %v2621
        %v2628 = vtanh.pop %v2623
        %v2629 = vpack.c.bf16 %v2627, %v2627
        %v2630 = vpack.c.bf16 %v2628, %v2628
        %2631 = vmatprep.subr.bf16.mxu0 %v1437
        %2632 = vmatpush1.bf16.msra.mxu0 %v1436
        %2633 = vmatprep.subr.bf16.mxu0 %v1439
        %2634 = vmatpush1.bf16.msra.mxu0 %v1438
        %2635 = vmatprep.subr.bf16.mxu0 %v1441
        %2636 = vmatpush1.bf16.msra.mxu0 %v1440
        %2637 = vmatprep.subr.bf16.mxu0 %v1443
        %2638 = vmatpush1.bf16.msra.mxu0 %v1442
        %2639 = vmatprep.subr.bf16.mxu0 %v1445
        %2640 = vmatpush1.bf16.msra.mxu0 %v1444
        %2641 = vmatprep.subr.bf16.mxu0 %v1447
        %2642 = vmatpush1.bf16.msra.mxu0 %v1446
        %2643 = vmatprep.subr.bf16.mxu0 %v1449
        %2644 = vmatpush1.bf16.msra.mxu0 %v1448
        %2645 = vmatprep.subr.bf16.mxu0 %v1451
        %2646 = vmatpush1.bf16.msra.mxu0 %v1450
        %2647 = vmatprep.subr.bf16.mxu0 %v1453
        %2648 = vmatpush1.bf16.msra.mxu0 %v1452
        %2649 = vmatprep.subr.bf16.mxu0 %v1455
        %2650 = vmatpush1.bf16.msra.mxu0 %v1454
        %2651 = vmatprep.subr.bf16.mxu0 %v1457
        %2652 = vmatpush1.bf16.msra.mxu0 %v1456
        %2653 = vmatprep.subr.bf16.mxu0 %v1459
        %2654 = vmatpush1.bf16.msra.mxu0 %v1458
        %2655 = vmatprep.subr.bf16.mxu0 %v1461
        %2656 = vmatpush1.bf16.msra.mxu0 %v1460
        %2657 = vmatprep.subr.bf16.mxu0 %v1463
        %2658 = vmatpush1.bf16.msra.mxu0 %v1462
        %2659 = vmatprep.subr.bf16.mxu0 %v1465
        %2660 = vmatpush1.bf16.msra.mxu0 %v1464
        %2661 = vmatprep.subr.bf16.mxu0 %v1467
        %2662 = vmatpush1.bf16.msra.mxu0 %v1466
        %2663 = vmatprep.mubr.bf16.mxu0 %v2630
        %2664 = vmatmul.mubr.bf16.gmra.mrb[0].mxu0 %v2629
        %v2665 = vpop.f32.mrb[0].mxu0
        %v2666 = vadd.f32 %v1333, %v2665
        %v2667 = vpop.f32.mrb[0].mxu0
        %v2668 = vadd.f32 %v1337, %v2667
        %v2669 = vpop.f32.mrb[0].mxu0
        %v2670 = vpop.f32.mrb[0].mxu0
        %2671 = vdwg.mxu0
        %v2672 = vtanh.pop %v2666
        %v2673 = vtanh.pop %v2668
        %v2674 = vpack.c.bf16 %v2672, %v2672
        %v2675 = vpack.c.bf16 %v2673, %v2673
        %2676 = vmatprep.subr.bf16.mxu0 %v1653
        %2677 = vmatpush1.bf16.msra.mxu0 %v1652
        %2678 = vmatprep.subr.bf16.mxu0 %v1655
        %2679 = vmatpush1.bf16.msra.mxu0 %v1654
        %2680 = vmatprep.subr.bf16.mxu0 %v1657
        %2681 = vmatpush1.bf16.msra.mxu0 %v1656
        %2682 = vmatprep.subr.bf16.mxu0 %v1659
        %2683 = vmatpush1.bf16.msra.mxu0 %v1658
        %2684 = vmatprep.subr.bf16.mxu0 %v1661
        %2685 = vmatpush1.bf16.msra.mxu0 %v1660
        %2686 = vmatprep.subr.bf16.mxu0 %v1663
        %2687 = vmatpush1.bf16.msra.mxu0 %v1662
        %2688 = vmatprep.subr.bf16.mxu0 %v1665
        %2689 = vmatpush1.bf16.msra.mxu0 %v1664
        %2690 = vmatprep.subr.bf16.mxu0 %v1667
        %2691 = vmatpush1.bf16.msra.mxu0 %v1666
        %2692 = vmatprep.subr.bf16.mxu0 %v1669
        %2693 = vmatpush1.bf16.msra.mxu0 %v1668
        %2694 = vmatprep.subr.bf16.mxu0 %v1671
        %2695 = vmatpush1.bf16.msra.mxu0 %v1670
        %2696 = vmatprep.subr.bf16.mxu0 %v1673
        %2697 = vmatpush1.bf16.msra.mxu0 %v1672
        %2698 = vmatprep.subr.bf16.mxu0 %v1675
        %2699 = vmatpush1.bf16.msra.mxu0 %v1674
        %2700 = vmatprep.subr.bf16.mxu0 %v1677
        %2701 = vmatpush1.bf16.msra.mxu0 %v1676
        %2702 = vmatprep.subr.bf16.mxu0 %v1679
        %2703 = vmatpush1.bf16.msra.mxu0 %v1678
        %2704 = vmatprep.subr.bf16.mxu0 %v1681
        %2705 = vmatpush1.bf16.msra.mxu0 %v1680
        %2706 = vmatprep.subr.bf16.mxu0 %v1683
        %2707 = vmatpush1.bf16.msra.mxu0 %v1682
        %2708 = vmatprep.mubr.bf16.mxu0 %v2675
        %2709 = vmatmul.mubr.bf16.gmra.mrb[0].mxu0 %v2674
        %v2710 = vpop.f32.mrb[0].mxu0
        %v2711 = vadd.f32 %v1549, %v2710
        %v2712 = vpop.f32.mrb[0].mxu0
        %v2713 = vadd.f32 %v1553, %v2712
        %v2714 = vpop.f32.mrb[0].mxu0
        %v2715 = vpop.f32.mrb[0].mxu0
        %2716 = vdwg.mxu0
        %v2719 = vcombine.low %v2711, %v2713
        %v2721 = vunpack.c.l.s4 1983009808
        %v2722 = vunpack.c.0.s8 %v2721
        %v2723 = vlaneseq
        %v2724 = vshrl.u32 %v2723, 7
        %v2725 = vsub.s32 %v2722, %v2724
        %v2726 = vrot.slane %v2719, %v2725
        %2728 = vst [vmem:[#allocation2] sm:$0xf] %v2726
        %v2729 = vld [vmem:[#allocation2] sm:$0xf]
        %s2730 = scalar_lea.vmem %s313, 28 [#allocation11]
        %2731 = vst.msk [vmem:[%s2730] sm:$0xf] %vm1097, %v2729
        %s2732 = sand.u32 %s179, 1
        %s2733 = scalar_lea.sflag [#allocation5], %s2732
        %s2734 = sand.u32 %s179, 1
        %s2735 = smul.addr %s2734, 32
        %s2736 = scalar_lea.vmem [#allocation11], %s2735
        // Predicated region
        $region73: #{tpu_custom_call.1} parent=47 // pred_check
          %p2737 = pneg %p189
        $region74: #{tpu_custom_call.1} parent=47 // pred_check_branch
          %2739 = sbr.rel (%p2737) target = $region76
        $region75: #{tpu_custom_call.1} parent=47 // pred_region
          %s2740 = smul.u32 8, %s24
          %s2742 = ssub.s32 512, 512
          %2743 = vsyncadd %s2733, %s2742
          %s2744 = smul.addr %s2740, 2
          %s2745 = smul.addr %s2744, 32
          %s2746 = scalar_lea.hbm %s7, %s2745
          %s2747 = sshll.u32 %s2736, 4
          %s2748 = int_to_ptr.vmem [resolvable:$true] %s2747
          %2753 = dma.vmem_to_hbm [thread:$0]  %s2748, 512, %s2746, %s2733, 64, 64, 4
        $region76: #{tpu_custom_call.1} parent=47 // pred_fallthru
          _
      $region48: #{tpu_custom_call.1} parent=5 // pred_fallthru
        _
      %p2754 = scmp.le.s32.totalorder 2, %s19
      // Predicated region
      $region77: #{tpu_custom_call.1} parent=5 // pred_check
        %p2755 = pneg %p2754
      $region78: #{tpu_custom_call.1} parent=5 // pred_check_branch
        %2757 = sbr.rel (%p2755) target = $region80
      $region79: #{tpu_custom_call.1} parent=5 // pred_region
        %s2758 = ssub.s32 %s19, 2
        // Predicated region
        $region81: #{tpu_custom_call.1} parent=79 // pred_check
          %p2759 = pneg %p195
        $region82: #{tpu_custom_call.1} parent=79 // pred_check_branch
          %2761 = sbr.rel (%p2759) target = $region84
        $region83: #{tpu_custom_call.1} parent=79 // pred_region
          %s2762 = sand.u32 %s180, 1
          %s2763 = scalar_lea.sflag [#allocation5], %s2762
          %s2764 = sand.u32 %s180, 1
          %s2765 = smul.addr %s2764, 32
          %s2766 = scalar_lea.vmem [#allocation11], %s2765
          %2767 = dma.done %s2763, 512
        $region84: #{tpu_custom_call.1} parent=79 // pred_fallthru
          _
      $region80: #{tpu_custom_call.1} parent=5 // pred_fallthru
        _
    $region6: #{tpu_custom_call.1} parent=1 // loop_footer
      %s23 = sadd.s32 1, %s19
    $region7: #{tpu_custom_call.1} parent=1 // loop_footer_branch
      %18 = sbr.rel target = $region3
    $region8: #{tpu_custom_call.1} parent=1 // loop_exit
      _
    %2768 = vsyncpa [#allocation4], 1
    %s2769 = scalar_lea.sflag [#allocation4], 1
    %2770 = vsyncpa %s2769, 1
    %2771 = vsyncpa [#allocation7], 1
    %2772 = vsyncpa [#allocation10], 1
    %2773 = vsyncpa [#allocation5], 1
    %s2774 = scalar_lea.sflag [#allocation5], 1
    %2775 = vsyncpa %s2774, 1

// kernel: tpu_custom_call.1
$region0: #{tpu_custom_call.1}
  #allocation0 [shape = 'u32[]', space=smem, size = 0x4, offset = 0x4, fixed_abs, tag = 'smem constant byte address 0x4 - core index']
  #allocation1 [shape = 'u32[144,128]{1,0:T(1,128)}', space=vmem, size = 0x12000, scoped, tag = 'internal scratch']
  #allocation2 [shape = 'f32[2,256]{1,0:T(2,128)}', space=vmem, size = 0x800, scoped, tag = 'scratch operand']
  %s0 = inlined_call_operand.hbm [shape: f32[2,256], index: 0, kind: input, shape index: {}]
  %s1 = inlined_call_operand.hbm [shape: bf16[256,256], index: 1, kind: input, shape index: {}]
  %s2 = inlined_call_operand.vmem [shape: f32[1,256], index: 2, kind: input, shape index: {}]
  %s3 = inlined_call_operand.hbm [shape: bf16[256,256], index: 3, kind: input, shape index: {}]
  %s4 = inlined_call_operand.vmem [shape: f32[1,256], index: 4, kind: input, shape index: {}]
  %s5 = inlined_call_operand.hbm [shape: bf16[256,256], index: 5, kind: input, shape index: {}]
  %s6 = inlined_call_operand.vmem [shape: f32[1,256], index: 6, kind: input, shape index: {}]
  %s7 = inlined_call_operand.hbm [shape: f32[16,2,200], index: 7, kind: output, shape index: {}]
  %s8 = sld [smem:[#allocation0]]
  $region85: #{tpu_custom_call.1} parent=0
    _
  %s10 = ssub.s32 1, %s8
  %s11 = scalar_select 0, %s10, %s8
  $region1: #{tpu_custom_call.1} parent=0
    #allocation3 [shape = 'u8[2048]{0}', space=vmem, size = 0x800, scoped, tag = 'input window, operand 0, single buffered']
    #allocation4 [shape = 's32[2]{0}', space=sflag, size = 0x8, scoped, tag = 'scoped memory for tpu_custom_call.1']
    #allocation5 [shape = 's32[2]{0}', space=sflag, size = 0x8, scoped, tag = 'scoped memory for tpu_custom_call.1']
    #allocation6 [shape = 'u8[131072]{0}', space=vmem, size = 0x20000, scoped, tag = 'input window, operand 1, single buffered']
    #allocation7 [shape = 's32[1]{0}', space=sflag, size = 0x4, scoped, tag = 'scoped memory for tpu_custom_call.1']
    #allocation8 [shape = 'u8[131072]{0}', space=vmem, size = 0x20000, scoped, tag = 'input window, operand 3, single buffered']
    #allocation9 [shape = 'u8[131072]{0}', space=vmem, size = 0x20000, scoped, tag = 'input window, operand 5, single buffered']
    #allocation10 [shape = 's32[1]{0}', space=sflag, size = 0x4, scoped, tag = 'scoped memory for tpu_custom_call.1']
    #allocation11 [shape = 'u8[32768]{0}', space=vmem, size = 0x8000, scoped, tag = 'output window, operand 0']
    %12 = vsyncpa [#allocation4], 0
    %13 = vsyncpa [#allocation7], 0
    %14 = vsyncpa [#allocation10], 0
    %15 = vsyncpa [#allocation5], 0
    %s16 = scalar_lea.sflag [#allocation5], 1
    %17 = vsyncpa %s16, 0
    loop: start=0, step=1, limit=4
    $region2: #{tpu_custom_call.1} parent=1 // loop_pre_header
      _
    $region3: #{tpu_custom_call.1} parent=1 // loop_header
      %s19 = sphi 0, %s23
      %p20 = scmp.ge.s32.totalorder %s19, 4
      %s27 = sphi 0, %s27
      %s29 = sphi 0, %s27
      %s30 = sphi 0, %s29
      %s44 = sphi 0, %s30
      %s48 = sphi 0, %s48
      %s50 = sphi 0, %s48
      %s51 = sphi 0, %s50
      %s65 = sphi 0, %s51
      %s69 = sphi 0, %s69
      %s71 = sphi 0, %s69
      %s72 = sphi 0, %s71
      %s86 = sphi 0, %s72
      %s90 = sphi 0, %s90
      %s92 = sphi 0, %s90
      %s93 = sphi 0, %s92
      %s107 = sphi 0, %s93
      %s111 = sphi 0, %s111
      %s113 = sphi 0, %s111
      %s114 = sphi 0, %s113
      %s128 = sphi 0, %s114
      %s132 = sphi 0, %s132
      %s134 = sphi 0, %s132
      %s135 = sphi 0, %s134
      %s149 = sphi 0, %s135
      %s153 = sphi 0, %s153
      %s155 = sphi 0, %s153
      %s156 = sphi 0, %s155
      %s170 = sphi 0, %s156
      %s176 = sphi 0, %s178
      %s179 = sphi 0, %s176
      %s180 = sphi 0, %s179
      %s196 = sphi 0, %s180
    $region4: #{tpu_custom_call.1} parent=1 // loop_header_branch
      %22 = sbr.rel (%p20) target = $region8
    $region5: #{tpu_custom_call.1} parent=1 // loop_body
      %s24 = ssub.s32 %s19, 1
      %s25 = ssub.s32 %s19, 2
      %s26 = sadd.s32 %s19, 1
      %s28 = sadd.s32 %s27, 1
      %p31 = scmp.eq.s32.totalorder %s19, 1
      %p32 = scmp.ne.s32.totalorder %s27, %s29
      %p33 = scmp.eq.s32.totalorder %s19, 0
      %p34 = por %p32, %p33
      %p35 = scmp.ne.s32.totalorder %s27, %s29
      %p36 = scmp.eq.s32.totalorder %s24, 1
      %p37 = por %p35, %p36
      %p38 = scmp.ne.s32.totalorder %s29, %s30
      %p39 = scmp.eq.s32.totalorder %s24, 0
      %p40 = por %p38, %p39
      %p41 = scmp.ne.s32.totalorder %s29, %s30
      %p42 = scmp.eq.s32.totalorder %s25, 1
      %p43 = por %p41, %p42
      %p45 = scmp.ne.s32.totalorder %s30, %s44
      %p46 = scmp.eq.s32.totalorder %s25, 0
      %p47 = por %p45, %p46
      %s49 = sadd.s32 %s48, 1
      %p52 = scmp.eq.s32.totalorder %s19, 1
      %p53 = scmp.ne.s32.totalorder %s48, %s50
      %p54 = scmp.eq.s32.totalorder %s19, 0
      %p55 = por %p53, %p54
      %p56 = scmp.ne.s32.totalorder %s48, %s50
      %p57 = scmp.eq.s32.totalorder %s24, 1
      %p58 = por %p56, %p57
      %p59 = scmp.ne.s32.totalorder %s50, %s51
      %p60 = scmp.eq.s32.totalorder %s24, 0
      %p61 = por %p59, %p60
      %p62 = scmp.ne.s32.totalorder %s50, %s51
      %p63 = scmp.eq.s32.totalorder %s25, 1
      %p64 = por %p62, %p63
      %p66 = scmp.ne.s32.totalorder %s51, %s65
      %p67 = scmp.eq.s32.totalorder %s25, 0
      %p68 = por %p66, %p67
      %s70 = sadd.s32 %s69, 1
      %p73 = scmp.eq.s32.totalorder %s19, 1
      %p74 = scmp.ne.s32.totalorder %s69, %s71
      %p75 = scmp.eq.s32.totalorder %s19, 0
      %p76 = por %p74, %p75
      %p77 = scmp.ne.s32.totalorder %s69, %s71
      %p78 = scmp.eq.s32.totalorder %s24, 1
      %p79 = por %p77, %p78
      %p80 = scmp.ne.s32.totalorder %s71, %s72
      %p81 = scmp.eq.s32.totalorder %s24, 0
      %p82 = por %p80, %p81
      %p83 = scmp.ne.s32.totalorder %s71, %s72
      %p84 = scmp.eq.s32.totalorder %s25, 1
      %p85 = por %p83, %p84
      %p87 = scmp.ne.s32.totalorder %s72, %s86
      %p88 = scmp.eq.s32.totalorder %s25, 0
      %p89 = por %p87, %p88
      %s91 = sadd.s32 %s90, 1
      %p94 = scmp.eq.s32.totalorder %s19, 1
      %p95 = scmp.ne.s32.totalorder %s90, %s92
      %p96 = scmp.eq.s32.totalorder %s19, 0
      %p97 = por %p95, %p96
      %p98 = scmp.ne.s32.totalorder %s90, %s92
      %p99 = scmp.eq.s32.totalorder %s24, 1
      %p100 = por %p98, %p99
      %p101 = scmp.ne.s32.totalorder %s92, %s93
      %p102 = scmp.eq.s32.totalorder %s24, 0
      %p103 = por %p101, %p102
      %p104 = scmp.ne.s32.totalorder %s92, %s93
      %p105 = scmp.eq.s32.totalorder %s25, 1
      %p106 = por %p104, %p105
      %p108 = scmp.ne.s32.totalorder %s93, %s107
      %p109 = scmp.eq.s32.totalorder %s25, 0
      %p110 = por %p108, %p109
      %s112 = sadd.s32 %s111, 1
      %p115 = scmp.eq.s32.totalorder %s19, 1
      %p116 = scmp.ne.s32.totalorder %s111, %s113
      %p117 = scmp.eq.s32.totalorder %s19, 0
      %p118 = por %p116, %p117
      %p119 = scmp.ne.s32.totalorder %s111, %s113
      %p120 = scmp.eq.s32.totalorder %s24, 1
      %p121 = por %p119, %p120
      %p122 = scmp.ne.s32.totalorder %s113, %s114
      %p123 = scmp.eq.s32.totalorder %s24, 0
      %p124 = por %p122, %p123
      %p125 = scmp.ne.s32.totalorder %s113, %s114
      %p126 = scmp.eq.s32.totalorder %s25, 1
      %p127 = por %p125, %p126
      %p129 = scmp.ne.s32.totalorder %s114, %s128
      %p130 = scmp.eq.s32.totalorder %s25, 0
      %p131 = por %p129, %p130
      %s133 = sadd.s32 %s132, 1
      %p136 = scmp.eq.s32.totalorder %s19, 1
      %p137 = scmp.ne.s32.totalorder %s132, %s134
      %p138 = scmp.eq.s32.totalorder %s19, 0
      %p139 = por %p137, %p138
      %p140 = scmp.ne.s32.totalorder %s132, %s134
      %p141 = scmp.eq.s32.totalorder %s24, 1
      %p142 = por %p140, %p141
      %p143 = scmp.ne.s32.totalorder %s134, %s135
      %p144 = scmp.eq.s32.totalorder %s24, 0
      %p145 = por %p143, %p144
      %p146 = scmp.ne.s32.totalorder %s134, %s135
      %p147 = scmp.eq.s32.totalorder %s25, 1
      %p148 = por %p146, %p147
      %p150 = scmp.ne.s32.totalorder %s135, %s149
      %p151 = scmp.eq.s32.totalorder %s25, 0
      %p152 = por %p150, %p151
      %s154 = sadd.s32 %s153, 1
      %p157 = scmp.eq.s32.totalorder %s19, 1
      %p158 = scmp.ne.s32.totalorder %s153, %s155
      %p159 = scmp.eq.s32.totalorder %s19, 0
      %p160 = por %p158, %p159
      %p161 = scmp.ne.s32.totalorder %s153, %s155
      %p162 = scmp.eq.s32.totalorder %s24, 1
      %p163 = por %p161, %p162
      %p164 = scmp.ne.s32.totalorder %s155, %s156
      %p165 = scmp.eq.s32.totalorder %s24, 0
      %p166 = por %p164, %p165
      %p167 = scmp.ne.s32.totalorder %s155, %s156
      %p168 = scmp.eq.s32.totalorder %s25, 1
      %p169 = por %p167, %p168
      %p171 = scmp.ne.s32.totalorder %s156, %s170
      %p172 = scmp.eq.s32.totalorder %s25, 0
      %p173 = por %p171, %p172
      %s174 = ssub.s32 %s19, %s26
      %p175 = scmp.eq.s32.totalorder %s174, 0
      %s177 = sadd.s32 %s176, 1
      %s178 = scalar_select %p175, %s176, %s177
      %p181 = pneg %p175
      %p182 = scmp.eq.s32.totalorder %s19, 1
      %p183 = por %p181, %p182
      %p184 = scmp.ne.s32.totalorder %s176, %s179
      %p185 = scmp.eq.s32.totalorder %s19, 0
      %p186 = por %p184, %p185
      %p187 = scmp.ne.s32.totalorder %s176, %s179
      %p188 = scmp.eq.s32.totalorder %s24, 1
      %p189 = por %p187, %p188
      %p190 = scmp.ne.s32.totalorder %s179, %s180
      %p191 = scmp.eq.s32.totalorder %s24, 0
      %p192 = por %p190, %p191
      %p193 = scmp.ne.s32.totalorder %s179, %s180
      %p194 = scmp.eq.s32.totalorder %s25, 1
      %p195 = por %p193, %p194
      %p197 = scmp.ne.s32.totalorder %s180, %s196
      %p198 = scmp.eq.s32.totalorder %s25, 0
      %p199 = por %p197, %p198
      %p200 = scmp.le.s32.totalorder 1, %s19
      %p201 = scmp.lt.s32.totalorder %s19, 3
      %p202 = pnand %p200, %p201
      %p203 = pneg %p202
      // Predicated region
      $region9: #{tpu_custom_call.1} parent=5 // pred_check
        _
      $region10: #{tpu_custom_call.1} parent=5 // pred_check_branch
        %205 = sbr.rel (%p202) target = $region12
      $region11: #{tpu_custom_call.1} parent=5 // pred_region
        %s206 = ssub.s32 %s19, 1
        // Predicated region
        $region13: #{tpu_custom_call.1} parent=11 // pred_check
          %p207 = pneg %p40
        $region14: #{tpu_custom_call.1} parent=11 // pred_check_branch
          %209 = sbr.rel (%p207) target = $region16
        $region15: #{tpu_custom_call.1} parent=11 // pred_region
          %s211 = ssub.s32 64, 64
          %212 = vsyncadd [#allocation4], %s211
          %s214 = sshll.u32 [#allocation3], 4
          %s215 = int_to_ptr.vmem [resolvable:$true] %s214
          %217 = dma.hbm_to_vmem [thread:$0]  %s0, 64, %s215, [#allocation4]
        $region16: #{tpu_custom_call.1} parent=11 // pred_fallthru
          _
        // Predicated region
        $region17: #{tpu_custom_call.1} parent=11 // pred_check
          %p218 = pneg %p61
        $region18: #{tpu_custom_call.1} parent=11 // pred_check_branch
          %220 = sbr.rel (%p218) target = $region20
        $region19: #{tpu_custom_call.1} parent=11 // pred_region
          %s222 = ssub.s32 4096, 4096
          %223 = vsyncadd [#allocation7], %s222
          %s224 = sshll.u32 [#allocation6], 4
          %s225 = int_to_ptr.vmem [resolvable:$true] %s224
          %230 = dma.hbm_to_vmem [thread:$0]  %s1, 4096, %s225, [#allocation7], 128, 128, 8
        $region20: #{tpu_custom_call.1} parent=11 // pred_fallthru
          _
        // Predicated region
        $region21: #{tpu_custom_call.1} parent=11 // pred_check
          %p231 = pneg %p82
        $region22: #{tpu_custom_call.1} parent=11 // pred_check_branch
          %233 = sbr.rel (%p231) target = $region24
        $region23: #{tpu_custom_call.1} parent=11 // pred_region
          _
        $region24: #{tpu_custom_call.1} parent=11 // pred_fallthru
          _
        // Predicated region
        $region25: #{tpu_custom_call.1} parent=11 // pred_check
          %p234 = pneg %p103
        $region26: #{tpu_custom_call.1} parent=11 // pred_check_branch
          %236 = sbr.rel (%p234) target = $region28
        $region27: #{tpu_custom_call.1} parent=11 // pred_region
          %s238 = ssub.s32 4096, 4096
          %239 = vsyncadd [#allocation7], %s238
          %s240 = sshll.u32 [#allocation8], 4
          %s241 = int_to_ptr.vmem [resolvable:$true] %s240
          %246 = dma.hbm_to_vmem [thread:$0]  %s3, 4096, %s241, [#allocation7], 128, 128, 8
        $region28: #{tpu_custom_call.1} parent=11 // pred_fallthru
          _
        // Predicated region
        $region29: #{tpu_custom_call.1} parent=11 // pred_check
          %p247 = pneg %p124
        $region30: #{tpu_custom_call.1} parent=11 // pred_check_branch
          %249 = sbr.rel (%p247) target = $region32
        $region31: #{tpu_custom_call.1} parent=11 // pred_region
          _
        $region32: #{tpu_custom_call.1} parent=11 // pred_fallthru
          _
        // Predicated region
        $region33: #{tpu_custom_call.1} parent=11 // pred_check
          %p250 = pneg %p145
        $region34: #{tpu_custom_call.1} parent=11 // pred_check_branch
          %252 = sbr.rel (%p250) target = $region36
        $region35: #{tpu_custom_call.1} parent=11 // pred_region
          %s254 = ssub.s32 4096, 4096
          %255 = vsyncadd [#allocation10], %s254
          %s256 = sshll.u32 [#allocation9], 4
          %s257 = int_to_ptr.vmem [resolvable:$true] %s256
          %262 = dma.hbm_to_vmem [thread:$0]  %s5, 4096, %s257, [#allocation10], 128, 128, 8
        $region36: #{tpu_custom_call.1} parent=11 // pred_fallthru
          _
        // Predicated region
        $region37: #{tpu_custom_call.1} parent=11 // pred_check
          %p263 = pneg %p166
        $region38: #{tpu_custom_call.1} parent=11 // pred_check_branch
          %265 = sbr.rel (%p263) target = $region40
        $region39: #{tpu_custom_call.1} parent=11 // pred_region
          _
        $region40: #{tpu_custom_call.1} parent=11 // pred_fallthru
          _
      $region12: #{tpu_custom_call.1} parent=5 // pred_fallthru
        _
      %p266 = scmp.lt.s32.totalorder %s19, 2
      // Predicated region
      $region41: #{tpu_custom_call.1} parent=5 // pred_check
        %p267 = pneg %p266
      $region42: #{tpu_custom_call.1} parent=5 // pred_check_branch
        %269 = sbr.rel (%p267) target = $region44
      $region43: #{tpu_custom_call.1} parent=5 // pred_region
        _
      $region44: #{tpu_custom_call.1} parent=5 // pred_fallthru
        _
      %p270 = scmp.le.s32.totalorder 1, %s19
      %p271 = scmp.lt.s32.totalorder %s19, 3
      %p272 = pnand %p270, %p271
      %p273 = pneg %p272
      // Predicated region
      $region45: #{tpu_custom_call.1} parent=5 // pred_check
        _
      $region46: #{tpu_custom_call.1} parent=5 // pred_check_branch
        %275 = sbr.rel (%p272) target = $region48
      $region47: #{tpu_custom_call.1} parent=5 // pred_region
        %s276 = ssub.s32 %s19, 1
        // Predicated region
        $region49: #{tpu_custom_call.1} parent=47 // pred_check
          %p277 = pneg %p40
        $region50: #{tpu_custom_call.1} parent=47 // pred_check_branch
          %279 = sbr.rel (%p277) target = $region52
        $region51: #{tpu_custom_call.1} parent=47 // pred_region
          %280 = dma.done [#allocation4], 64
        $region52: #{tpu_custom_call.1} parent=47 // pred_fallthru
          _
        // Predicated region
        $region53: #{tpu_custom_call.1} parent=47 // pred_check
          %p281 = pneg %p61
        $region54: #{tpu_custom_call.1} parent=47 // pred_check_branch
          %283 = sbr.rel (%p281) target = $region56
        $region55: #{tpu_custom_call.1} parent=47 // pred_region
          %284 = dma.done [#allocation7], 4096
        $region56: #{tpu_custom_call.1} parent=47 // pred_fallthru
          _
        // Predicated region
        $region57: #{tpu_custom_call.1} parent=47 // pred_check
          %p285 = pneg %p103
        $region58: #{tpu_custom_call.1} parent=47 // pred_check_branch
          %287 = sbr.rel (%p285) target = $region60
        $region59: #{tpu_custom_call.1} parent=47 // pred_region
          %288 = dma.done [#allocation7], 4096
        $region60: #{tpu_custom_call.1} parent=47 // pred_fallthru
          _
        // Predicated region
        $region61: #{tpu_custom_call.1} parent=47 // pred_check
          %p289 = pneg %p145
        $region62: #{tpu_custom_call.1} parent=47 // pred_check_branch
          %291 = sbr.rel (%p289) target = $region64
        $region63: #{tpu_custom_call.1} parent=47 // pred_region
          %292 = dma.done [#allocation10], 4096
        $region64: #{tpu_custom_call.1} parent=47 // pred_fallthru
          _
        %p293 = pneg %p40
        %p294 = pneg %p37
        %p295 = pneg %p61
        %p296 = pneg %p58
        %p297 = pneg %p82
        %p298 = pneg %p79
        %p299 = pneg %p103
        %p300 = pneg %p100
        %p301 = pneg %p124
        %p302 = pneg %p121
        %p303 = pneg %p145
        %p304 = pneg %p142
        %p305 = pneg %p166
        %p306 = pneg %p163
        %p307 = pneg %p192
        %p308 = pneg %p189
        %s309 = sand.u32 %s179, 1
        %s310 = scalar_lea.sflag [#allocation5], %s309
        %s311 = sand.u32 %s179, 1
        %s312 = smul.addr %s311, 32
        %s313 = scalar_lea.vmem [#allocation11], %s312
        %s314 = smul.u32 8, %s24
        %v315 = vld [vmem:[#allocation6] sm:$0xff]
        %v316 = vld [vmem:[#allocation6 + $0x8] sm:$0xff]
        %v317 = vld [vmem:[#allocation6 + $0x10] sm:$0xff]
        %v318 = vld [vmem:[#allocation6 + $0x18] sm:$0xff]
        %v319 = vld [vmem:[#allocation6 + $0x20] sm:$0xff]
        %v320 = vld [vmem:[#allocation6 + $0x28] sm:$0xff]
        %v321 = vld [vmem:[#allocation6 + $0x30] sm:$0xff]
        %v322 = vld [vmem:[#allocation6 + $0x38] sm:$0xff]
        %v323 = vld [vmem:[#allocation6 + $0x40] sm:$0xff]
        %v324 = vld [vmem:[#allocation6 + $0x48] sm:$0xff]
        %v325 = vld [vmem:[#allocation6 + $0x50] sm:$0xff]
        %v326 = vld [vmem:[#allocation6 + $0x58] sm:$0xff]
        %v327 = vld [vmem:[#allocation6 + $0x60] sm:$0xff]
        %v328 = vld [vmem:[#allocation6 + $0x68] sm:$0xff]
        %v329 = vld [vmem:[#allocation6 + $0x70] sm:$0xff]
        %v330 = vld [vmem:[#allocation6 + $0x78] sm:$0xff]
        %v331 = vld [vmem:[#allocation6 + $0x80] sm:$0xff]
        %v332 = vld [vmem:[#allocation6 + $0x88] sm:$0xff]
        %v333 = vld [vmem:[#allocation6 + $0x90] sm:$0xff]
        %v334 = vld [vmem:[#allocation6 + $0x98] sm:$0xff]
        %v335 = vld [vmem:[#allocation6 + $0xa0] sm:$0xff]
        %v336 = vld [vmem:[#allocation6 + $0xa8] sm:$0xff]
        %v337 = vld [vmem:[#allocation6 + $0xb0] sm:$0xff]
        %v338 = vld [vmem:[#allocation6 + $0xb8] sm:$0xff]
        %v339 = vld [vmem:[#allocation6 + $0xc0] sm:$0xff]
        %v340 = vld [vmem:[#allocation6 + $0xc8] sm:$0xff]
        %v341 = vld [vmem:[#allocation6 + $0xd0] sm:$0xff]
        %v342 = vld [vmem:[#allocation6 + $0xd8] sm:$0xff]
        %v343 = vld [vmem:[#allocation6 + $0xe0] sm:$0xff]
        %v344 = vld [vmem:[#allocation6 + $0xe8] sm:$0xff]
        %v345 = vld [vmem:[#allocation6 + $0xf0] sm:$0xff]
        %v346 = vld [vmem:[#allocation6 + $0xf8] sm:$0xff]
        %v347 = vld [vmem:[#allocation8] sm:$0xff]
        %v348 = vld [vmem:[#allocation8 + $0x8] sm:$0xff]
        %v349 = vld [vmem:[#allocation8 + $0x10] sm:$0xff]
        %v350 = vld [vmem:[#allocation8 + $0x18] sm:$0xff]
        %v351 = vld [vmem:[#allocation8 + $0x20] sm:$0xff]
        %v352 = vld [vmem:[#allocation8 + $0x28] sm:$0xff]
        %v353 = vld [vmem:[#allocation8 + $0x30] sm:$0xff]
        %v354 = vld [vmem:[#allocation8 + $0x38] sm:$0xff]
        %v355 = vld [vmem:[#allocation8 + $0x40] sm:$0xff]
        %v356 = vld [vmem:[#allocation8 + $0x48] sm:$0xff]
        %v357 = vld [vmem:[#allocation8 + $0x50] sm:$0xff]
        %v358 = vld [vmem:[#allocation8 + $0x58] sm:$0xff]
        %v359 = vld [vmem:[#allocation8 + $0x60] sm:$0xff]
        %v360 = vld [vmem:[#allocation8 + $0x68] sm:$0xff]
        %v361 = vld [vmem:[#allocation8 + $0x70] sm:$0xff]
        %v362 = vld [vmem:[#allocation8 + $0x78] sm:$0xff]
        %v363 = vld [vmem:[#allocation8 + $0x80] sm:$0xff]
        %v364 = vld [vmem:[#allocation8 + $0x88] sm:$0xff]
        %v365 = vld [vmem:[#allocation8 + $0x90] sm:$0xff]
        %v366 = vld [vmem:[#allocation8 + $0x98] sm:$0xff]
        %v367 = vld [vmem:[#allocation8 + $0xa0] sm:$0xff]
        %v368 = vld [vmem:[#allocation8 + $0xa8] sm:$0xff]
        %v369 = vld [vmem:[#allocation8 + $0xb0] sm:$0xff]
        %v370 = vld [vmem:[#allocation8 + $0xb8] sm:$0xff]
        %v371 = vld [vmem:[#allocation8 + $0xc0] sm:$0xff]
        %v372 = vld [vmem:[#allocation8 + $0xc8] sm:$0xff]
        %v373 = vld [vmem:[#allocation8 + $0xd0] sm:$0xff]
        %v374 = vld [vmem:[#allocation8 + $0xd8] sm:$0xff]
        %v375 = vld [vmem:[#allocation8 + $0xe0] sm:$0xff]
        %v376 = vld [vmem:[#allocation8 + $0xe8] sm:$0xff]
        %v377 = vld [vmem:[#allocation8 + $0xf0] sm:$0xff]
        %v378 = vld [vmem:[#allocation8 + $0xf8] sm:$0xff]
        %v379 = vld [vmem:[#allocation9] sm:$0xff]
        %v380 = vld [vmem:[#allocation9 + $0x8] sm:$0xff]
        %v381 = vld [vmem:[#allocation9 + $0x10] sm:$0xff]
        %v382 = vld [vmem:[#allocation9 + $0x18] sm:$0xff]
        %v383 = vld [vmem:[#allocation9 + $0x20] sm:$0xff]
        %v384 = vld [vmem:[#allocation9 + $0x28] sm:$0xff]
        %v385 = vld [vmem:[#allocation9 + $0x30] sm:$0xff]
        %v386 = vld [vmem:[#allocation9 + $0x38] sm:$0xff]
        %v387 = vld [vmem:[#allocation9 + $0x40] sm:$0xff]
        %v388 = vld [vmem:[#allocation9 + $0x48] sm:$0xff]
        %v389 = vld [vmem:[#allocation9 + $0x50] sm:$0xff]
        %v390 = vld [vmem:[#allocation9 + $0x58] sm:$0xff]
        %v391 = vld [vmem:[#allocation9 + $0x60] sm:$0xff]
        %v392 = vld [vmem:[#allocation9 + $0x68] sm:$0xff]
        %v393 = vld [vmem:[#allocation9 + $0x70] sm:$0xff]
        %v394 = vld [vmem:[#allocation9 + $0x78] sm:$0xff]
        %v395 = vld [vmem:[#allocation9 + $0x80] sm:$0xff]
        %v396 = vld [vmem:[#allocation9 + $0x88] sm:$0xff]
        %v397 = vld [vmem:[#allocation9 + $0x90] sm:$0xff]
        %v398 = vld [vmem:[#allocation9 + $0x98] sm:$0xff]
        %v399 = vld [vmem:[#allocation9 + $0xa0] sm:$0xff]
        %v400 = vld [vmem:[#allocation9 + $0xa8] sm:$0xff]
        %v401 = vld [vmem:[#allocation9 + $0xb0] sm:$0xff]
        %v402 = vld [vmem:[#allocation9 + $0xb8] sm:$0xff]
        %v403 = vld [vmem:[#allocation9 + $0xc0] sm:$0xff]
        %v404 = vld [vmem:[#allocation9 + $0xc8] sm:$0xff]
        %v405 = vld [vmem:[#allocation9 + $0xd0] sm:$0xff]
        %v406 = vld [vmem:[#allocation9 + $0xd8] sm:$0xff]
        %v407 = vld [vmem:[#allocation9 + $0xe0] sm:$0xff]
        %v408 = vld [vmem:[#allocation9 + $0xe8] sm:$0xff]
        %v409 = vld [vmem:[#allocation9 + $0xf0] sm:$0xff]
        %v410 = vld [vmem:[#allocation9 + $0xf8] sm:$0xff]
        %v411 = vld [vmem:[%s2] sm:$0x3]
        %v412 = vld [vmem:[%s4] sm:$0x3]
        %v413 = vld [vmem:[%s6] sm:$0x3]
        %p414 = scmp.eq.s32.totalorder %s24, 0
        // Predicated region
        $region65: #{tpu_custom_call.1} parent=47 // pred_check
          %p415 = pneg %p414
        $region66: #{tpu_custom_call.1} parent=47 // pred_check_branch
          %417 = sbr.rel (%p415) target = $region68
        $region67: #{tpu_custom_call.1} parent=47 // pred_region
          %v418 = vld [vmem:[#allocation3] sm:$0xf]
          %419 = vst [vmem:[#allocation2] sm:$0xf] %v418
        $region68: #{tpu_custom_call.1} parent=47 // pred_fallthru
          _
        %p420 = scmp.gt.s32.totalorder %s24, 0
        // Predicated region
        $region69: #{tpu_custom_call.1} parent=47 // pred_check
          %p421 = pneg %p420
        $region70: #{tpu_custom_call.1} parent=47 // pred_check_branch
          %423 = sbr.rel (%p421) target = $region72
        $region71: #{tpu_custom_call.1} parent=47 // pred_region
          %v424 = vld [vmem:[#allocation2] sm:$0xf]
          %v427 = vunpack.c.l.s4 1983009808
          %v428 = vunpack.c.0.s8 %v427
          %v429 = vlaneseq
          %v430 = vshrl.u32 %v429, 7
          %v431 = vsub.s32 %v428, %v430
          %v432 = vrot.slane %v424, %v431
          %v433 = vcombine.high %v432, %v432
          %v436 = vpack.c.bf16 %v432, %v432
          %v437 = vpack.c.bf16 %v433, %v433
          %v439 = vlaneseq
          %v440 = vshrl.u32 %v439, 7
          %v441 = vsub.s32 0, %v440
          %v442 = vrot.slane %v411, %v441
          %v443 = vlaneseq
          %v444 = vshrl.u32 %v443, 7
          %v445 = vsub.s32 1, %v444
          %v446 = vrot.slane %v411, %v445
          %v481 = vunpack.c.l.b16 %v315
          %v482 = vunpack.c.h.b16 %v315
          %v483 = vunpack.c.l.b16 %v316
          %v484 = vunpack.c.h.b16 %v316
          %v485 = vunpack.c.l.b16 %v317
          %v486 = vunpack.c.h.b16 %v317
          %v487 = vunpack.c.l.b16 %v318
          %v488 = vunpack.c.h.b16 %v318
          %v489 = vunpack.c.l.b16 %v319
          %v490 = vunpack.c.h.b16 %v319
          %v491 = vunpack.c.l.b16 %v320
          %v492 = vunpack.c.h.b16 %v320
          %v493 = vunpack.c.l.b16 %v321
          %v494 = vunpack.c.h.b16 %v321
          %v495 = vunpack.c.l.b16 %v322
          %v496 = vunpack.c.h.b16 %v322
          %v497 = vunpack.c.l.b16 %v323
          %v498 = vunpack.c.h.b16 %v323
          %v499 = vunpack.c.l.b16 %v324
          %v500 = vunpack.c.h.b16 %v324
          %v501 = vunpack.c.l.b16 %v325
          %v502 = vunpack.c.h.b16 %v325
          %v503 = vunpack.c.l.b16 %v326
          %v504 = vunpack.c.h.b16 %v326
          %v505 = vunpack.c.l.b16 %v327
          %v506 = vunpack.c.h.b16 %v327
          %v507 = vunpack.c.l.b16 %v328
          %v508 = vunpack.c.h.b16 %v328
          %v509 = vunpack.c.l.b16 %v329
          %v510 = vunpack.c.h.b16 %v329
          %v511 = vunpack.c.l.b16 %v330
          %v512 = vunpack.c.h.b16 %v330
          %v513 = vunpack.c.l.b16 %v331
          %v514 = vunpack.c.h.b16 %v331
          %v515 = vunpack.c.l.b16 %v332
          %v516 = vunpack.c.h.b16 %v332
          %v517 = vunpack.c.l.b16 %v333
          %v518 = vunpack.c.h.b16 %v333
          %v519 = vunpack.c.l.b16 %v334
          %v520 = vunpack.c.h.b16 %v334
          %v521 = vunpack.c.l.b16 %v335
          %v522 = vunpack.c.h.b16 %v335
          %v523 = vunpack.c.l.b16 %v336
          %v524 = vunpack.c.h.b16 %v336
          %v525 = vunpack.c.l.b16 %v337
          %v526 = vunpack.c.h.b16 %v337
          %v527 = vunpack.c.l.b16 %v338
          %v528 = vunpack.c.h.b16 %v338
          %v529 = vunpack.c.l.b16 %v339
          %v530 = vunpack.c.h.b16 %v339
          %v531 = vunpack.c.l.b16 %v340
          %v532 = vunpack.c.h.b16 %v340
          %v533 = vunpack.c.l.b16 %v341
          %v534 = vunpack.c.h.b16 %v341
          %v535 = vunpack.c.l.b16 %v342
          %v536 = vunpack.c.h.b16 %v342
          %v537 = vunpack.c.l.b16 %v343
          %v538 = vunpack.c.h.b16 %v343
          %v539 = vunpack.c.l.b16 %v344
          %v540 = vunpack.c.h.b16 %v344
          %v541 = vunpack.c.l.b16 %v345
          %v542 = vunpack.c.h.b16 %v345
          %v543 = vunpack.c.l.b16 %v346
          %v544 = vunpack.c.h.b16 %v346
          %v545 = vpack.c.b16 %v483, %v481
          %v546 = vpack.c.b16 %v484, %v482
          %v547 = vpack.c.b16 %v487, %v485
          %v548 = vpack.c.b16 %v488, %v486
          %v549 = vpack.c.b16 %v491, %v489
          %v550 = vpack.c.b16 %v492, %v490
          %v551 = vpack.c.b16 %v495, %v493
          %v552 = vpack.c.b16 %v496, %v494
          %v553 = vpack.c.b16 %v499, %v497
          %v554 = vpack.c.b16 %v500, %v498
          %v555 = vpack.c.b16 %v503, %v501
          %v556 = vpack.c.b16 %v504, %v502
          %v557 = vpack.c.b16 %v507, %v505
          %v558 = vpack.c.b16 %v508, %v506
          %v559 = vpack.c.b16 %v511, %v509
          %v560 = vpack.c.b16 %v512, %v510
          %v561 = vpack.c.b16 %v515, %v513
          %v562 = vpack.c.b16 %v516, %v514
          %v563 = vpack.c.b16 %v519, %v517
          %v564 = vpack.c.b16 %v520, %v518
          %v565 = vpack.c.b16 %v523, %v521
          %v566 = vpack.c.b16 %v524, %v522
          %v567 = vpack.c.b16 %v527, %v525
          %v568 = vpack.c.b16 %v528, %v526
          %v569 = vpack.c.b16 %v531, %v529
          %v570 = vpack.c.b16 %v532, %v530
          %v571 = vpack.c.b16 %v535, %v533
          %v572 = vpack.c.b16 %v536, %v534
          %v573 = vpack.c.b16 %v539, %v537
          %v574 = vpack.c.b16 %v540, %v538
          %v575 = vpack.c.b16 %v543, %v541
          %v576 = vpack.c.b16 %v544, %v542
          %609 = vmatprep.subr.bf16.mxu0 %v546
          %610 = vmatpush1.bf16.msra.mxu0 %v545
          %611 = vmatprep.subr.bf16.mxu0 %v548
          %612 = vmatpush1.bf16.msra.mxu0 %v547
          %613 = vmatprep.subr.bf16.mxu0 %v550
          %614 = vmatpush1.bf16.msra.mxu0 %v549
          %615 = vmatprep.subr.bf16.mxu0 %v552
          %616 = vmatpush1.bf16.msra.mxu0 %v551
          %617 = vmatprep.subr.bf16.mxu0 %v554
          %618 = vmatpush1.bf16.msra.mxu0 %v553
          %619 = vmatprep.subr.bf16.mxu0 %v556
          %620 = vmatpush1.bf16.msra.mxu0 %v555
          %621 = vmatprep.subr.bf16.mxu0 %v558
          %622 = vmatpush1.bf16.msra.mxu0 %v557
          %623 = vmatprep.subr.bf16.mxu0 %v560
          %624 = vmatpush1.bf16.msra.mxu0 %v559
          %625 = vmatprep.subr.bf16.mxu0 %v562
          %626 = vmatpush1.bf16.msra.mxu0 %v561
          %627 = vmatprep.subr.bf16.mxu0 %v564
          %628 = vmatpush1.bf16.msra.mxu0 %v563
          %629 = vmatprep.subr.bf16.mxu0 %v566
          %630 = vmatpush1.bf16.msra.mxu0 %v565
          %631 = vmatprep.subr.bf16.mxu0 %v568
          %632 = vmatpush1.bf16.msra.mxu0 %v567
          %633 = vmatprep.subr.bf16.mxu0 %v570
          %634 = vmatpush1.bf16.msra.mxu0 %v569
          %635 = vmatprep.subr.bf16.mxu0 %v572
          %636 = vmatpush1.bf16.msra.mxu0 %v571
          %637 = vmatprep.subr.bf16.mxu0 %v574
          %638 = vmatpush1.bf16.msra.mxu0 %v573
          %639 = vmatprep.subr.bf16.mxu0 %v576
          %640 = vmatpush1.bf16.msra.mxu0 %v575
          %641 = vmatprep.mubr.bf16.mxu0 %v437
          %642 = vmatmul.mubr.bf16.gmra.mrb[0].mxu0 %v436
          %v643 = vpop.f32.mrb[0].mxu0
          %v644 = vadd.f32 %v442, %v643
          %v645 = vpop.f32.mrb[0].mxu0
          %v646 = vadd.f32 %v446, %v645
          %v647 = vpop.f32.mrb[0].mxu0
          %v648 = vpop.f32.mrb[0].mxu0
          %649 = vdwg.mxu0
          %v650 = vtanh.pop %v644
          %v651 = vtanh.pop %v646
          %v652 = vpack.c.bf16 %v650, %v650
          %v653 = vpack.c.bf16 %v651, %v651
          %v655 = vlaneseq
          %v656 = vshrl.u32 %v655, 7
          %v657 = vsub.s32 0, %v656
          %v658 = vrot.slane %v412, %v657
          %v659 = vlaneseq
          %v660 = vshrl.u32 %v659, 7
          %v661 = vsub.s32 1, %v660
          %v662 = vrot.slane %v412, %v661
          %v697 = vunpack.c.l.b16 %v347
          %v698 = vunpack.c.h.b16 %v347
          %v699 = vunpack.c.l.b16 %v348
          %v700 = vunpack.c.h.b16 %v348
          %v701 = vunpack.c.l.b16 %v349
          %v702 = vunpack.c.h.b16 %v349
          %v703 = vunpack.c.l.b16 %v350
          %v704 = vunpack.c.h.b16 %v350
          %v705 = vunpack.c.l.b16 %v351
          %v706 = vunpack.c.h.b16 %v351
          %v707 = vunpack.c.l.b16 %v352
          %v708 = vunpack.c.h.b16 %v352
          %v709 = vunpack.c.l.b16 %v353
          %v710 = vunpack.c.h.b16 %v353
          %v711 = vunpack.c.l.b16 %v354
          %v712 = vunpack.c.h.b16 %v354
          %v713 = vunpack.c.l.b16 %v355
          %v714 = vunpack.c.h.b16 %v355
          %v715 = vunpack.c.l.b16 %v356
          %v716 = vunpack.c.h.b16 %v356
          %v717 = vunpack.c.l.b16 %v357
          %v718 = vunpack.c.h.b16 %v357
          %v719 = vunpack.c.l.b16 %v358
          %v720 = vunpack.c.h.b16 %v358
          %v721 = vunpack.c.l.b16 %v359
          %v722 = vunpack.c.h.b16 %v359
          %v723 = vunpack.c.l.b16 %v360
          %v724 = vunpack.c.h.b16 %v360
          %v725 = vunpack.c.l.b16 %v361
          %v726 = vunpack.c.h.b16 %v361
          %v727 = vunpack.c.l.b16 %v362
          %v728 = vunpack.c.h.b16 %v362
          %v729 = vunpack.c.l.b16 %v363
          %v730 = vunpack.c.h.b16 %v363
          %v731 = vunpack.c.l.b16 %v364
          %v732 = vunpack.c.h.b16 %v364
          %v733 = vunpack.c.l.b16 %v365
          %v734 = vunpack.c.h.b16 %v365
          %v735 = vunpack.c.l.b16 %v366
          %v736 = vunpack.c.h.b16 %v366
          %v737 = vunpack.c.l.b16 %v367
          %v738 = vunpack.c.h.b16 %v367
          %v739 = vunpack.c.l.b16 %v368
          %v740 = vunpack.c.h.b16 %v368
          %v741 = vunpack.c.l.b16 %v369
          %v742 = vunpack.c.h.b16 %v369
          %v743 = vunpack.c.l.b16 %v370
          %v744 = vunpack.c.h.b16 %v370
          %v745 = vunpack.c.l.b16 %v371
          %v746 = vunpack.c.h.b16 %v371
          %v747 = vunpack.c.l.b16 %v372
          %v748 = vunpack.c.h.b16 %v372
          %v749 = vunpack.c.l.b16 %v373
          %v750 = vunpack.c.h.b16 %v373
          %v751 = vunpack.c.l.b16 %v374
          %v752 = vunpack.c.h.b16 %v374
          %v753 = vunpack.c.l.b16 %v375
          %v754 = vunpack.c.h.b16 %v375
          %v755 = vunpack.c.l.b16 %v376
          %v756 = vunpack.c.h.b16 %v376
          %v757 = vunpack.c.l.b16 %v377
          %v758 = vunpack.c.h.b16 %v377
          %v759 = vunpack.c.l.b16 %v378
          %v760 = vunpack.c.h.b16 %v378
          %v761 = vpack.c.b16 %v699, %v697
          %v762 = vpack.c.b16 %v700, %v698
          %v763 = vpack.c.b16 %v703, %v701
          %v764 = vpack.c.b16 %v704, %v702
          %v765 = vpack.c.b16 %v707, %v705
          %v766 = vpack.c.b16 %v708, %v706
          %v767 = vpack.c.b16 %v711, %v709
          %v768 = vpack.c.b16 %v712, %v710
          %v769 = vpack.c.b16 %v715, %v713
          %v770 = vpack.c.b16 %v716, %v714
          %v771 = vpack.c.b16 %v719, %v717
          %v772 = vpack.c.b16 %v720, %v718
          %v773 = vpack.c.b16 %v723, %v721
          %v774 = vpack.c.b16 %v724, %v722
          %v775 = vpack.c.b16 %v727, %v725
          %v776 = vpack.c.b16 %v728, %v726
          %v777 = vpack.c.b16 %v731, %v729
          %v778 = vpack.c.b16 %v732, %v730
          %v779 = vpack.c.b16 %v735, %v733
          %v780 = vpack.c.b16 %v736, %v734
          %v781 = vpack.c.b16 %v739, %v737
          %v782 = vpack.c.b16 %v740, %v738
          %v783 = vpack.c.b16 %v743, %v741
          %v784 = vpack.c.b16 %v744, %v742
          %v785 = vpack.c.b16 %v747, %v745
          %v786 = vpack.c.b16 %v748, %v746
          %v787 = vpack.c.b16 %v751, %v749
          %v788 = vpack.c.b16 %v752, %v750
          %v789 = vpack.c.b16 %v755, %v753
          %v790 = vpack.c.b16 %v756, %v754
          %v791 = vpack.c.b16 %v759, %v757
          %v792 = vpack.c.b16 %v760, %v758
          %825 = vmatprep.subr.bf16.mxu0 %v762
          %826 = vmatpush1.bf16.msra.mxu0 %v761
          %827 = vmatprep.subr.bf16.mxu0 %v764
          %828 = vmatpush1.bf16.msra.mxu0 %v763
          %829 = vmatprep.subr.bf16.mxu0 %v766
          %830 = vmatpush1.bf16.msra.mxu0 %v765
          %831 = vmatprep.subr.bf16.mxu0 %v768
          %832 = vmatpush1.bf16.msra.mxu0 %v767
          %833 = vmatprep.subr.bf16.mxu0 %v770
          %834 = vmatpush1.bf16.msra.mxu0 %v769
          %835 = vmatprep.subr.bf16.mxu0 %v772
          %836 = vmatpush1.bf16.msra.mxu0 %v771
          %837 = vmatprep.subr.bf16.mxu0 %v774
          %838 = vmatpush1.bf16.msra.mxu0 %v773
          %839 = vmatprep.subr.bf16.mxu0 %v776
          %840 = vmatpush1.bf16.msra.mxu0 %v775
          %841 = vmatprep.subr.bf16.mxu0 %v778
          %842 = vmatpush1.bf16.msra.mxu0 %v777
          %843 = vmatprep.subr.bf16.mxu0 %v780
          %844 = vmatpush1.bf16.msra.mxu0 %v779
          %845 = vmatprep.subr.bf16.mxu0 %v782
          %846 = vmatpush1.bf16.msra.mxu0 %v781
          %847 = vmatprep.subr.bf16.mxu0 %v784
          %848 = vmatpush1.bf16.msra.mxu0 %v783
          %849 = vmatprep.subr.bf16.mxu0 %v786
          %850 = vmatpush1.bf16.msra.mxu0 %v785
          %851 = vmatprep.subr.bf16.mxu0 %v788
          %852 = vmatpush1.bf16.msra.mxu0 %v787
          %853 = vmatprep.subr.bf16.mxu0 %v790
          %854 = vmatpush1.bf16.msra.mxu0 %v789
          %855 = vmatprep.subr.bf16.mxu0 %v792
          %856 = vmatpush1.bf16.msra.mxu0 %v791
          %857 = vmatprep.mubr.bf16.mxu0 %v653
          %858 = vmatmul.mubr.bf16.gmra.mrb[0].mxu0 %v652
          %v859 = vpop.f32.mrb[0].mxu0
          %v860 = vadd.f32 %v658, %v859
          %v861 = vpop.f32.mrb[0].mxu0
          %v862 = vadd.f32 %v662, %v861
          %v863 = vpop.f32.mrb[0].mxu0
          %v864 = vpop.f32.mrb[0].mxu0
          %865 = vdwg.mxu0
          %v866 = vtanh.pop %v860
          %v867 = vtanh.pop %v862
          %v868 = vpack.c.bf16 %v866, %v866
          %v869 = vpack.c.bf16 %v867, %v867
          %v871 = vlaneseq
          %v872 = vshrl.u32 %v871, 7
          %v873 = vsub.s32 0, %v872
          %v874 = vrot.slane %v413, %v873
          %v875 = vlaneseq
          %v876 = vshrl.u32 %v875, 7
          %v877 = vsub.s32 1, %v876
          %v878 = vrot.slane %v413, %v877
          %v913 = vunpack.c.l.b16 %v379
          %v914 = vunpack.c.h.b16 %v379
          %v915 = vunpack.c.l.b16 %v380
          %v916 = vunpack.c.h.b16 %v380
          %v917 = vunpack.c.l.b16 %v381
          %v918 = vunpack.c.h.b16 %v381
          %v919 = vunpack.c.l.b16 %v382
          %v920 = vunpack.c.h.b16 %v382
          %v921 = vunpack.c.l.b16 %v383
          %v922 = vunpack.c.h.b16 %v383
          %v923 = vunpack.c.l.b16 %v384
          %v924 = vunpack.c.h.b16 %v384
          %v925 = vunpack.c.l.b16 %v385
          %v926 = vunpack.c.h.b16 %v385
          %v927 = vunpack.c.l.b16 %v386
          %v928 = vunpack.c.h.b16 %v386
          %v929 = vunpack.c.l.b16 %v387
          %v930 = vunpack.c.h.b16 %v387
          %v931 = vunpack.c.l.b16 %v388
          %v932 = vunpack.c.h.b16 %v388
          %v933 = vunpack.c.l.b16 %v389
          %v934 = vunpack.c.h.b16 %v389
          %v935 = vunpack.c.l.b16 %v390
          %v936 = vunpack.c.h.b16 %v390
          %v937 = vunpack.c.l.b16 %v391
          %v938 = vunpack.c.h.b16 %v391
          %v939 = vunpack.c.l.b16 %v392
          %v940 = vunpack.c.h.b16 %v392
          %v941 = vunpack.c.l.b16 %v393
          %v942 = vunpack.c.h.b16 %v393
          %v943 = vunpack.c.l.b16 %v394
          %v944 = vunpack.c.h.b16 %v394
          %v945 = vunpack.c.l.b16 %v395
          %v946 = vunpack.c.h.b16 %v395
          %v947 = vunpack.c.l.b16 %v396
          %v948 = vunpack.c.h.b16 %v396
          %v949 = vunpack.c.l.b16 %v397
          %v950 = vunpack.c.h.b16 %v397
          %v951 = vunpack.c.l.b16 %v398
          %v952 = vunpack.c.h.b16 %v398
          %v953 = vunpack.c.l.b16 %v399
          %v954 = vunpack.c.h.b16 %v399
          %v955 = vunpack.c.l.b16 %v400
          %v956 = vunpack.c.h.b16 %v400
          %v957 = vunpack.c.l.b16 %v401
          %v958 = vunpack.c.h.b16 %v401
          %v959 = vunpack.c.l.b16 %v402
          %v960 = vunpack.c.h.b16 %v402
          %v961 = vunpack.c.l.b16 %v403
          %v962 = vunpack.c.h.b16 %v403
          %v963 = vunpack.c.l.b16 %v404
          %v964 = vunpack.c.h.b16 %v404
          %v965 = vunpack.c.l.b16 %v405
          %v966 = vunpack.c.h.b16 %v405
          %v967 = vunpack.c.l.b16 %v406
          %v968 = vunpack.c.h.b16 %v406
          %v969 = vunpack.c.l.b16 %v407
          %v970 = vunpack.c.h.b16 %v407
          %v971 = vunpack.c.l.b16 %v408
          %v972 = vunpack.c.h.b16 %v408
          %v973 = vunpack.c.l.b16 %v409
          %v974 = vunpack.c.h.b16 %v409
          %v975 = vunpack.c.l.b16 %v410
          %v976 = vunpack.c.h.b16 %v410
          %v977 = vpack.c.b16 %v915, %v913
          %v978 = vpack.c.b16 %v916, %v914
          %v979 = vpack.c.b16 %v919, %v917
          %v980 = vpack.c.b16 %v920, %v918
          %v981 = vpack.c.b16 %v923, %v921
          %v982 = vpack.c.b16 %v924, %v922
          %v983 = vpack.c.b16 %v927, %v925
          %v984 = vpack.c.b16 %v928, %v926
          %v985 = vpack.c.b16 %v931, %v929
          %v986 = vpack.c.b16 %v932, %v930
          %v987 = vpack.c.b16 %v935, %v933
          %v988 = vpack.c.b16 %v936, %v934
          %v989 = vpack.c.b16 %v939, %v937
          %v990 = vpack.c.b16 %v940, %v938
          %v991 = vpack.c.b16 %v943, %v941
          %v992 = vpack.c.b16 %v944, %v942
          %v993 = vpack.c.b16 %v947, %v945
          %v994 = vpack.c.b16 %v948, %v946
          %v995 = vpack.c.b16 %v951, %v949
          %v996 = vpack.c.b16 %v952, %v950
          %v997 = vpack.c.b16 %v955, %v953
          %v998 = vpack.c.b16 %v956, %v954
          %v999 = vpack.c.b16 %v959, %v957
          %v1000 = vpack.c.b16 %v960, %v958
          %v1001 = vpack.c.b16 %v963, %v961
          %v1002 = vpack.c.b16 %v964, %v962
          %v1003 = vpack.c.b16 %v967, %v965
          %v1004 = vpack.c.b16 %v968, %v966
          %v1005 = vpack.c.b16 %v971, %v969
          %v1006 = vpack.c.b16 %v972, %v970
          %v1007 = vpack.c.b16 %v975, %v973
          %v1008 = vpack.c.b16 %v976, %v974
          %1041 = vmatprep.subr.bf16.mxu0 %v978
          %1042 = vmatpush1.bf16.msra.mxu0 %v977
          %1043 = vmatprep.subr.bf16.mxu0 %v980
          %1044 = vmatpush1.bf16.msra.mxu0 %v979
          %1045 = vmatprep.subr.bf16.mxu0 %v982
          %1046 = vmatpush1.bf16.msra.mxu0 %v981
          %1047 = vmatprep.subr.bf16.mxu0 %v984
          %1048 = vmatpush1.bf16.msra.mxu0 %v983
          %1049 = vmatprep.subr.bf16.mxu0 %v986
          %1050 = vmatpush1.bf16.msra.mxu0 %v985
          %1051 = vmatprep.subr.bf16.mxu0 %v988
          %1052 = vmatpush1.bf16.msra.mxu0 %v987
          %1053 = vmatprep.subr.bf16.mxu0 %v990
          %1054 = vmatpush1.bf16.msra.mxu0 %v989
          %1055 = vmatprep.subr.bf16.mxu0 %v992
          %1056 = vmatpush1.bf16.msra.mxu0 %v991
          %1057 = vmatprep.subr.bf16.mxu0 %v994
          %1058 = vmatpush1.bf16.msra.mxu0 %v993
          %1059 = vmatprep.subr.bf16.mxu0 %v996
          %1060 = vmatpush1.bf16.msra.mxu0 %v995
          %1061 = vmatprep.subr.bf16.mxu0 %v998
          %1062 = vmatpush1.bf16.msra.mxu0 %v997
          %1063 = vmatprep.subr.bf16.mxu0 %v1000
          %1064 = vmatpush1.bf16.msra.mxu0 %v999
          %1065 = vmatprep.subr.bf16.mxu0 %v1002
          %1066 = vmatpush1.bf16.msra.mxu0 %v1001
          %1067 = vmatprep.subr.bf16.mxu0 %v1004
          %1068 = vmatpush1.bf16.msra.mxu0 %v1003
          %1069 = vmatprep.subr.bf16.mxu0 %v1006
          %1070 = vmatpush1.bf16.msra.mxu0 %v1005
          %1071 = vmatprep.subr.bf16.mxu0 %v1008
          %1072 = vmatpush1.bf16.msra.mxu0 %v1007
          %1073 = vmatprep.mubr.bf16.mxu0 %v869
          %1074 = vmatmul.mubr.bf16.gmra.mrb[0].mxu0 %v868
          %v1075 = vpop.f32.mrb[0].mxu0
          %v1076 = vadd.f32 %v874, %v1075
          %v1077 = vpop.f32.mrb[0].mxu0
          %v1078 = vadd.f32 %v878, %v1077
          %v1079 = vpop.f32.mrb[0].mxu0
          %v1080 = vpop.f32.mrb[0].mxu0
          %1081 = vdwg.mxu0
          %v1084 = vcombine.low %v1076, %v1078
          %v1086 = vunpack.c.l.s4 1983009808
          %v1087 = vunpack.c.0.s8 %v1086
          %v1088 = vlaneseq
          %v1089 = vshrl.u32 %v1088, 7
          %v1090 = vsub.s32 %v1087, %v1089
          %v1091 = vrot.slane %v1084, %v1090
          %1093 = vst [vmem:[#allocation2] sm:$0xf] %v1091
        $region72: #{tpu_custom_call.1} parent=47 // pred_fallthru
          _
        %v1094 = vld [vmem:[#allocation2] sm:$0xf]
        %vm1095 = vcmask 1041408
        %vm1096 = vcmask 584706
        %vm1097 = vmor %vm1096, %vm1095
        %1098 = vst.msk [vmem:[%s313] sm:$0xf] %vm1097, %v1094
        %v1099 = vld [vmem:[#allocation2] sm:$0xf]
        %v1102 = vunpack.c.l.s4 1983009808
        %v1103 = vunpack.c.0.s8 %v1102
        %v1104 = vlaneseq
        %v1105 = vshrl.u32 %v1104, 7
        %v1106 = vsub.s32 %v1103, %v1105
        %v1107 = vrot.slane %v1099, %v1106
        %v1108 = vcombine.high %v1107, %v1107
        %v1111 = vpack.c.bf16 %v1107, %v1107
        %v1112 = vpack.c.bf16 %v1108, %v1108
        %v1114 = vlaneseq
        %v1115 = vshrl.u32 %v1114, 7
        %v1116 = vsub.s32 0, %v1115
        %v1117 = vrot.slane %v411, %v1116
        %v1118 = vlaneseq
        %v1119 = vshrl.u32 %v1118, 7
        %v1120 = vsub.s32 1, %v1119
        %v1121 = vrot.slane %v411, %v1120
        %v1156 = vunpack.c.l.b16 %v315
        %v1157 = vunpack.c.h.b16 %v315
        %v1158 = vunpack.c.l.b16 %v316
        %v1159 = vunpack.c.h.b16 %v316
        %v1160 = vunpack.c.l.b16 %v317
        %v1161 = vunpack.c.h.b16 %v317
        %v1162 = vunpack.c.l.b16 %v318
        %v1163 = vunpack.c.h.b16 %v318
        %v1164 = vunpack.c.l.b16 %v319
        %v1165 = vunpack.c.h.b16 %v319
        %v1166 = vunpack.c.l.b16 %v320
        %v1167 = vunpack.c.h.b16 %v320
        %v1168 = vunpack.c.l.b16 %v321
        %v1169 = vunpack.c.h.b16 %v321
        %v1170 = vunpack.c.l.b16 %v322
        %v1171 = vunpack.c.h.b16 %v322
        %v1172 = vunpack.c.l.b16 %v323
        %v1173 = vunpack.c.h.b16 %v323
        %v1174 = vunpack.c.l.b16 %v324
        %v1175 = vunpack.c.h.b16 %v324
        %v1176 = vunpack.c.l.b16 %v325
        %v1177 = vunpack.c.h.b16 %v325
        %v1178 = vunpack.c.l.b16 %v326
        %v1179 = vunpack.c.h.b16 %v326
        %v1180 = vunpack.c.l.b16 %v327
        %v1181 = vunpack.c.h.b16 %v327
        %v1182 = vunpack.c.l.b16 %v328
        %v1183 = vunpack.c.h.b16 %v328
        %v1184 = vunpack.c.l.b16 %v329
        %v1185 = vunpack.c.h.b16 %v329
        %v1186 = vunpack.c.l.b16 %v330
        %v1187 = vunpack.c.h.b16 %v330
        %v1188 = vunpack.c.l.b16 %v331
        %v1189 = vunpack.c.h.b16 %v331
        %v1190 = vunpack.c.l.b16 %v332
        %v1191 = vunpack.c.h.b16 %v332
        %v1192 = vunpack.c.l.b16 %v333
        %v1193 = vunpack.c.h.b16 %v333
        %v1194 = vunpack.c.l.b16 %v334
        %v1195 = vunpack.c.h.b16 %v334
        %v1196 = vunpack.c.l.b16 %v335
        %v1197 = vunpack.c.h.b16 %v335
        %v1198 = vunpack.c.l.b16 %v336
        %v1199 = vunpack.c.h.b16 %v336
        %v1200 = vunpack.c.l.b16 %v337
        %v1201 = vunpack.c.h.b16 %v337
        %v1202 = vunpack.c.l.b16 %v338
        %v1203 = vunpack.c.h.b16 %v338
        %v1204 = vunpack.c.l.b16 %v339
        %v1205 = vunpack.c.h.b16 %v339
        %v1206 = vunpack.c.l.b16 %v340
        %v1207 = vunpack.c.h.b16 %v340
        %v1208 = vunpack.c.l.b16 %v341
        %v1209 = vunpack.c.h.b16 %v341
        %v1210 = vunpack.c.l.b16 %v342
        %v1211 = vunpack.c.h.b16 %v342
        %v1212 = vunpack.c.l.b16 %v343
        %v1213 = vunpack.c.h.b16 %v343
        %v1214 = vunpack.c.l.b16 %v344
        %v1215 = vunpack.c.h.b16 %v344
        %v1216 = vunpack.c.l.b16 %v345
        %v1217 = vunpack.c.h.b16 %v345
        %v1218 = vunpack.c.l.b16 %v346
        %v1219 = vunpack.c.h.b16 %v346
        %v1220 = vpack.c.b16 %v1158, %v1156
        %v1221 = vpack.c.b16 %v1159, %v1157
        %v1222 = vpack.c.b16 %v1162, %v1160
        %v1223 = vpack.c.b16 %v1163, %v1161
        %v1224 = vpack.c.b16 %v1166, %v1164
        %v1225 = vpack.c.b16 %v1167, %v1165
        %v1226 = vpack.c.b16 %v1170, %v1168
        %v1227 = vpack.c.b16 %v1171, %v1169
        %v1228 = vpack.c.b16 %v1174, %v1172
        %v1229 = vpack.c.b16 %v1175, %v1173
        %v1230 = vpack.c.b16 %v1178, %v1176
        %v1231 = vpack.c.b16 %v1179, %v1177
        %v1232 = vpack.c.b16 %v1182, %v1180
        %v1233 = vpack.c.b16 %v1183, %v1181
        %v1234 = vpack.c.b16 %v1186, %v1184
        %v1235 = vpack.c.b16 %v1187, %v1185
        %v1236 = vpack.c.b16 %v1190, %v1188
        %v1237 = vpack.c.b16 %v1191, %v1189
        %v1238 = vpack.c.b16 %v1194, %v1192
        %v1239 = vpack.c.b16 %v1195, %v1193
        %v1240 = vpack.c.b16 %v1198, %v1196
        %v1241 = vpack.c.b16 %v1199, %v1197
        %v1242 = vpack.c.b16 %v1202, %v1200
        %v1243 = vpack.c.b16 %v1203, %v1201
        %v1244 = vpack.c.b16 %v1206, %v1204
        %v1245 = vpack.c.b16 %v1207, %v1205
        %v1246 = vpack.c.b16 %v1210, %v1208
        %v1247 = vpack.c.b16 %v1211, %v1209
        %v1248 = vpack.c.b16 %v1214, %v1212
        %v1249 = vpack.c.b16 %v1215, %v1213
        %v1250 = vpack.c.b16 %v1218, %v1216
        %v1251 = vpack.c.b16 %v1219, %v1217
        %1284 = vmatprep.subr.bf16.mxu0 %v1221
        %1285 = vmatpush1.bf16.msra.mxu0 %v1220
        %1286 = vmatprep.subr.bf16.mxu0 %v1223
        %1287 = vmatpush1.bf16.msra.mxu0 %v1222
        %1288 = vmatprep.subr.bf16.mxu0 %v1225
        %1289 = vmatpush1.bf16.msra.mxu0 %v1224
        %1290 = vmatprep.subr.bf16.mxu0 %v1227
        %1291 = vmatpush1.bf16.msra.mxu0 %v1226
        %1292 = vmatprep.subr.bf16.mxu0 %v1229
        %1293 = vmatpush1.bf16.msra.mxu0 %v1228
        %1294 = vmatprep.subr.bf16.mxu0 %v1231
        %1295 = vmatpush1.bf16.msra.mxu0 %v1230
        %1296 = vmatprep.subr.bf16.mxu0 %v1233
        %1297 = vmatpush1.bf16.msra.mxu0 %v1232
        %1298 = vmatprep.subr.bf16.mxu0 %v1235
        %1299 = vmatpush1.bf16.msra.mxu0 %v1234
        %1300 = vmatprep.subr.bf16.mxu0 %v1237
        %1301 = vmatpush1.bf16.msra.mxu0 %v1236
        %1302 = vmatprep.subr.bf16.mxu0 %v1239
        %1303 = vmatpush1.bf16.msra.mxu0 %v1238
        %1304 = vmatprep.subr.bf16.mxu0 %v1241
        %1305 = vmatpush1.bf16.msra.mxu0 %v1240
        %1306 = vmatprep.subr.bf16.mxu0 %v1243
        %1307 = vmatpush1.bf16.msra.mxu0 %v1242
        %1308 = vmatprep.subr.bf16.mxu0 %v1245
        %1309 = vmatpush1.bf16.msra.mxu0 %v1244
        %1310 = vmatprep.subr.bf16.mxu0 %v1247
        %1311 = vmatpush1.bf16.msra.mxu0 %v1246
        %1312 = vmatprep.subr.bf16.mxu0 %v1249
        %1313 = vmatpush1.bf16.msra.mxu0 %v1248
        %1314 = vmatprep.subr.bf16.mxu0 %v1251
        %1315 = vmatpush1.bf16.msra.mxu0 %v1250
        %1316 = vmatprep.mubr.bf16.mxu0 %v1112
        %1317 = vmatmul.mubr.bf16.gmra.mrb[0].mxu0 %v1111
        %v1318 = vpop.f32.mrb[0].mxu0
        %v1319 = vadd.f32 %v1117, %v1318
        %v1320 = vpop.f32.mrb[0].mxu0
        %v1321 = vadd.f32 %v1121, %v1320
        %v1322 = vpop.f32.mrb[0].mxu0
        %v1323 = vpop.f32.mrb[0].mxu0
        %1324 = vdwg.mxu0
        %v1325 = vtanh.pop %v1319
        %v1326 = vtanh.pop %v1321
        %v1327 = vpack.c.bf16 %v1325, %v1325
        %v1328 = vpack.c.bf16 %v1326, %v1326
        %v1330 = vlaneseq
        %v1331 = vshrl.u32 %v1330, 7
        %v1332 = vsub.s32 0, %v1331
        %v1333 = vrot.slane %v412, %v1332
        %v1334 = vlaneseq
        %v1335 = vshrl.u32 %v1334, 7
        %v1336 = vsub.s32 1, %v1335
        %v1337 = vrot.slane %v412, %v1336
        %v1372 = vunpack.c.l.b16 %v347
        %v1373 = vunpack.c.h.b16 %v347
        %v1374 = vunpack.c.l.b16 %v348
        %v1375 = vunpack.c.h.b16 %v348
        %v1376 = vunpack.c.l.b16 %v349
        %v1377 = vunpack.c.h.b16 %v349
        %v1378 = vunpack.c.l.b16 %v350
        %v1379 = vunpack.c.h.b16 %v350
        %v1380 = vunpack.c.l.b16 %v351
        %v1381 = vunpack.c.h.b16 %v351
        %v1382 = vunpack.c.l.b16 %v352
        %v1383 = vunpack.c.h.b16 %v352
        %v1384 = vunpack.c.l.b16 %v353
        %v1385 = vunpack.c.h.b16 %v353
        %v1386 = vunpack.c.l.b16 %v354
        %v1387 = vunpack.c.h.b16 %v354
        %v1388 = vunpack.c.l.b16 %v355
        %v1389 = vunpack.c.h.b16 %v355
        %v1390 = vunpack.c.l.b16 %v356
        %v1391 = vunpack.c.h.b16 %v356
        %v1392 = vunpack.c.l.b16 %v357
        %v1393 = vunpack.c.h.b16 %v357
        %v1394 = vunpack.c.l.b16 %v358
        %v1395 = vunpack.c.h.b16 %v358
        %v1396 = vunpack.c.l.b16 %v359
        %v1397 = vunpack.c.h.b16 %v359
        %v1398 = vunpack.c.l.b16 %v360
        %v1399 = vunpack.c.h.b16 %v360
        %v1400 = vunpack.c.l.b16 %v361
        %v1401 = vunpack.c.h.b16 %v361
        %v1402 = vunpack.c.l.b16 %v362
        %v1403 = vunpack.c.h.b16 %v362
        %v1404 = vunpack.c.l.b16 %v363
        %v1405 = vunpack.c.h.b16 %v363
        %v1406 = vunpack.c.l.b16 %v364
        %v1407 = vunpack.c.h.b16 %v364
        %v1408 = vunpack.c.l.b16 %v365
        %v1409 = vunpack.c.h.b16 %v365
        %v1410 = vunpack.c.l.b16 %v366
        %v1411 = vunpack.c.h.b16 %v366
        %v1412 = vunpack.c.l.b16 %v367
        %v1413 = vunpack.c.h.b16 %v367
        %v1414 = vunpack.c.l.b16 %v368
        %v1415 = vunpack.c.h.b16 %v368
        %v1416 = vunpack.c.l.b16 %v369
        %v1417 = vunpack.c.h.b16 %v369
        %v1418 = vunpack.c.l.b16 %v370
        %v1419 = vunpack.c.h.b16 %v370
        %v1420 = vunpack.c.l.b16 %v371
        %v1421 = vunpack.c.h.b16 %v371
        %v1422 = vunpack.c.l.b16 %v372
        %v1423 = vunpack.c.h.b16 %v372
        %v1424 = vunpack.c.l.b16 %v373
        %v1425 = vunpack.c.h.b16 %v373
        %v1426 = vunpack.c.l.b16 %v374
        %v1427 = vunpack.c.h.b16 %v374
        %v1428 = vunpack.c.l.b16 %v375
        %v1429 = vunpack.c.h.b16 %v375
        %v1430 = vunpack.c.l.b16 %v376
        %v1431 = vunpack.c.h.b16 %v376
        %v1432 = vunpack.c.l.b16 %v377
        %v1433 = vunpack.c.h.b16 %v377
        %v1434 = vunpack.c.l.b16 %v378
        %v1435 = vunpack.c.h.b16 %v378
        %v1436 = vpack.c.b16 %v1374, %v1372
        %v1437 = vpack.c.b16 %v1375, %v1373
        %v1438 = vpack.c.b16 %v1378, %v1376
        %v1439 = vpack.c.b16 %v1379, %v1377
        %v1440 = vpack.c.b16 %v1382, %v1380
        %v1441 = vpack.c.b16 %v1383, %v1381
        %v1442 = vpack.c.b16 %v1386, %v1384
        %v1443 = vpack.c.b16 %v1387, %v1385
        %v1444 = vpack.c.b16 %v1390, %v1388
        %v1445 = vpack.c.b16 %v1391, %v1389
        %v1446 = vpack.c.b16 %v1394, %v1392
        %v1447 = vpack.c.b16 %v1395, %v1393
        %v1448 = vpack.c.b16 %v1398, %v1396
        %v1449 = vpack.c.b16 %v1399, %v1397
        %v1450 = vpack.c.b16 %v1402, %v1400
        %v1451 = vpack.c.b16 %v1403, %v1401
        %v1452 = vpack.c.b16 %v1406, %v1404
        %v1453 = vpack.c.b16 %v1407, %v1405
        %v1454 = vpack.c.b16 %v1410, %v1408
        %v1455 = vpack.c.b16 %v1411, %v1409
        %v1456 = vpack.c.b16 %v1414, %v1412
        %v1457 = vpack.c.b16 %v1415, %v1413
        %v1458 = vpack.c.b16 %v1418, %v1416
        %v1459 = vpack.c.b16 %v1419, %v1417
        %v1460 = vpack.c.b16 %v1422, %v1420
        %v1461 = vpack.c.b16 %v1423, %v1421
        %v1462 = vpack.c.b16 %v1426, %v1424
        %v1463 = vpack.c.b16 %v1427, %v1425
        %v1464 = vpack.c.b16 %v1430, %v1428
        %v1465 = vpack.c.b16 %v1431, %v1429
        %v1466 = vpack.c.b16 %v1434, %v1432
        %v1467 = vpack.c.b16 %v1435, %v1433
        %1500 = vmatprep.subr.bf16.mxu0 %v1437
        %1501 = vmatpush1.bf16.msra.mxu0 %v1436
        %1502 = vmatprep.subr.bf16.mxu0 %v1439
        %1503 = vmatpush1.bf16.msra.mxu0 %v1438
        %1504 = vmatprep.subr.bf16.mxu0 %v1441
        %1505 = vmatpush1.bf16.msra.mxu0 %v1440
        %1506 = vmatprep.subr.bf16.mxu0 %v1443
        %1507 = vmatpush1.bf16.msra.mxu0 %v1442
        %1508 = vmatprep.subr.bf16.mxu0 %v1445
        %1509 = vmatpush1.bf16.msra.mxu0 %v1444
        %1510 = vmatprep.subr.bf16.mxu0 %v1447
        %1511 = vmatpush1.bf16.msra.mxu0 %v1446
        %1512 = vmatprep.subr.bf16.mxu0 %v1449
        %1513 = vmatpush1.bf16.msra.mxu0 %v1448
        %1514 = vmatprep.subr.bf16.mxu0 %v1451
        %1515 = vmatpush1.bf16.msra.mxu0 %v1450
        %1516 = vmatprep.subr.bf16.mxu0 %v1453
        %1517 = vmatpush1.bf16.msra.mxu0 %v1452
        %1518 = vmatprep.subr.bf16.mxu0 %v1455
        %1519 = vmatpush1.bf16.msra.mxu0 %v1454
        %1520 = vmatprep.subr.bf16.mxu0 %v1457
        %1521 = vmatpush1.bf16.msra.mxu0 %v1456
        %1522 = vmatprep.subr.bf16.mxu0 %v1459
        %1523 = vmatpush1.bf16.msra.mxu0 %v1458
        %1524 = vmatprep.subr.bf16.mxu0 %v1461
        %1525 = vmatpush1.bf16.msra.mxu0 %v1460
        %1526 = vmatprep.subr.bf16.mxu0 %v1463
        %1527 = vmatpush1.bf16.msra.mxu0 %v1462
        %1528 = vmatprep.subr.bf16.mxu0 %v1465
        %1529 = vmatpush1.bf16.msra.mxu0 %v1464
        %1530 = vmatprep.subr.bf16.mxu0 %v1467
        %1531 = vmatpush1.bf16.msra.mxu0 %v1466
        %1532 = vmatprep.mubr.bf16.mxu0 %v1328
        %1533 = vmatmul.mubr.bf16.gmra.mrb[0].mxu0 %v1327
        %v1534 = vpop.f32.mrb[0].mxu0
        %v1535 = vadd.f32 %v1333, %v1534
        %v1536 = vpop.f32.mrb[0].mxu0
        %v1537 = vadd.f32 %v1337, %v1536
        %v1538 = vpop.f32.mrb[0].mxu0
        %v1539 = vpop.f32.mrb[0].mxu0
        %1540 = vdwg.mxu0
        %v1541 = vtanh.pop %v1535
        %v1542 = vtanh.pop %v1537
        %v1543 = vpack.c.bf16 %v1541, %v1541
        %v1544 = vpack.c.bf16 %v1542, %v1542
        %v1546 = vlaneseq
        %v1547 = vshrl.u32 %v1546, 7
        %v1548 = vsub.s32 0, %v1547
        %v1549 = vrot.slane %v413, %v1548
        %v1550 = vlaneseq
        %v1551 = vshrl.u32 %v1550, 7
        %v1552 = vsub.s32 1, %v1551
        %v1553 = vrot.slane %v413, %v1552
        %v1588 = vunpack.c.l.b16 %v379
        %v1589 = vunpack.c.h.b16 %v379
        %v1590 = vunpack.c.l.b16 %v380
        %v1591 = vunpack.c.h.b16 %v380
        %v1592 = vunpack.c.l.b16 %v381
        %v1593 = vunpack.c.h.b16 %v381
        %v1594 = vunpack.c.l.b16 %v382
        %v1595 = vunpack.c.h.b16 %v382
        %v1596 = vunpack.c.l.b16 %v383
        %v1597 = vunpack.c.h.b16 %v383
        %v1598 = vunpack.c.l.b16 %v384
        %v1599 = vunpack.c.h.b16 %v384
        %v1600 = vunpack.c.l.b16 %v385
        %v1601 = vunpack.c.h.b16 %v385
        %v1602 = vunpack.c.l.b16 %v386
        %v1603 = vunpack.c.h.b16 %v386
        %v1604 = vunpack.c.l.b16 %v387
        %v1605 = vunpack.c.h.b16 %v387
        %v1606 = vunpack.c.l.b16 %v388
        %v1607 = vunpack.c.h.b16 %v388
        %v1608 = vunpack.c.l.b16 %v389
        %v1609 = vunpack.c.h.b16 %v389
        %v1610 = vunpack.c.l.b16 %v390
        %v1611 = vunpack.c.h.b16 %v390
        %v1612 = vunpack.c.l.b16 %v391
        %v1613 = vunpack.c.h.b16 %v391
        %v1614 = vunpack.c.l.b16 %v392
        %v1615 = vunpack.c.h.b16 %v392
        %v1616 = vunpack.c.l.b16 %v393
        %v1617 = vunpack.c.h.b16 %v393
        %v1618 = vunpack.c.l.b16 %v394
        %v1619 = vunpack.c.h.b16 %v394
        %v1620 = vunpack.c.l.b16 %v395
        %v1621 = vunpack.c.h.b16 %v395
        %v1622 = vunpack.c.l.b16 %v396
        %v1623 = vunpack.c.h.b16 %v396
        %v1624 = vunpack.c.l.b16 %v397
        %v1625 = vunpack.c.h.b16 %v397
        %v1626 = vunpack.c.l.b16 %v398
        %v1627 = vunpack.c.h.b16 %v398
        %v1628 = vunpack.c.l.b16 %v399
        %v1629 = vunpack.c.h.b16 %v399
        %v1630 = vunpack.c.l.b16 %v400
        %v1631 = vunpack.c.h.b16 %v400
        %v1632 = vunpack.c.l.b16 %v401
        %v1633 = vunpack.c.h.b16 %v401
        %v1634 = vunpack.c.l.b16 %v402
        %v1635 = vunpack.c.h.b16 %v402
        %v1636 = vunpack.c.l.b16 %v403
        %v1637 = vunpack.c.h.b16 %v403
        %v1638 = vunpack.c.l.b16 %v404
        %v1639 = vunpack.c.h.b16 %v404
        %v1640 = vunpack.c.l.b16 %v405
        %v1641 = vunpack.c.h.b16 %v405
        %v1642 = vunpack.c.l.b16 %v406
        %v1643 = vunpack.c.h.b16 %v406
        %v1644 = vunpack.c.l.b16 %v407
        %v1645 = vunpack.c.h.b16 %v407
        %v1646 = vunpack.c.l.b16 %v408
        %v1647 = vunpack.c.h.b16 %v408
        %v1648 = vunpack.c.l.b16 %v409
        %v1649 = vunpack.c.h.b16 %v409
        %v1650 = vunpack.c.l.b16 %v410
        %v1651 = vunpack.c.h.b16 %v410
        %v1652 = vpack.c.b16 %v1590, %v1588
        %v1653 = vpack.c.b16 %v1591, %v1589
        %v1654 = vpack.c.b16 %v1594, %v1592
        %v1655 = vpack.c.b16 %v1595, %v1593
        %v1656 = vpack.c.b16 %v1598, %v1596
        %v1657 = vpack.c.b16 %v1599, %v1597
        %v1658 = vpack.c.b16 %v1602, %v1600
        %v1659 = vpack.c.b16 %v1603, %v1601
        %v1660 = vpack.c.b16 %v1606, %v1604
        %v1661 = vpack.c.b16 %v1607, %v1605
        %v1662 = vpack.c.b16 %v1610, %v1608
        %v1663 = vpack.c.b16 %v1611, %v1609
        %v1664 = vpack.c.b16 %v1614, %v1612
        %v1665 = vpack.c.b16 %v1615, %v1613
        %v1666 = vpack.c.b16 %v1618, %v1616
        %v1667 = vpack.c.b16 %v1619, %v1617
        %v1668 = vpack.c.b16 %v1622, %v1620
        %v1669 = vpack.c.b16 %v1623, %v1621
        %v1670 = vpack.c.b16 %v1626, %v1624
        %v1671 = vpack.c.b16 %v1627, %v1625
        %v1672 = vpack.c.b16 %v1630, %v1628
        %v1673 = vpack.c.b16 %v1631, %v1629
        %v1674 = vpack.c.b16 %v1634, %v1632
        %v1675 = vpack.c.b16 %v1635, %v1633
        %v1676 = vpack.c.b16 %v1638, %v1636
        %v1677 = vpack.c.b16 %v1639, %v1637
        %v1678 = vpack.c.b16 %v1642, %v1640
        %v1679 = vpack.c.b16 %v1643, %v1641
        %v1680 = vpack.c.b16 %v1646, %v1644
        %v1681 = vpack.c.b16 %v1647, %v1645
        %v1682 = vpack.c.b16 %v1650, %v1648
        %v1683 = vpack.c.b16 %v1651, %v1649
        %1716 = vmatprep.subr.bf16.mxu0 %v1653
        %1717 = vmatpush1.bf16.msra.mxu0 %v1652
        %1718 = vmatprep.subr.bf16.mxu0 %v1655
        %1719 = vmatpush1.bf16.msra.mxu0 %v1654
        %1720 = vmatprep.subr.bf16.mxu0 %v1657
        %1721 = vmatpush1.bf16.msra.mxu0 %v1656
        %1722 = vmatprep.subr.bf16.mxu0 %v1659
        %1723 = vmatpush1.bf16.msra.mxu0 %v1658
        %1724 = vmatprep.subr.bf16.mxu0 %v1661
        %1725 = vmatpush1.bf16.msra.mxu0 %v1660
        %1726 = vmatprep.subr.bf16.mxu0 %v1663
        %1727 = vmatpush1.bf16.msra.mxu0 %v1662
        %1728 = vmatprep.subr.bf16.mxu0 %v1665
        %1729 = vmatpush1.bf16.msra.mxu0 %v1664
        %1730 = vmatprep.subr.bf16.mxu0 %v1667
        %1731 = vmatpush1.bf16.msra.mxu0 %v1666
        %1732 = vmatprep.subr.bf16.mxu0 %v1669
        %1733 = vmatpush1.bf16.msra.mxu0 %v1668
        %1734 = vmatprep.subr.bf16.mxu0 %v1671
        %1735 = vmatpush1.bf16.msra.mxu0 %v1670
        %1736 = vmatprep.subr.bf16.mxu0 %v1673
        %1737 = vmatpush1.bf16.msra.mxu0 %v1672
        %1738 = vmatprep.subr.bf16.mxu0 %v1675
        %1739 = vmatpush1.bf16.msra.mxu0 %v1674
        %1740 = vmatprep.subr.bf16.mxu0 %v1677
        %1741 = vmatpush1.bf16.msra.mxu0 %v1676
        %1742 = vmatprep.subr.bf16.mxu0 %v1679
        %1743 = vmatpush1.bf16.msra.mxu0 %v1678
        %1744 = vmatprep.subr.bf16.mxu0 %v1681
        %1745 = vmatpush1.bf16.msra.mxu0 %v1680
        %1746 = vmatprep.subr.bf16.mxu0 %v1683
        %1747 = vmatpush1.bf16.msra.mxu0 %v1682
        %1748 = vmatprep.mubr.bf16.mxu0 %v1544
        %1749 = vmatmul.mubr.bf16.gmra.mrb[0].mxu0 %v1543
        %v1750 = vpop.f32.mrb[0].mxu0
        %v1751 = vadd.f32 %v1549, %v1750
        %v1752 = vpop.f32.mrb[0].mxu0
        %v1753 = vadd.f32 %v1553, %v1752
        %v1754 = vpop.f32.mrb[0].mxu0
        %v1755 = vpop.f32.mrb[0].mxu0
        %1756 = vdwg.mxu0
        %v1759 = vcombine.low %v1751, %v1753
        %v1761 = vunpack.c.l.s4 1983009808
        %v1762 = vunpack.c.0.s8 %v1761
        %v1763 = vlaneseq
        %v1764 = vshrl.u32 %v1763, 7
        %v1765 = vsub.s32 %v1762, %v1764
        %v1766 = vrot.slane %v1759, %v1765
        %1768 = vst [vmem:[#allocation2] sm:$0xf] %v1766
        %v1769 = vld [vmem:[#allocation2] sm:$0xf]
        %s1770 = scalar_lea.vmem %s313, 4 [#allocation11]
        %1771 = vst.msk [vmem:[%s1770] sm:$0xf] %vm1097, %v1769
        %v1772 = vld [vmem:[#allocation2] sm:$0xf]
        %v1775 = vunpack.c.l.s4 1983009808
        %v1776 = vunpack.c.0.s8 %v1775
        %v1777 = vlaneseq
        %v1778 = vshrl.u32 %v1777, 7
        %v1779 = vsub.s32 %v1776, %v1778
        %v1780 = vrot.slane %v1772, %v1779
        %v1781 = vcombine.high %v1780, %v1780
        %v1784 = vpack.c.bf16 %v1780, %v1780
        %v1785 = vpack.c.bf16 %v1781, %v1781
        %1786 = vmatprep.subr.bf16.mxu0 %v1221
        %1787 = vmatpush1.bf16.msra.mxu0 %v1220
        %1788 = vmatprep.subr.bf16.mxu0 %v1223
        %1789 = vmatpush1.bf16.msra.mxu0 %v1222
        %1790 = vmatprep.subr.bf16.mxu0 %v1225
        %1791 = vmatpush1.bf16.msra.mxu0 %v1224
        %1792 = vmatprep.subr.bf16.mxu0 %v1227
        %1793 = vmatpush1.bf16.msra.mxu0 %v1226
        %1794 = vmatprep.subr.bf16.mxu0 %v1229
        %1795 = vmatpush1.bf16.msra.mxu0 %v1228
        %1796 = vmatprep.subr.bf16.mxu0 %v1231
        %1797 = vmatpush1.bf16.msra.mxu0 %v1230
        %1798 = vmatprep.subr.bf16.mxu0 %v1233
        %1799 = vmatpush1.bf16.msra.mxu0 %v1232
        %1800 = vmatprep.subr.bf16.mxu0 %v1235
        %1801 = vmatpush1.bf16.msra.mxu0 %v1234
        %1802 = vmatprep.subr.bf16.mxu0 %v1237
        %1803 = vmatpush1.bf16.msra.mxu0 %v1236
        %1804 = vmatprep.subr.bf16.mxu0 %v1239
        %1805 = vmatpush1.bf16.msra.mxu0 %v1238
        %1806 = vmatprep.subr.bf16.mxu0 %v1241
        %1807 = vmatpush1.bf16.msra.mxu0 %v1240
        %1808 = vmatprep.subr.bf16.mxu0 %v1243
        %1809 = vmatpush1.bf16.msra.mxu0 %v1242
        %1810 = vmatprep.subr.bf16.mxu0 %v1245
        %1811 = vmatpush1.bf16.msra.mxu0 %v1244
        %1812 = vmatprep.subr.bf16.mxu0 %v1247
        %1813 = vmatpush1.bf16.msra.mxu0 %v1246
        %1814 = vmatprep.subr.bf16.mxu0 %v1249
        %1815 = vmatpush1.bf16.msra.mxu0 %v1248
        %1816 = vmatprep.subr.bf16.mxu0 %v1251
        %1817 = vmatpush1.bf16.msra.mxu0 %v1250
        %1818 = vmatprep.mubr.bf16.mxu0 %v1785
        %1819 = vmatmul.mubr.bf16.gmra.mrb[0].mxu0 %v1784
        %v1820 = vpop.f32.mrb[0].mxu0
        %v1821 = vadd.f32 %v1117, %v1820
        %v1822 = vpop.f32.mrb[0].mxu0
        %v1823 = vadd.f32 %v1121, %v1822
        %v1824 = vpop.f32.mrb[0].mxu0
        %v1825 = vpop.f32.mrb[0].mxu0
        %1826 = vdwg.mxu0
        %v1827 = vtanh.pop %v1821
        %v1828 = vtanh.pop %v1823
        %v1829 = vpack.c.bf16 %v1827, %v1827
        %v1830 = vpack.c.bf16 %v1828, %v1828
        %1831 = vmatprep.subr.bf16.mxu0 %v1437
        %1832 = vmatpush1.bf16.msra.mxu0 %v1436
        %1833 = vmatprep.subr.bf16.mxu0 %v1439
        %1834 = vmatpush1.bf16.msra.mxu0 %v1438
        %1835 = vmatprep.subr.bf16.mxu0 %v1441
        %1836 = vmatpush1.bf16.msra.mxu0 %v1440
        %1837 = vmatprep.subr.bf16.mxu0 %v1443
        %1838 = vmatpush1.bf16.msra.mxu0 %v1442
        %1839 = vmatprep.subr.bf16.mxu0 %v1445
        %1840 = vmatpush1.bf16.msra.mxu0 %v1444
        %1841 = vmatprep.subr.bf16.mxu0 %v1447
        %1842 = vmatpush1.bf16.msra.mxu0 %v1446
        %1843 = vmatprep.subr.bf16.mxu0 %v1449
        %1844 = vmatpush1.bf16.msra.mxu0 %v1448
        %1845 = vmatprep.subr.bf16.mxu0 %v1451
        %1846 = vmatpush1.bf16.msra.mxu0 %v1450
        %1847 = vmatprep.subr.bf16.mxu0 %v1453
        %1848 = vmatpush1.bf16.msra.mxu0 %v1452
        %1849 = vmatprep.subr.bf16.mxu0 %v1455
        %1850 = vmatpush1.bf16.msra.mxu0 %v1454
        %1851 = vmatprep.subr.bf16.mxu0 %v1457
        %1852 = vmatpush1.bf16.msra.mxu0 %v1456
        %1853 = vmatprep.subr.bf16.mxu0 %v1459
        %1854 = vmatpush1.bf16.msra.mxu0 %v1458
        %1855 = vmatprep.subr.bf16.mxu0 %v1461
        %1856 = vmatpush1.bf16.msra.mxu0 %v1460
        %1857 = vmatprep.subr.bf16.mxu0 %v1463
        %1858 = vmatpush1.bf16.msra.mxu0 %v1462
        %1859 = vmatprep.subr.bf16.mxu0 %v1465
        %1860 = vmatpush1.bf16.msra.mxu0 %v1464
        %1861 = vmatprep.subr.bf16.mxu0 %v1467
        %1862 = vmatpush1.bf16.msra.mxu0 %v1466
        %1863 = vmatprep.mubr.bf16.mxu0 %v1830
        %1864 = vmatmul.mubr.bf16.gmra.mrb[0].mxu0 %v1829
        %v1865 = vpop.f32.mrb[0].mxu0
        %v1866 = vadd.f32 %v1333, %v1865
        %v1867 = vpop.f32.mrb[0].mxu0
        %v1868 = vadd.f32 %v1337, %v1867
        %v1869 = vpop.f32.mrb[0].mxu0
        %v1870 = vpop.f32.mrb[0].mxu0
        %1871 = vdwg.mxu0
        %v1872 = vtanh.pop %v1866
        %v1873 = vtanh.pop %v1868
        %v1874 = vpack.c.bf16 %v1872, %v1872
        %v1875 = vpack.c.bf16 %v1873, %v1873
        %1876 = vmatprep.subr.bf16.mxu0 %v1653
        %1877 = vmatpush1.bf16.msra.mxu0 %v1652
        %1878 = vmatprep.subr.bf16.mxu0 %v1655
        %1879 = vmatpush1.bf16.msra.mxu0 %v1654
        %1880 = vmatprep.subr.bf16.mxu0 %v1657
        %1881 = vmatpush1.bf16.msra.mxu0 %v1656
        %1882 = vmatprep.subr.bf16.mxu0 %v1659
        %1883 = vmatpush1.bf16.msra.mxu0 %v1658
        %1884 = vmatprep.subr.bf16.mxu0 %v1661
        %1885 = vmatpush1.bf16.msra.mxu0 %v1660
        %1886 = vmatprep.subr.bf16.mxu0 %v1663
        %1887 = vmatpush1.bf16.msra.mxu0 %v1662
        %1888 = vmatprep.subr.bf16.mxu0 %v1665
        %1889 = vmatpush1.bf16.msra.mxu0 %v1664
        %1890 = vmatprep.subr.bf16.mxu0 %v1667
        %1891 = vmatpush1.bf16.msra.mxu0 %v1666
        %1892 = vmatprep.subr.bf16.mxu0 %v1669
        %1893 = vmatpush1.bf16.msra.mxu0 %v1668
        %1894 = vmatprep.subr.bf16.mxu0 %v1671
        %1895 = vmatpush1.bf16.msra.mxu0 %v1670
        %1896 = vmatprep.subr.bf16.mxu0 %v1673
        %1897 = vmatpush1.bf16.msra.mxu0 %v1672
        %1898 = vmatprep.subr.bf16.mxu0 %v1675
        %1899 = vmatpush1.bf16.msra.mxu0 %v1674
        %1900 = vmatprep.subr.bf16.mxu0 %v1677
        %1901 = vmatpush1.bf16.msra.mxu0 %v1676
        %1902 = vmatprep.subr.bf16.mxu0 %v1679
        %1903 = vmatpush1.bf16.msra.mxu0 %v1678
        %1904 = vmatprep.subr.bf16.mxu0 %v1681
        %1905 = vmatpush1.bf16.msra.mxu0 %v1680
        %1906 = vmatprep.subr.bf16.mxu0 %v1683
        %1907 = vmatpush1.bf16.msra.mxu0 %v1682
        %1908 = vmatprep.mubr.bf16.mxu0 %v1875
        %1909 = vmatmul.mubr.bf16.gmra.mrb[0].mxu0 %v1874
        %v1910 = vpop.f32.mrb[0].mxu0
        %v1911 = vadd.f32 %v1549, %v1910
        %v1912 = vpop.f32.mrb[0].mxu0
        %v1913 = vadd.f32 %v1553, %v1912
        %v1914 = vpop.f32.mrb[0].mxu0
        %v1915 = vpop.f32.mrb[0].mxu0
        %1916 = vdwg.mxu0
        %v1919 = vcombine.low %v1911, %v1913
        %v1921 = vunpack.c.l.s4 1983009808
        %v1922 = vunpack.c.0.s8 %v1921
        %v1923 = vlaneseq
        %v1924 = vshrl.u32 %v1923, 7
        %v1925 = vsub.s32 %v1922, %v1924
        %v1926 = vrot.slane %v1919, %v1925
        %1928 = vst [vmem:[#allocation2] sm:$0xf] %v1926
        %v1929 = vld [vmem:[#allocation2] sm:$0xf]
        %s1930 = scalar_lea.vmem %s313, 8 [#allocation11]
        %1931 = vst.msk [vmem:[%s1930] sm:$0xf] %vm1097, %v1929
        %v1932 = vld [vmem:[#allocation2] sm:$0xf]
        %v1935 = vunpack.c.l.s4 1983009808
        %v1936 = vunpack.c.0.s8 %v1935
        %v1937 = vlaneseq
        %v1938 = vshrl.u32 %v1937, 7
        %v1939 = vsub.s32 %v1936, %v1938
        %v1940 = vrot.slane %v1932, %v1939
        %v1941 = vcombine.high %v1940, %v1940
        %v1944 = vpack.c.bf16 %v1940, %v1940
        %v1945 = vpack.c.bf16 %v1941, %v1941
        %1946 = vmatprep.subr.bf16.mxu0 %v1221
        %1947 = vmatpush1.bf16.msra.mxu0 %v1220
        %1948 = vmatprep.subr.bf16.mxu0 %v1223
        %1949 = vmatpush1.bf16.msra.mxu0 %v1222
        %1950 = vmatprep.subr.bf16.mxu0 %v1225
        %1951 = vmatpush1.bf16.msra.mxu0 %v1224
        %1952 = vmatprep.subr.bf16.mxu0 %v1227
        %1953 = vmatpush1.bf16.msra.mxu0 %v1226
        %1954 = vmatprep.subr.bf16.mxu0 %v1229
        %1955 = vmatpush1.bf16.msra.mxu0 %v1228
        %1956 = vmatprep.subr.bf16.mxu0 %v1231
        %1957 = vmatpush1.bf16.msra.mxu0 %v1230
        %1958 = vmatprep.subr.bf16.mxu0 %v1233
        %1959 = vmatpush1.bf16.msra.mxu0 %v1232
        %1960 = vmatprep.subr.bf16.mxu0 %v1235
        %1961 = vmatpush1.bf16.msra.mxu0 %v1234
        %1962 = vmatprep.subr.bf16.mxu0 %v1237
        %1963 = vmatpush1.bf16.msra.mxu0 %v1236
        %1964 = vmatprep.subr.bf16.mxu0 %v1239
        %1965 = vmatpush1.bf16.msra.mxu0 %v1238
        %1966 = vmatprep.subr.bf16.mxu0 %v1241
        %1967 = vmatpush1.bf16.msra.mxu0 %v1240
        %1968 = vmatprep.subr.bf16.mxu0 %v1243
        %1969 = vmatpush1.bf16.msra.mxu0 %v1242
        %1970 = vmatprep.subr.bf16.mxu0 %v1245
        %1971 = vmatpush1.bf16.msra.mxu0 %v1244
        %1972 = vmatprep.subr.bf16.mxu0 %v1247
        %1973 = vmatpush1.bf16.msra.mxu0 %v1246
        %1974 = vmatprep.subr.bf16.mxu0 %v1249
        %1975 = vmatpush1.bf16.msra.mxu0 %v1248
        %1976 = vmatprep.subr.bf16.mxu0 %v1251
        %1977 = vmatpush1.bf16.msra.mxu0 %v1250
        %1978 = vmatprep.mubr.bf16.mxu0 %v1945
        %1979 = vmatmul.mubr.bf16.gmra.mrb[0].mxu0 %v1944
        %v1980 = vpop.f32.mrb[0].mxu0
        %v1981 = vadd.f32 %v1117, %v1980
        %v1982 = vpop.f32.mrb[0].mxu0
        %v1983 = vadd.f32 %v1121, %v1982
        %v1984 = vpop.f32.mrb[0].mxu0
        %v1985 = vpop.f32.mrb[0].mxu0
        %1986 = vdwg.mxu0
        %v1987 = vtanh.pop %v1981
        %v1988 = vtanh.pop %v1983
        %v1989 = vpack.c.bf16 %v1987, %v1987
        %v1990 = vpack.c.bf16 %v1988, %v1988
        %1991 = vmatprep.subr.bf16.mxu0 %v1437
        %1992 = vmatpush1.bf16.msra.mxu0 %v1436
        %1993 = vmatprep.subr.bf16.mxu0 %v1439
        %1994 = vmatpush1.bf16.msra.mxu0 %v1438
        %1995 = vmatprep.subr.bf16.mxu0 %v1441
        %1996 = vmatpush1.bf16.msra.mxu0 %v1440
        %1997 = vmatprep.subr.bf16.mxu0 %v1443
        %1998 = vmatpush1.bf16.msra.mxu0 %v1442
        %1999 = vmatprep.subr.bf16.mxu0 %v1445
        %2000 = vmatpush1.bf16.msra.mxu0 %v1444
        %2001 = vmatprep.subr.bf16.mxu0 %v1447
        %2002 = vmatpush1.bf16.msra.mxu0 %v1446
        %2003 = vmatprep.subr.bf16.mxu0 %v1449
        %2004 = vmatpush1.bf16.msra.mxu0 %v1448
        %2005 = vmatprep.subr.bf16.mxu0 %v1451
        %2006 = vmatpush1.bf16.msra.mxu0 %v1450
        %2007 = vmatprep.subr.bf16.mxu0 %v1453
        %2008 = vmatpush1.bf16.msra.mxu0 %v1452
        %2009 = vmatprep.subr.bf16.mxu0 %v1455
        %2010 = vmatpush1.bf16.msra.mxu0 %v1454
        %2011 = vmatprep.subr.bf16.mxu0 %v1457
        %2012 = vmatpush1.bf16.msra.mxu0 %v1456
        %2013 = vmatprep.subr.bf16.mxu0 %v1459
        %2014 = vmatpush1.bf16.msra.mxu0 %v1458
        %2015 = vmatprep.subr.bf16.mxu0 %v1461
        %2016 = vmatpush1.bf16.msra.mxu0 %v1460
        %2017 = vmatprep.subr.bf16.mxu0 %v1463
        %2018 = vmatpush1.bf16.msra.mxu0 %v1462
        %2019 = vmatprep.subr.bf16.mxu0 %v1465
        %2020 = vmatpush1.bf16.msra.mxu0 %v1464
        %2021 = vmatprep.subr.bf16.mxu0 %v1467
        %2022 = vmatpush1.bf16.msra.mxu0 %v1466
        %2023 = vmatprep.mubr.bf16.mxu0 %v1990
        %2024 = vmatmul.mubr.bf16.gmra.mrb[0].mxu0 %v1989
        %v2025 = vpop.f32.mrb[0].mxu0
        %v2026 = vadd.f32 %v1333, %v2025
        %v2027 = vpop.f32.mrb[0].mxu0
        %v2028 = vadd.f32 %v1337, %v2027
        %v2029 = vpop.f32.mrb[0].mxu0
        %v2030 = vpop.f32.mrb[0].mxu0
        %2031 = vdwg.mxu0
        %v2032 = vtanh.pop %v2026
        %v2033 = vtanh.pop %v2028
        %v2034 = vpack.c.bf16 %v2032, %v2032
        %v2035 = vpack.c.bf16 %v2033, %v2033
        %2036 = vmatprep.subr.bf16.mxu0 %v1653
        %2037 = vmatpush1.bf16.msra.mxu0 %v1652
        %2038 = vmatprep.subr.bf16.mxu0 %v1655
        %2039 = vmatpush1.bf16.msra.mxu0 %v1654
        %2040 = vmatprep.subr.bf16.mxu0 %v1657
        %2041 = vmatpush1.bf16.msra.mxu0 %v1656
        %2042 = vmatprep.subr.bf16.mxu0 %v1659
        %2043 = vmatpush1.bf16.msra.mxu0 %v1658
        %2044 = vmatprep.subr.bf16.mxu0 %v1661
        %2045 = vmatpush1.bf16.msra.mxu0 %v1660
        %2046 = vmatprep.subr.bf16.mxu0 %v1663
        %2047 = vmatpush1.bf16.msra.mxu0 %v1662
        %2048 = vmatprep.subr.bf16.mxu0 %v1665
        %2049 = vmatpush1.bf16.msra.mxu0 %v1664
        %2050 = vmatprep.subr.bf16.mxu0 %v1667
        %2051 = vmatpush1.bf16.msra.mxu0 %v1666
        %2052 = vmatprep.subr.bf16.mxu0 %v1669
        %2053 = vmatpush1.bf16.msra.mxu0 %v1668
        %2054 = vmatprep.subr.bf16.mxu0 %v1671
        %2055 = vmatpush1.bf16.msra.mxu0 %v1670
        %2056 = vmatprep.subr.bf16.mxu0 %v1673
        %2057 = vmatpush1.bf16.msra.mxu0 %v1672
        %2058 = vmatprep.subr.bf16.mxu0 %v1675
        %2059 = vmatpush1.bf16.msra.mxu0 %v1674
        %2060 = vmatprep.subr.bf16.mxu0 %v1677
        %2061 = vmatpush1.bf16.msra.mxu0 %v1676
        %2062 = vmatprep.subr.bf16.mxu0 %v1679
        %2063 = vmatpush1.bf16.msra.mxu0 %v1678
        %2064 = vmatprep.subr.bf16.mxu0 %v1681
        %2065 = vmatpush1.bf16.msra.mxu0 %v1680
        %2066 = vmatprep.subr.bf16.mxu0 %v1683
        %2067 = vmatpush1.bf16.msra.mxu0 %v1682
        %2068 = vmatprep.mubr.bf16.mxu0 %v2035
        %2069 = vmatmul.mubr.bf16.gmra.mrb[0].mxu0 %v2034
        %v2070 = vpop.f32.mrb[0].mxu0
        %v2071 = vadd.f32 %v1549, %v2070
        %v2072 = vpop.f32.mrb[0].mxu0
        %v2073 = vadd.f32 %v1553, %v2072
        %v2074 = vpop.f32.mrb[0].mxu0
        %v2075 = vpop.f32.mrb[0].mxu0
        %2076 = vdwg.mxu0
        %v2079 = vcombine.low %v2071, %v2073
        %v2081 = vunpack.c.l.s4 1983009808
        %v2082 = vunpack.c.0.s8 %v2081
        %v2083 = vlaneseq
        %v2084 = vshrl.u32 %v2083, 7
        %v2085 = vsub.s32 %v2082, %v2084
        %v2086 = vrot.slane %v2079, %v2085
        %2088 = vst [vmem:[#allocation2] sm:$0xf] %v2086
        %v2089 = vld [vmem:[#allocation2] sm:$0xf]
        %s2090 = scalar_lea.vmem %s313, 12 [#allocation11]
        %2091 = vst.msk [vmem:[%s2090] sm:$0xf] %vm1097, %v2089
        %v2092 = vld [vmem:[#allocation2] sm:$0xf]
        %v2095 = vunpack.c.l.s4 1983009808
        %v2096 = vunpack.c.0.s8 %v2095
        %v2097 = vlaneseq
        %v2098 = vshrl.u32 %v2097, 7
        %v2099 = vsub.s32 %v2096, %v2098
        %v2100 = vrot.slane %v2092, %v2099
        %v2101 = vcombine.high %v2100, %v2100
        %v2104 = vpack.c.bf16 %v2100, %v2100
        %v2105 = vpack.c.bf16 %v2101, %v2101
        %2106 = vmatprep.subr.bf16.mxu0 %v1221
        %2107 = vmatpush1.bf16.msra.mxu0 %v1220
        %2108 = vmatprep.subr.bf16.mxu0 %v1223
        %2109 = vmatpush1.bf16.msra.mxu0 %v1222
        %2110 = vmatprep.subr.bf16.mxu0 %v1225
        %2111 = vmatpush1.bf16.msra.mxu0 %v1224
        %2112 = vmatprep.subr.bf16.mxu0 %v1227
        %2113 = vmatpush1.bf16.msra.mxu0 %v1226
        %2114 = vmatprep.subr.bf16.mxu0 %v1229
        %2115 = vmatpush1.bf16.msra.mxu0 %v1228
        %2116 = vmatprep.subr.bf16.mxu0 %v1231
        %2117 = vmatpush1.bf16.msra.mxu0 %v1230
        %2118 = vmatprep.subr.bf16.mxu0 %v1233
        %2119 = vmatpush1.bf16.msra.mxu0 %v1232
        %2120 = vmatprep.subr.bf16.mxu0 %v1235
        %2121 = vmatpush1.bf16.msra.mxu0 %v1234
        %2122 = vmatprep.subr.bf16.mxu0 %v1237
        %2123 = vmatpush1.bf16.msra.mxu0 %v1236
        %2124 = vmatprep.subr.bf16.mxu0 %v1239
        %2125 = vmatpush1.bf16.msra.mxu0 %v1238
        %2126 = vmatprep.subr.bf16.mxu0 %v1241
        %2127 = vmatpush1.bf16.msra.mxu0 %v1240
        %2128 = vmatprep.subr.bf16.mxu0 %v1243
        %2129 = vmatpush1.bf16.msra.mxu0 %v1242
        %2130 = vmatprep.subr.bf16.mxu0 %v1245
        %2131 = vmatpush1.bf16.msra.mxu0 %v1244
        %2132 = vmatprep.subr.bf16.mxu0 %v1247
        %2133 = vmatpush1.bf16.msra.mxu0 %v1246
        %2134 = vmatprep.subr.bf16.mxu0 %v1249
        %2135 = vmatpush1.bf16.msra.mxu0 %v1248
        %2136 = vmatprep.subr.bf16.mxu0 %v1251
        %2137 = vmatpush1.bf16.msra.mxu0 %v1250
        %2138 = vmatprep.mubr.bf16.mxu0 %v2105
        %2139 = vmatmul.mubr.bf16.gmra.mrb[0].mxu0 %v2104
        %v2140 = vpop.f32.mrb[0].mxu0
        %v2141 = vadd.f32 %v1117, %v2140
        %v2142 = vpop.f32.mrb[0].mxu0
        %v2143 = vadd.f32 %v1121, %v2142
        %v2144 = vpop.f32.mrb[0].mxu0
        %v2145 = vpop.f32.mrb[0].mxu0
        %2146 = vdwg.mxu0
        %v2147 = vtanh.pop %v2141
        %v2148 = vtanh.pop %v2143
        %v2149 = vpack.c.bf16 %v2147, %v2147
        %v2150 = vpack.c.bf16 %v2148, %v2148
        %2151 = vmatprep.subr.bf16.mxu0 %v1437
        %2152 = vmatpush1.bf16.msra.mxu0 %v1436
        %2153 = vmatprep.subr.bf16.mxu0 %v1439
        %2154 = vmatpush1.bf16.msra.mxu0 %v1438
        %2155 = vmatprep.subr.bf16.mxu0 %v1441
        %2156 = vmatpush1.bf16.msra.mxu0 %v1440
        %2157 = vmatprep.subr.bf16.mxu0 %v1443
        %2158 = vmatpush1.bf16.msra.mxu0 %v1442
        %2159 = vmatprep.subr.bf16.mxu0 %v1445
        %2160 = vmatpush1.bf16.msra.mxu0 %v1444
        %2161 = vmatprep.subr.bf16.mxu0 %v1447
        %2162 = vmatpush1.bf16.msra.mxu0 %v1446
        %2163 = vmatprep.subr.bf16.mxu0 %v1449
        %2164 = vmatpush1.bf16.msra.mxu0 %v1448
        %2165 = vmatprep.subr.bf16.mxu0 %v1451
        %2166 = vmatpush1.bf16.msra.mxu0 %v1450
        %2167 = vmatprep.subr.bf16.mxu0 %v1453
        %2168 = vmatpush1.bf16.msra.mxu0 %v1452
        %2169 = vmatprep.subr.bf16.mxu0 %v1455
        %2170 = vmatpush1.bf16.msra.mxu0 %v1454
        %2171 = vmatprep.subr.bf16.mxu0 %v1457
        %2172 = vmatpush1.bf16.msra.mxu0 %v1456
        %2173 = vmatprep.subr.bf16.mxu0 %v1459
        %2174 = vmatpush1.bf16.msra.mxu0 %v1458
        %2175 = vmatprep.subr.bf16.mxu0 %v1461
        %2176 = vmatpush1.bf16.msra.mxu0 %v1460
        %2177 = vmatprep.subr.bf16.mxu0 %v1463
        %2178 = vmatpush1.bf16.msra.mxu0 %v1462
        %2179 = vmatprep.subr.bf16.mxu0 %v1465
        %2180 = vmatpush1.bf16.msra.mxu0 %v1464
        %2181 = vmatprep.subr.bf16.mxu0 %v1467
        %2182 = vmatpush1.bf16.msra.mxu0 %v1466
        %2183 = vmatprep.mubr.bf16.mxu0 %v2150
        %2184 = vmatmul.mubr.bf16.gmra.mrb[0].mxu0 %v2149
        %v2185 = vpop.f32.mrb[0].mxu0
        %v2186 = vadd.f32 %v1333, %v2185
        %v2187 = vpop.f32.mrb[0].mxu0
        %v2188 = vadd.f32 %v1337, %v2187
        %v2189 = vpop.f32.mrb[0].mxu0
        %v2190 = vpop.f32.mrb[0].mxu0
        %2191 = vdwg.mxu0
        %v2192 = vtanh.pop %v2186
        %v2193 = vtanh.pop %v2188
        %v2194 = vpack.c.bf16 %v2192, %v2192
        %v2195 = vpack.c.bf16 %v2193, %v2193
        %2196 = vmatprep.subr.bf16.mxu0 %v1653
        %2197 = vmatpush1.bf16.msra.mxu0 %v1652
        %2198 = vmatprep.subr.bf16.mxu0 %v1655
        %2199 = vmatpush1.bf16.msra.mxu0 %v1654
        %2200 = vmatprep.subr.bf16.mxu0 %v1657
        %2201 = vmatpush1.bf16.msra.mxu0 %v1656
        %2202 = vmatprep.subr.bf16.mxu0 %v1659
        %2203 = vmatpush1.bf16.msra.mxu0 %v1658
        %2204 = vmatprep.subr.bf16.mxu0 %v1661
        %2205 = vmatpush1.bf16.msra.mxu0 %v1660
        %2206 = vmatprep.subr.bf16.mxu0 %v1663
        %2207 = vmatpush1.bf16.msra.mxu0 %v1662
        %2208 = vmatprep.subr.bf16.mxu0 %v1665
        %2209 = vmatpush1.bf16.msra.mxu0 %v1664
        %2210 = vmatprep.subr.bf16.mxu0 %v1667
        %2211 = vmatpush1.bf16.msra.mxu0 %v1666
        %2212 = vmatprep.subr.bf16.mxu0 %v1669
        %2213 = vmatpush1.bf16.msra.mxu0 %v1668
        %2214 = vmatprep.subr.bf16.mxu0 %v1671
        %2215 = vmatpush1.bf16.msra.mxu0 %v1670
        %2216 = vmatprep.subr.bf16.mxu0 %v1673
        %2217 = vmatpush1.bf16.msra.mxu0 %v1672
        %2218 = vmatprep.subr.bf16.mxu0 %v1675
        %2219 = vmatpush1.bf16.msra.mxu0 %v1674
        %2220 = vmatprep.subr.bf16.mxu0 %v1677
        %2221 = vmatpush1.bf16.msra.mxu0 %v1676
        %2222 = vmatprep.subr.bf16.mxu0 %v1679
        %2223 = vmatpush1.bf16.msra.mxu0 %v1678
        %2224 = vmatprep.subr.bf16.mxu0 %v1681
        %2225 = vmatpush1.bf16.msra.mxu0 %v1680
        %2226 = vmatprep.subr.bf16.mxu0 %v1683
        %2227 = vmatpush1.bf16.msra.mxu0 %v1682
        %2228 = vmatprep.mubr.bf16.mxu0 %v2195
        %2229 = vmatmul.mubr.bf16.gmra.mrb[0].mxu0 %v2194
        %v2230 = vpop.f32.mrb[0].mxu0
        %v2231 = vadd.f32 %v1549, %v2230
        %v2232 = vpop.f32.mrb[0].mxu0
        %v2233 = vadd.f32 %v1553, %v2232
        %v2234 = vpop.f32.mrb[0].mxu0
        %v2235 = vpop.f32.mrb[0].mxu0
        %2236 = vdwg.mxu0
        %v2239 = vcombine.low %v2231, %v2233
        %v2241 = vunpack.c.l.s4 1983009808
        %v2242 = vunpack.c.0.s8 %v2241
        %v2243 = vlaneseq
        %v2244 = vshrl.u32 %v2243, 7
        %v2245 = vsub.s32 %v2242, %v2244
        %v2246 = vrot.slane %v2239, %v2245
        %2248 = vst [vmem:[#allocation2] sm:$0xf] %v2246
        %v2249 = vld [vmem:[#allocation2] sm:$0xf]
        %s2250 = scalar_lea.vmem %s313, 16 [#allocation11]
        %2251 = vst.msk [vmem:[%s2250] sm:$0xf] %vm1097, %v2249
        %v2252 = vld [vmem:[#allocation2] sm:$0xf]
        %v2255 = vunpack.c.l.s4 1983009808
        %v2256 = vunpack.c.0.s8 %v2255
        %v2257 = vlaneseq
        %v2258 = vshrl.u32 %v2257, 7
        %v2259 = vsub.s32 %v2256, %v2258
        %v2260 = vrot.slane %v2252, %v2259
        %v2261 = vcombine.high %v2260, %v2260
        %v2264 = vpack.c.bf16 %v2260, %v2260
        %v2265 = vpack.c.bf16 %v2261, %v2261
        %2266 = vmatprep.subr.bf16.mxu0 %v1221
        %2267 = vmatpush1.bf16.msra.mxu0 %v1220
        %2268 = vmatprep.subr.bf16.mxu0 %v1223
        %2269 = vmatpush1.bf16.msra.mxu0 %v1222
        %2270 = vmatprep.subr.bf16.mxu0 %v1225
        %2271 = vmatpush1.bf16.msra.mxu0 %v1224
        %2272 = vmatprep.subr.bf16.mxu0 %v1227
        %2273 = vmatpush1.bf16.msra.mxu0 %v1226
        %2274 = vmatprep.subr.bf16.mxu0 %v1229
        %2275 = vmatpush1.bf16.msra.mxu0 %v1228
        %2276 = vmatprep.subr.bf16.mxu0 %v1231
        %2277 = vmatpush1.bf16.msra.mxu0 %v1230
        %2278 = vmatprep.subr.bf16.mxu0 %v1233
        %2279 = vmatpush1.bf16.msra.mxu0 %v1232
        %2280 = vmatprep.subr.bf16.mxu0 %v1235
        %2281 = vmatpush1.bf16.msra.mxu0 %v1234
        %2282 = vmatprep.subr.bf16.mxu0 %v1237
        %2283 = vmatpush1.bf16.msra.mxu0 %v1236
        %2284 = vmatprep.subr.bf16.mxu0 %v1239
        %2285 = vmatpush1.bf16.msra.mxu0 %v1238
        %2286 = vmatprep.subr.bf16.mxu0 %v1241
        %2287 = vmatpush1.bf16.msra.mxu0 %v1240
        %2288 = vmatprep.subr.bf16.mxu0 %v1243
        %2289 = vmatpush1.bf16.msra.mxu0 %v1242
        %2290 = vmatprep.subr.bf16.mxu0 %v1245
        %2291 = vmatpush1.bf16.msra.mxu0 %v1244
        %2292 = vmatprep.subr.bf16.mxu0 %v1247
        %2293 = vmatpush1.bf16.msra.mxu0 %v1246
        %2294 = vmatprep.subr.bf16.mxu0 %v1249
        %2295 = vmatpush1.bf16.msra.mxu0 %v1248
        %2296 = vmatprep.subr.bf16.mxu0 %v1251
        %2297 = vmatpush1.bf16.msra.mxu0 %v1250
        %2298 = vmatprep.mubr.bf16.mxu0 %v2265
        %2299 = vmatmul.mubr.bf16.gmra.mrb[0].mxu0 %v2264
        %v2300 = vpop.f32.mrb[0].mxu0
        %v2301 = vadd.f32 %v1117, %v2300
        %v2302 = vpop.f32.mrb[0].mxu0
        %v2303 = vadd.f32 %v1121, %v2302
        %v2304 = vpop.f32.mrb[0].mxu0
        %v2305 = vpop.f32.mrb[0].mxu0
        %2306 = vdwg.mxu0
        %v2307 = vtanh.pop %v2301
        %v2308 = vtanh.pop %v2303
        %v2309 = vpack.c.bf16 %v2307, %v2307
        %v2310 = vpack.c.bf16 %v2308, %v2308
        %2311 = vmatprep.subr.bf16.mxu0 %v1437
        %2312 = vmatpush1.bf16.msra.mxu0 %v1436
        %2313 = vmatprep.subr.bf16.mxu0 %v1439
        %2314 = vmatpush1.bf16.msra.mxu0 %v1438
        %2315 = vmatprep.subr.bf16.mxu0 %v1441
        %2316 = vmatpush1.bf16.msra.mxu0 %v1440
        %2317 = vmatprep.subr.bf16.mxu0 %v1443
        %2318 = vmatpush1.bf16.msra.mxu0 %v1442
        %2319 = vmatprep.subr.bf16.mxu0 %v1445
        %2320 = vmatpush1.bf16.msra.mxu0 %v1444
        %2321 = vmatprep.subr.bf16.mxu0 %v1447
        %2322 = vmatpush1.bf16.msra.mxu0 %v1446
        %2323 = vmatprep.subr.bf16.mxu0 %v1449
        %2324 = vmatpush1.bf16.msra.mxu0 %v1448
        %2325 = vmatprep.subr.bf16.mxu0 %v1451
        %2326 = vmatpush1.bf16.msra.mxu0 %v1450
        %2327 = vmatprep.subr.bf16.mxu0 %v1453
        %2328 = vmatpush1.bf16.msra.mxu0 %v1452
        %2329 = vmatprep.subr.bf16.mxu0 %v1455
        %2330 = vmatpush1.bf16.msra.mxu0 %v1454
        %2331 = vmatprep.subr.bf16.mxu0 %v1457
        %2332 = vmatpush1.bf16.msra.mxu0 %v1456
        %2333 = vmatprep.subr.bf16.mxu0 %v1459
        %2334 = vmatpush1.bf16.msra.mxu0 %v1458
        %2335 = vmatprep.subr.bf16.mxu0 %v1461
        %2336 = vmatpush1.bf16.msra.mxu0 %v1460
        %2337 = vmatprep.subr.bf16.mxu0 %v1463
        %2338 = vmatpush1.bf16.msra.mxu0 %v1462
        %2339 = vmatprep.subr.bf16.mxu0 %v1465
        %2340 = vmatpush1.bf16.msra.mxu0 %v1464
        %2341 = vmatprep.subr.bf16.mxu0 %v1467
        %2342 = vmatpush1.bf16.msra.mxu0 %v1466
        %2343 = vmatprep.mubr.bf16.mxu0 %v2310
        %2344 = vmatmul.mubr.bf16.gmra.mrb[0].mxu0 %v2309
        %v2345 = vpop.f32.mrb[0].mxu0
        %v2346 = vadd.f32 %v1333, %v2345
        %v2347 = vpop.f32.mrb[0].mxu0
        %v2348 = vadd.f32 %v1337, %v2347
        %v2349 = vpop.f32.mrb[0].mxu0
        %v2350 = vpop.f32.mrb[0].mxu0
        %2351 = vdwg.mxu0
        %v2352 = vtanh.pop %v2346
        %v2353 = vtanh.pop %v2348
        %v2354 = vpack.c.bf16 %v2352, %v2352
        %v2355 = vpack.c.bf16 %v2353, %v2353
        %2356 = vmatprep.subr.bf16.mxu0 %v1653
        %2357 = vmatpush1.bf16.msra.mxu0 %v1652
        %2358 = vmatprep.subr.bf16.mxu0 %v1655
        %2359 = vmatpush1.bf16.msra.mxu0 %v1654
        %2360 = vmatprep.subr.bf16.mxu0 %v1657
        %2361 = vmatpush1.bf16.msra.mxu0 %v1656
        %2362 = vmatprep.subr.bf16.mxu0 %v1659
        %2363 = vmatpush1.bf16.msra.mxu0 %v1658
        %2364 = vmatprep.subr.bf16.mxu0 %v1661
        %2365 = vmatpush1.bf16.msra.mxu0 %v1660
        %2366 = vmatprep.subr.bf16.mxu0 %v1663
        %2367 = vmatpush1.bf16.msra.mxu0 %v1662
        %2368 = vmatprep.subr.bf16.mxu0 %v1665
        %2369 = vmatpush1.bf16.msra.mxu0 %v1664
        %2370 = vmatprep.subr.bf16.mxu0 %v1667
        %2371 = vmatpush1.bf16.msra.mxu0 %v1666
        %2372 = vmatprep.subr.bf16.mxu0 %v1669
        %2373 = vmatpush1.bf16.msra.mxu0 %v1668
        %2374 = vmatprep.subr.bf16.mxu0 %v1671
        %2375 = vmatpush1.bf16.msra.mxu0 %v1670
        %2376 = vmatprep.subr.bf16.mxu0 %v1673
        %2377 = vmatpush1.bf16.msra.mxu0 %v1672
        %2378 = vmatprep.subr.bf16.mxu0 %v1675
        %2379 = vmatpush1.bf16.msra.mxu0 %v1674
        %2380 = vmatprep.subr.bf16.mxu0 %v1677
        %2381 = vmatpush1.bf16.msra.mxu0 %v1676
        %2382 = vmatprep.subr.bf16.mxu0 %v1679
        %2383 = vmatpush1.bf16.msra.mxu0 %v1678
        %2384 = vmatprep.subr.bf16.mxu0 %v1681
        %2385 = vmatpush1.bf16.msra.mxu0 %v1680
        %2386 = vmatprep.subr.bf16.mxu0 %v1683
        %2387 = vmatpush1.bf16.msra.mxu0 %v1682
        %2388 = vmatprep.mubr.bf16.mxu0 %v2355
        %2389 = vmatmul.mubr.bf16.gmra.mrb[0].mxu0 %v2354
        %v2390 = vpop.f32.mrb[0].mxu0
        %v2391 = vadd.f32 %v1549, %v2390
        %v2392 = vpop.f32.mrb[0].mxu0
        %v2393 = vadd.f32 %v1553, %v2392
        %v2394 = vpop.f32.mrb[0].mxu0
        %v2395 = vpop.f32.mrb[0].mxu0
        %2396 = vdwg.mxu0
        %v2399 = vcombine.low %v2391, %v2393
        %v2401 = vunpack.c.l.s4 1983009808
        %v2402 = vunpack.c.0.s8 %v2401
        %v2403 = vlaneseq
        %v2404 = vshrl.u32 %v2403, 7
        %v2405 = vsub.s32 %v2402, %v2404
        %v2406 = vrot.slane %v2399, %v2405
        %2408 = vst [vmem:[#allocation2] sm:$0xf] %v2406
        %v2409 = vld [vmem:[#allocation2] sm:$0xf]
        %s2410 = scalar_lea.vmem %s313, 20 [#allocation11]
        %2411 = vst.msk [vmem:[%s2410] sm:$0xf] %vm1097, %v2409
        %v2412 = vld [vmem:[#allocation2] sm:$0xf]
        %v2415 = vunpack.c.l.s4 1983009808
        %v2416 = vunpack.c.0.s8 %v2415
        %v2417 = vlaneseq
        %v2418 = vshrl.u32 %v2417, 7
        %v2419 = vsub.s32 %v2416, %v2418
        %v2420 = vrot.slane %v2412, %v2419
        %v2421 = vcombine.high %v2420, %v2420
        %v2424 = vpack.c.bf16 %v2420, %v2420
        %v2425 = vpack.c.bf16 %v2421, %v2421
        %2426 = vmatprep.subr.bf16.mxu0 %v1221
        %2427 = vmatpush1.bf16.msra.mxu0 %v1220
        %2428 = vmatprep.subr.bf16.mxu0 %v1223
        %2429 = vmatpush1.bf16.msra.mxu0 %v1222
        %2430 = vmatprep.subr.bf16.mxu0 %v1225
        %2431 = vmatpush1.bf16.msra.mxu0 %v1224
        %2432 = vmatprep.subr.bf16.mxu0 %v1227
        %2433 = vmatpush1.bf16.msra.mxu0 %v1226
        %2434 = vmatprep.subr.bf16.mxu0 %v1229
        %2435 = vmatpush1.bf16.msra.mxu0 %v1228
        %2436 = vmatprep.subr.bf16.mxu0 %v1231
        %2437 = vmatpush1.bf16.msra.mxu0 %v1230
        %2438 = vmatprep.subr.bf16.mxu0 %v1233
        %2439 = vmatpush1.bf16.msra.mxu0 %v1232
        %2440 = vmatprep.subr.bf16.mxu0 %v1235
        %2441 = vmatpush1.bf16.msra.mxu0 %v1234
        %2442 = vmatprep.subr.bf16.mxu0 %v1237
        %2443 = vmatpush1.bf16.msra.mxu0 %v1236
        %2444 = vmatprep.subr.bf16.mxu0 %v1239
        %2445 = vmatpush1.bf16.msra.mxu0 %v1238
        %2446 = vmatprep.subr.bf16.mxu0 %v1241
        %2447 = vmatpush1.bf16.msra.mxu0 %v1240
        %2448 = vmatprep.subr.bf16.mxu0 %v1243
        %2449 = vmatpush1.bf16.msra.mxu0 %v1242
        %2450 = vmatprep.subr.bf16.mxu0 %v1245
        %2451 = vmatpush1.bf16.msra.mxu0 %v1244
        %2452 = vmatprep.subr.bf16.mxu0 %v1247
        %2453 = vmatpush1.bf16.msra.mxu0 %v1246
        %2454 = vmatprep.subr.bf16.mxu0 %v1249
        %2455 = vmatpush1.bf16.msra.mxu0 %v1248
        %2456 = vmatprep.subr.bf16.mxu0 %v1251
        %2457 = vmatpush1.bf16.msra.mxu0 %v1250
        %2458 = vmatprep.mubr.bf16.mxu0 %v2425
        %2459 = vmatmul.mubr.bf16.gmra.mrb[0].mxu0 %v2424
        %v2460 = vpop.f32.mrb[0].mxu0
        %v2461 = vadd.f32 %v1117, %v2460
        %v2462 = vpop.f32.mrb[0].mxu0
        %v2463 = vadd.f32 %v1121, %v2462
        %v2464 = vpop.f32.mrb[0].mxu0
        %v2465 = vpop.f32.mrb[0].mxu0
        %2466 = vdwg.mxu0
        %v2467 = vtanh.pop %v2461
        %v2468 = vtanh.pop %v2463
        %v2469 = vpack.c.bf16 %v2467, %v2467
        %v2470 = vpack.c.bf16 %v2468, %v2468
        %2471 = vmatprep.subr.bf16.mxu0 %v1437
        %2472 = vmatpush1.bf16.msra.mxu0 %v1436
        %2473 = vmatprep.subr.bf16.mxu0 %v1439
        %2474 = vmatpush1.bf16.msra.mxu0 %v1438
        %2475 = vmatprep.subr.bf16.mxu0 %v1441
        %2476 = vmatpush1.bf16.msra.mxu0 %v1440
        %2477 = vmatprep.subr.bf16.mxu0 %v1443
        %2478 = vmatpush1.bf16.msra.mxu0 %v1442
        %2479 = vmatprep.subr.bf16.mxu0 %v1445
        %2480 = vmatpush1.bf16.msra.mxu0 %v1444
        %2481 = vmatprep.subr.bf16.mxu0 %v1447
        %2482 = vmatpush1.bf16.msra.mxu0 %v1446
        %2483 = vmatprep.subr.bf16.mxu0 %v1449
        %2484 = vmatpush1.bf16.msra.mxu0 %v1448
        %2485 = vmatprep.subr.bf16.mxu0 %v1451
        %2486 = vmatpush1.bf16.msra.mxu0 %v1450
        %2487 = vmatprep.subr.bf16.mxu0 %v1453
        %2488 = vmatpush1.bf16.msra.mxu0 %v1452
        %2489 = vmatprep.subr.bf16.mxu0 %v1455
        %2490 = vmatpush1.bf16.msra.mxu0 %v1454
        %2491 = vmatprep.subr.bf16.mxu0 %v1457
        %2492 = vmatpush1.bf16.msra.mxu0 %v1456
        %2493 = vmatprep.subr.bf16.mxu0 %v1459
        %2494 = vmatpush1.bf16.msra.mxu0 %v1458
        %2495 = vmatprep.subr.bf16.mxu0 %v1461
        %2496 = vmatpush1.bf16.msra.mxu0 %v1460
        %2497 = vmatprep.subr.bf16.mxu0 %v1463
        %2498 = vmatpush1.bf16.msra.mxu0 %v1462
        %2499 = vmatprep.subr.bf16.mxu0 %v1465
        %2500 = vmatpush1.bf16.msra.mxu0 %v1464
        %2501 = vmatprep.subr.bf16.mxu0 %v1467
        %2502 = vmatpush1.bf16.msra.mxu0 %v1466
        %2503 = vmatprep.mubr.bf16.mxu0 %v2470
        %2504 = vmatmul.mubr.bf16.gmra.mrb[0].mxu0 %v2469
        %v2505 = vpop.f32.mrb[0].mxu0
        %v2506 = vadd.f32 %v1333, %v2505
        %v2507 = vpop.f32.mrb[0].mxu0
        %v2508 = vadd.f32 %v1337, %v2507
        %v2509 = vpop.f32.mrb[0].mxu0
        %v2510 = vpop.f32.mrb[0].mxu0
        %2511 = vdwg.mxu0
        %v2512 = vtanh.pop %v2506
        %v2513 = vtanh.pop %v2508
        %v2514 = vpack.c.bf16 %v2512, %v2512
        %v2515 = vpack.c.bf16 %v2513, %v2513
        %2516 = vmatprep.subr.bf16.mxu0 %v1653
        %2517 = vmatpush1.bf16.msra.mxu0 %v1652
        %2518 = vmatprep.subr.bf16.mxu0 %v1655
        %2519 = vmatpush1.bf16.msra.mxu0 %v1654
        %2520 = vmatprep.subr.bf16.mxu0 %v1657
        %2521 = vmatpush1.bf16.msra.mxu0 %v1656
        %2522 = vmatprep.subr.bf16.mxu0 %v1659
        %2523 = vmatpush1.bf16.msra.mxu0 %v1658
        %2524 = vmatprep.subr.bf16.mxu0 %v1661
        %2525 = vmatpush1.bf16.msra.mxu0 %v1660
        %2526 = vmatprep.subr.bf16.mxu0 %v1663
        %2527 = vmatpush1.bf16.msra.mxu0 %v1662
        %2528 = vmatprep.subr.bf16.mxu0 %v1665
        %2529 = vmatpush1.bf16.msra.mxu0 %v1664
        %2530 = vmatprep.subr.bf16.mxu0 %v1667
        %2531 = vmatpush1.bf16.msra.mxu0 %v1666
        %2532 = vmatprep.subr.bf16.mxu0 %v1669
        %2533 = vmatpush1.bf16.msra.mxu0 %v1668
        %2534 = vmatprep.subr.bf16.mxu0 %v1671
        %2535 = vmatpush1.bf16.msra.mxu0 %v1670
        %2536 = vmatprep.subr.bf16.mxu0 %v1673
        %2537 = vmatpush1.bf16.msra.mxu0 %v1672
        %2538 = vmatprep.subr.bf16.mxu0 %v1675
        %2539 = vmatpush1.bf16.msra.mxu0 %v1674
        %2540 = vmatprep.subr.bf16.mxu0 %v1677
        %2541 = vmatpush1.bf16.msra.mxu0 %v1676
        %2542 = vmatprep.subr.bf16.mxu0 %v1679
        %2543 = vmatpush1.bf16.msra.mxu0 %v1678
        %2544 = vmatprep.subr.bf16.mxu0 %v1681
        %2545 = vmatpush1.bf16.msra.mxu0 %v1680
        %2546 = vmatprep.subr.bf16.mxu0 %v1683
        %2547 = vmatpush1.bf16.msra.mxu0 %v1682
        %2548 = vmatprep.mubr.bf16.mxu0 %v2515
        %2549 = vmatmul.mubr.bf16.gmra.mrb[0].mxu0 %v2514
        %v2550 = vpop.f32.mrb[0].mxu0
        %v2551 = vadd.f32 %v1549, %v2550
        %v2552 = vpop.f32.mrb[0].mxu0
        %v2553 = vadd.f32 %v1553, %v2552
        %v2554 = vpop.f32.mrb[0].mxu0
        %v2555 = vpop.f32.mrb[0].mxu0
        %2556 = vdwg.mxu0
        %v2559 = vcombine.low %v2551, %v2553
        %v2561 = vunpack.c.l.s4 1983009808
        %v2562 = vunpack.c.0.s8 %v2561
        %v2563 = vlaneseq
        %v2564 = vshrl.u32 %v2563, 7
        %v2565 = vsub.s32 %v2562, %v2564
        %v2566 = vrot.slane %v2559, %v2565
        %2568 = vst [vmem:[#allocation2] sm:$0xf] %v2566
        %v2569 = vld [vmem:[#allocation2] sm:$0xf]
        %s2570 = scalar_lea.vmem %s313, 24 [#allocation11]
        %2571 = vst.msk [vmem:[%s2570] sm:$0xf] %vm1097, %v2569
        %v2572 = vld [vmem:[#allocation2] sm:$0xf]
        %v2575 = vunpack.c.l.s4 1983009808
        %v2576 = vunpack.c.0.s8 %v2575
        %v2577 = vlaneseq
        %v2578 = vshrl.u32 %v2577, 7
        %v2579 = vsub.s32 %v2576, %v2578
        %v2580 = vrot.slane %v2572, %v2579
        %v2581 = vcombine.high %v2580, %v2580
        %v2584 = vpack.c.bf16 %v2580, %v2580
        %v2585 = vpack.c.bf16 %v2581, %v2581
        %2586 = vmatprep.subr.bf16.mxu0 %v1221
        %2587 = vmatpush1.bf16.msra.mxu0 %v1220
        %2588 = vmatprep.subr.bf16.mxu0 %v1223
        %2589 = vmatpush1.bf16.msra.mxu0 %v1222
        %2590 = vmatprep.subr.bf16.mxu0 %v1225
        %2591 = vmatpush1.bf16.msra.mxu0 %v1224
        %2592 = vmatprep.subr.bf16.mxu0 %v1227
        %2593 = vmatpush1.bf16.msra.mxu0 %v1226
        %2594 = vmatprep.subr.bf16.mxu0 %v1229
        %2595 = vmatpush1.bf16.msra.mxu0 %v1228
        %2596 = vmatprep.subr.bf16.mxu0 %v1231
        %2597 = vmatpush1.bf16.msra.mxu0 %v1230
        %2598 = vmatprep.subr.bf16.mxu0 %v1233
        %2599 = vmatpush1.bf16.msra.mxu0 %v1232
        %2600 = vmatprep.subr.bf16.mxu0 %v1235
        %2601 = vmatpush1.bf16.msra.mxu0 %v1234
        %2602 = vmatprep.subr.bf16.mxu0 %v1237
        %2603 = vmatpush1.bf16.msra.mxu0 %v1236
        %2604 = vmatprep.subr.bf16.mxu0 %v1239
        %2605 = vmatpush1.bf16.msra.mxu0 %v1238
        %2606 = vmatprep.subr.bf16.mxu0 %v1241
        %2607 = vmatpush1.bf16.msra.mxu0 %v1240
        %2608 = vmatprep.subr.bf16.mxu0 %v1243
        %2609 = vmatpush1.bf16.msra.mxu0 %v1242
        %2610 = vmatprep.subr.bf16.mxu0 %v1245
        %2611 = vmatpush1.bf16.msra.mxu0 %v1244
        %2612 = vmatprep.subr.bf16.mxu0 %v1247
        %2613 = vmatpush1.bf16.msra.mxu0 %v1246
        %2614 = vmatprep.subr.bf16.mxu0 %v1249
        %2615 = vmatpush1.bf16.msra.mxu0 %v1248
        %2616 = vmatprep.subr.bf16.mxu0 %v1251
        %2617 = vmatpush1.bf16.msra.mxu0 %v1250
        %2618 = vmatprep.mubr.bf16.mxu0 %v2585
        %2619 = vmatmul.mubr.bf16.gmra.mrb[0].mxu0 %v2584
        %v2620 = vpop.f32.mrb[0].mxu0
        %v2621 = vadd.f32 %v1117, %v2620
        %v2622 = vpop.f32.mrb[0].mxu0
        %v2623 = vadd.f32 %v1121, %v2622
        %v2624 = vpop.f32.mrb[0].mxu0
        %v2625 = vpop.f32.mrb[0].mxu0
        %2626 = vdwg.mxu0
        %v2627 = vtanh.pop %v2621
        %v2628 = vtanh.pop %v2623
        %v2629 = vpack.c.bf16 %v2627, %v2627
        %v2630 = vpack.c.bf16 %v2628, %v2628
        %2631 = vmatprep.subr.bf16.mxu0 %v1437
        %2632 = vmatpush1.bf16.msra.mxu0 %v1436
        %2633 = vmatprep.subr.bf16.mxu0 %v1439
        %2634 = vmatpush1.bf16.msra.mxu0 %v1438
        %2635 = vmatprep.subr.bf16.mxu0 %v1441
        %2636 = vmatpush1.bf16.msra.mxu0 %v1440
        %2637 = vmatprep.subr.bf16.mxu0 %v1443
        %2638 = vmatpush1.bf16.msra.mxu0 %v1442
        %2639 = vmatprep.subr.bf16.mxu0 %v1445
        %2640 = vmatpush1.bf16.msra.mxu0 %v1444
        %2641 = vmatprep.subr.bf16.mxu0 %v1447
        %2642 = vmatpush1.bf16.msra.mxu0 %v1446
        %2643 = vmatprep.subr.bf16.mxu0 %v1449
        %2644 = vmatpush1.bf16.msra.mxu0 %v1448
        %2645 = vmatprep.subr.bf16.mxu0 %v1451
        %2646 = vmatpush1.bf16.msra.mxu0 %v1450
        %2647 = vmatprep.subr.bf16.mxu0 %v1453
        %2648 = vmatpush1.bf16.msra.mxu0 %v1452
        %2649 = vmatprep.subr.bf16.mxu0 %v1455
        %2650 = vmatpush1.bf16.msra.mxu0 %v1454
        %2651 = vmatprep.subr.bf16.mxu0 %v1457
        %2652 = vmatpush1.bf16.msra.mxu0 %v1456
        %2653 = vmatprep.subr.bf16.mxu0 %v1459
        %2654 = vmatpush1.bf16.msra.mxu0 %v1458
        %2655 = vmatprep.subr.bf16.mxu0 %v1461
        %2656 = vmatpush1.bf16.msra.mxu0 %v1460
        %2657 = vmatprep.subr.bf16.mxu0 %v1463
        %2658 = vmatpush1.bf16.msra.mxu0 %v1462
        %2659 = vmatprep.subr.bf16.mxu0 %v1465
        %2660 = vmatpush1.bf16.msra.mxu0 %v1464
        %2661 = vmatprep.subr.bf16.mxu0 %v1467
        %2662 = vmatpush1.bf16.msra.mxu0 %v1466
        %2663 = vmatprep.mubr.bf16.mxu0 %v2630
        %2664 = vmatmul.mubr.bf16.gmra.mrb[0].mxu0 %v2629
        %v2665 = vpop.f32.mrb[0].mxu0
        %v2666 = vadd.f32 %v1333, %v2665
        %v2667 = vpop.f32.mrb[0].mxu0
        %v2668 = vadd.f32 %v1337, %v2667
        %v2669 = vpop.f32.mrb[0].mxu0
        %v2670 = vpop.f32.mrb[0].mxu0
        %2671 = vdwg.mxu0
        %v2672 = vtanh.pop %v2666
        %v2673 = vtanh.pop %v2668
        %v2674 = vpack.c.bf16 %v2672, %v2672
        %v2675 = vpack.c.bf16 %v2673, %v2673
        %2676 = vmatprep.subr.bf16.mxu0 %v1653
        %2677 = vmatpush1.bf16.msra.mxu0 %v1652
        %2678 = vmatprep.subr.bf16.mxu0 %v1655
        %2679 = vmatpush1.bf16.msra.mxu0 %v1654
        %2680 = vmatprep.subr.bf16.mxu0 %v1657
        %2681 = vmatpush1.bf16.msra.mxu0 %v1656
        %2682 = vmatprep.subr.bf16.mxu0 %v1659
        %2683 = vmatpush1.bf16.msra.mxu0 %v1658
        %2684 = vmatprep.subr.bf16.mxu0 %v1661
        %2685 = vmatpush1.bf16.msra.mxu0 %v1660
        %2686 = vmatprep.subr.bf16.mxu0 %v1663
        %2687 = vmatpush1.bf16.msra.mxu0 %v1662
        %2688 = vmatprep.subr.bf16.mxu0 %v1665
        %2689 = vmatpush1.bf16.msra.mxu0 %v1664
        %2690 = vmatprep.subr.bf16.mxu0 %v1667
        %2691 = vmatpush1.bf16.msra.mxu0 %v1666
        %2692 = vmatprep.subr.bf16.mxu0 %v1669
        %2693 = vmatpush1.bf16.msra.mxu0 %v1668
        %2694 = vmatprep.subr.bf16.mxu0 %v1671
        %2695 = vmatpush1.bf16.msra.mxu0 %v1670
        %2696 = vmatprep.subr.bf16.mxu0 %v1673
        %2697 = vmatpush1.bf16.msra.mxu0 %v1672
        %2698 = vmatprep.subr.bf16.mxu0 %v1675
        %2699 = vmatpush1.bf16.msra.mxu0 %v1674
        %2700 = vmatprep.subr.bf16.mxu0 %v1677
        %2701 = vmatpush1.bf16.msra.mxu0 %v1676
        %2702 = vmatprep.subr.bf16.mxu0 %v1679
        %2703 = vmatpush1.bf16.msra.mxu0 %v1678
        %2704 = vmatprep.subr.bf16.mxu0 %v1681
        %2705 = vmatpush1.bf16.msra.mxu0 %v1680
        %2706 = vmatprep.subr.bf16.mxu0 %v1683
        %2707 = vmatpush1.bf16.msra.mxu0 %v1682
        %2708 = vmatprep.mubr.bf16.mxu0 %v2675
        %2709 = vmatmul.mubr.bf16.gmra.mrb[0].mxu0 %v2674
        %v2710 = vpop.f32.mrb[0].mxu0
        %v2711 = vadd.f32 %v1549, %v2710
        %v2712 = vpop.f32.mrb[0].mxu0
        %v2713 = vadd.f32 %v1553, %v2712
        %v2714 = vpop.f32.mrb[0].mxu0
        %v2715 = vpop.f32.mrb[0].mxu0
        %2716 = vdwg.mxu0
        %v2719 = vcombine.low %v2711, %v2713
        %v2721 = vunpack.c.l.s4 1983009808
        %v2722 = vunpack.c.0.s8 %v2721
        %v2723 = vlaneseq
        %v2724 = vshrl.u32 %v2723, 7
        %v2725 = vsub.s32 %v2722, %v2724
        %v2726 = vrot.slane %v2719, %v2725
        %2728 = vst [vmem:[#allocation2] sm:$0xf] %v2726
        %v2729 = vld [vmem:[#allocation2] sm:$0xf]
        %s2730 = scalar_lea.vmem %s313, 28 [#allocation11]
        %2731 = vst.msk [vmem:[%s2730] sm:$0xf] %vm1097, %v2729
        %s2732 = sand.u32 %s179, 1
        %s2733 = scalar_lea.sflag [#allocation5], %s2732
        %s2734 = sand.u32 %s179, 1
        %s2735 = smul.addr %s2734, 32
        %s2736 = scalar_lea.vmem [#allocation11], %s2735
        // Predicated region
        $region73: #{tpu_custom_call.1} parent=47 // pred_check
          %p2737 = pneg %p189
        $region74: #{tpu_custom_call.1} parent=47 // pred_check_branch
          %2739 = sbr.rel (%p2737) target = $region76
        $region75: #{tpu_custom_call.1} parent=47 // pred_region
          %s2740 = smul.u32 8, %s24
          %s2742 = ssub.s32 512, 512
          %2743 = vsyncadd %s2733, %s2742
          %s2744 = smul.addr %s2740, 2
          %s2745 = smul.addr %s2744, 32
          %s2746 = scalar_lea.hbm %s7, %s2745
          %s2747 = sshll.u32 %s2736, 4
          %s2748 = int_to_ptr.vmem [resolvable:$true] %s2747
          %2753 = dma.vmem_to_hbm [thread:$0]  %s2748, 512, %s2746, %s2733, 64, 64, 4
        $region76: #{tpu_custom_call.1} parent=47 // pred_fallthru
          _
      $region48: #{tpu_custom_call.1} parent=5 // pred_fallthru
        _
      %p2754 = scmp.le.s32.totalorder 2, %s19
      // Predicated region
      $region77: #{tpu_custom_call.1} parent=5 // pred_check
        %p2755 = pneg %p2754
      $region78: #{tpu_custom_call.1} parent=5 // pred_check_branch
        %2757 = sbr.rel (%p2755) target = $region80
      $region79: #{tpu_custom_call.1} parent=5 // pred_region
        %s2758 = ssub.s32 %s19, 2
        // Predicated region
        $region81: #{tpu_custom_call.1} parent=79 // pred_check
          %p2759 = pneg %p195
        $region82: #{tpu_custom_call.1} parent=79 // pred_check_branch
          %2761 = sbr.rel (%p2759) target = $region84
        $region83: #{tpu_custom_call.1} parent=79 // pred_region
          %s2762 = sand.u32 %s180, 1
          %s2763 = scalar_lea.sflag [#allocation5], %s2762
          %s2764 = sand.u32 %s180, 1
          %s2765 = smul.addr %s2764, 32
          %s2766 = scalar_lea.vmem [#allocation11], %s2765
          %2767 = dma.done %s2763, 512
        $region84: #{tpu_custom_call.1} parent=79 // pred_fallthru
          _
      $region80: #{tpu_custom_call.1} parent=5 // pred_fallthru
        _
    $region6: #{tpu_custom_call.1} parent=1 // loop_footer
      %s23 = sadd.s32 1, %s19
    $region7: #{tpu_custom_call.1} parent=1 // loop_footer_branch
      %18 = sbr.rel target = $region3
    $region8: #{tpu_custom_call.1} parent=1 // loop_exit
      _
    %2768 = vsyncpa [#allocation4], 1
    %s2769 = scalar_lea.sflag [#allocation4], 1
    %2770 = vsyncpa %s2769, 1
    %2771 = vsyncpa [#allocation7], 1
    %2772 = vsyncpa [#allocation10], 1
    %2773 = vsyncpa [#allocation5], 1
    %s2774 = scalar_lea.sflag [#allocation5], 1
    %2775 = vsyncpa %s2774, 1

</llo_original>
